<compile_context>
chip_gen: v7x
topology: tpu7x:2x2x1
jax: 0.10.0
libtpu: 0.0.40
codegen_flags: <defaults>
</compile_context>

<pallas_src>
import functools
import math

import jax
import jax.numpy as jnp
from jax import lax
from jax.experimental import pallas as pl
from jax.experimental.pallas import tpu as pltpu

# ----------------------------- small BERT config -----------------------------
CFG = dict(
    vocab=100, max_pos=64, types=2,
    hidden=32, heads=4, head_dim=8, intermediate=64, layers=2,
    ln_eps=1e-12, bn_eps=1e-5,
)
B, S = 2, 8


# ------------------------------ in-kernel helpers ------------------------------
def _ln(x, g, b, eps):
    mu = jnp.mean(x, axis=-1, keepdims=True)
    var = jnp.mean((x - mu) ** 2, axis=-1, keepdims=True)
    return (x - mu) * lax.rsqrt(var + eps) * g + b


def _mm(a_f32, w_bf16, bias_f32):
    # bf16 operands on the MXU, f32 accumulation, bias add in f32.
    return jnp.dot(a_f32.astype(jnp.bfloat16), w_bf16,
                   preferred_element_type=jnp.float32) + bias_f32


# ------------------- single fused encoder kernel (grid over layers) -------------------
def _encoder_kernel(emb_ref, bias_ref, maskf_ref, embg_ref, embb_ref,
                    wqkv_ref, bqkv_ref, wo3_ref, bo_ref, ln1g_ref, ln1b_ref,
                    w1_ref, b1_ref, w2_ref, b2_ref, ln2g_ref, ln2b_ref,
                    pw_ref, pb_ref,
                    nw1_ref, nb1_ref, ng1_ref, nbb1_ref,
                    nw2_ref, nb2_ref, ng2_ref, nbb2_ref,
                    o_ref, x_vmem,
                    *, batch, seq, heads, head_dim, num_layers,
                    scale, ln_eps, bn_eps, pooling, normalization):
    hidden = heads * head_dim
    l = pl.program_id(0)

    # ---- grid step 0: embedding LayerNorm into the resident activation scratch ----
    @pl.when(l == 0)
    def _():
        x_vmem[...] = _ln(emb_ref[...], embg_ref[...], embb_ref[...], ln_eps)

    x = x_vmem[...]                                          # (B*S, H) f32, VMEM-resident

    # Fused QKV projection over the whole flattened batch (single wide MXU op).
    qkv = _mm(x, wqkv_ref[0], bqkv_ref[0])                   # (B*S, 3H) f32

    # Per-sequence attention with all heads batched into 3-D einsums.
    wo3 = wo3_ref[0]                                         # (heads, DH, H) bf16
    bias_all = bias_ref[...]                                 # (B, 1, S) additive key mask
    attn_rows = []
    for b in range(batch):                                   # B is tiny and static
        r0 = b * seq

        def head_stack(col0, _r0=r0):
            return jnp.stack(
                [qkv[_r0:_r0 + seq, col0 + h * head_dim:col0 + (h + 1) * head_dim]
                 for h in range(heads)], axis=0)             # (heads, S, DH) f32

        qh = head_stack(0).astype(jnp.bfloat16)
        kh = head_stack(hidden).astype(jnp.bfloat16)
        vh = head_stack(2 * hidden).astype(jnp.bfloat16)

        s = jnp.einsum('hqd,hkd->hqk', qh, kh,
                       preferred_element_type=jnp.float32) * scale   # (heads, S, S)
        s = s + bias_all[b:b + 1]                            # (1,1,S) broadcast over heads/q
        m = jnp.max(s, axis=-1, keepdims=True)
        p = jnp.exp(s - m)
        p = p * pl.reciprocal(jnp.sum(p, axis=-1, keepdims=True), approx=True)

        ctx = jnp.einsum('hqk,hkd->hqd', p.astype(jnp.bfloat16), vh,
                         preferred_element_type=jnp.float32)          # (heads, S, DH)
        # Output projection with head-major weights, summed over heads (no ctx scratch,
        # no masked lane-slice stores).
        attn_rows.append(
            jnp.einsum('hsd,hdo->hso', ctx.astype(jnp.bfloat16), wo3,
                       preferred_element_type=jnp.float32).sum(axis=0))   # (S, H)

    attn = jnp.concatenate(attn_rows, axis=0) + bo_ref[0]    # (B*S, H)

    h1 = _ln(attn + x, ln1g_ref[0], ln1b_ref[0], ln_eps)     # add & norm
    ffn = _mm(h1, w1_ref[0], b1_ref[0])
    ffn = 0.5 * ffn * (1.0 + lax.erf(ffn * (1.0 / math.sqrt(2.0))))   # exact erf-GELU
    ffn = _mm(ffn, w2_ref[0], b2_ref[0])
    out = _ln(ffn + h1, ln2g_ref[0], ln2b_ref[0], ln_eps)    # add & norm
    x_vmem[...] = out                                        # stays resident for layer l+1

    # ---- last grid step: fused pooling + normalization head ----
    @pl.when(l == num_layers - 1)
    def _():
        if pooling == "avg":
            mflat = maskf_ref[...]                           # (B*S, 1) float {0,1}
            masked = out * mflat                             # masked_fill(~mask, 0)
            sums, cnts = [], []
            for b in range(batch):
                r0 = b * seq
                sums.append(jnp.sum(masked[r0:r0 + seq, :], axis=0, keepdims=True))
                cnts.append(jnp.sum(mflat[r0:r0 + seq, :], axis=0, keepdims=True))
            pooled = (jnp.concatenate(sums, axis=0)
                      / jnp.maximum(jnp.concatenate(cnts, axis=0), 1e-9))
        elif pooling == "cls_pooler":
            cls = jnp.concatenate([out[b * seq:b * seq + 1, :] for b in range(batch)],
                                  axis=0)
            pooled = jnp.tanh(_mm(cls, pw_ref[...], pb_ref[...]))
        else:  # "cls"
            pooled = jnp.concatenate([out[b * seq:b * seq + 1, :] for b in range(batch)],
                                     axis=0)

        res = pooled
        if normalization:
            def bn(x_, g_, b_):   # BatchNorm1d, training-mode batch stats (biased var)
                mu = jnp.mean(x_, axis=0, keepdims=True)
                var = jnp.mean((x_ - mu) ** 2, axis=0, keepdims=True)
                return (x_ - mu) * lax.rsqrt(var + bn_eps) * g_ + b_
            t = jnp.maximum(_mm(res, nw1_ref[...], nb1_ref[...]), 0.0)   # Linear -> ReLU
            t = bn(t, ng1_ref[...], nbb1_ref[...])                       # BatchNorm1d
            t = jnp.maximum(_mm(t, nw2_ref[...], nb2_ref[...]), 0.0)     # Linear -> ReLU
            res = bn(t, ng2_ref[...], nbb2_ref[...])                     # BatchNorm1d
        o_ref[...] = res.astype(o_ref.dtype)


# ------------------------------- model wrapper --------------------------------
@functools.partial(jax.jit, static_argnames=("pooling", "normalization"))
def hf_bert_encoder_forward(prep, ids, attn_mask, segments,
                            pooling="avg", normalization=True):
    Bb, Ss = ids.shape
    H, I = CFG["hidden"], CFG["intermediate"]
    heads, DH = CFG["heads"], CFG["head_dim"]
    L = prep["wqkv_s"].shape[0]
    BS = Bb * Ss

    # embedding-table gathers are XLA glue; everything downstream is ONE pallas_call.
    emb = (prep["word_emb"][ids]
           + prep["pos_emb"][:Ss][None, :, :]
           + prep["type_emb"][segments])
    emb_flat = emb.reshape(BS, H).astype(jnp.float32)

    mask_f = attn_mask.astype(jnp.float32)
    attn_bias = ((1.0 - mask_f) * -10000.0).reshape(Bb, 1, Ss)
    mask_flat = mask_f.reshape(BS, 1)

    def const_spec(shape):
        return pl.BlockSpec(shape, lambda l: (0,) * len(shape))

    def layer_spec(shape):
        return pl.BlockSpec(shape, lambda l: (l,) + (0,) * (len(shape) - 1))

    in_specs = [
        const_spec((BS, H)),                                   # embeddings (used at l==0)
        const_spec((Bb, 1, Ss)),                               # additive attention mask
        const_spec((BS, 1)),                                   # avg-pool mask
        const_spec((1, H)), const_spec((1, H)),                # emb LayerNorm
        layer_spec((1, H, 3 * H)), layer_spec((1, 1, 3 * H)),  # fused QKV
        layer_spec((1, heads, DH, H)), layer_spec((1, 1, H)),  # Wo (head-major) + bias
        layer_spec((1, 1, H)), layer_spec((1, 1, H)),          # LN1
        layer_spec((1, H, I)), layer_spec((1, 1, I)),          # FFN in
        layer_spec((1, I, H)), layer_spec((1, 1, H)),          # FFN out
        layer_spec((1, 1, H)), layer_spec((1, 1, H)),          # LN2
        const_spec((H, H)), const_spec((1, H)),                # pooler (cls_pooler)
        const_spec((H, I)), const_spec((1, I)),                # norm Linear 1
        const_spec((1, I)), const_spec((1, I)),                # BatchNorm1d 1
        const_spec((I, H)), const_spec((1, H)),                # norm Linear 2
        const_spec((1, H)), const_spec((1, H)),                # BatchNorm1d 2
    ]

    kernel = functools.partial(
        _encoder_kernel, batch=Bb, seq=Ss, heads=heads, head_dim=DH,
        num_layers=L, scale=1.0 / math.sqrt(DH),
        ln_eps=CFG["ln_eps"], bn_eps=CFG["bn_eps"],
        pooling=pooling, normalization=normalization)

    return pl.pallas_call(
        kernel,
        out_shape=jax.ShapeDtypeStruct((Bb, H), jnp.float32),
        grid=(L,),
        in_specs=in_specs,
        out_specs=const_spec((Bb, H)),
        scratch_shapes=[pltpu.VMEM((BS, H), jnp.float32)],     # resident activations
        compiler_params=pltpu.CompilerParams(
            dimension_semantics=("arbitrary",)),               # layers carry VMEM state
    )(emb_flat, attn_bias, mask_flat,
      prep["emb_ln_g"], prep["emb_ln_b"],
      prep["wqkv_s"], prep["bqkv_s"], prep["wo3_s"], prep["bo_s"],
      prep["ln1_g_s"], prep["ln1_b_s"],
      prep["w1_s"], prep["b1_s"], prep["w2_s"], prep["b2_s"],
      prep["ln2_g_s"], prep["ln2_b_s"],
      prep["pooler_w"], prep["pooler_b"],
      prep["n_w1"], prep["n_b1"], prep["bn1_g"], prep["bn1_b"],
      prep["n_w2"], prep["n_b2"], prep["bn2_g"], prep["bn2_b"])


# --------------------- one-time parameter layout preparation --------------------
def prepare_params(p):
    """Transpose torch (N,K) weights to (K,N), fuse QKV, stack layers on a leading L axis,
    reshape Wo to head-major (heads, DH, H), cast matmul weights to bf16."""
    H, I = CFG["hidden"], CFG["intermediate"]
    heads, DH = CFG["heads"], CFG["head_dim"]

    def wt(w):
        return jnp.asarray(w).T.astype(jnp.bfloat16)

    def row(v):
        return jnp.asarray(v).reshape(1, -1).astype(jnp.float32)

    def stack(fn):
        return jnp.stack([fn(lyr) for lyr in p["layers"]], axis=0)

    return dict(
        word_emb=p["word_emb"], pos_emb=p["pos_emb"], type_emb=p["type_emb"],
        emb_ln_g=row(p["emb_ln_g"]), emb_ln_b=row(p["emb_ln_b"]),
        wqkv_s=stack(lambda l: jnp.concatenate(
            [l["wq"].T, l["wk"].T, l["wv"].T], axis=1)).astype(jnp.bfloat16),
        bqkv_s=stack(lambda l: jnp.concatenate(
            [l["bq"], l["bk"], l["bv"]]).reshape(1, -1)).astype(jnp.float32),
        wo3_s=stack(lambda l: l["wo"].T.reshape(heads, DH, H)).astype(jnp.bfloat16),
        bo_s=stack(lambda l: row(l["bo"])),
        ln1_g_s=stack(lambda l: row(l["ln1_g"])), ln1_b_s=stack(lambda l: row(l["ln1_b"])),
        w1_s=stack(lambda l: l["w1"].T).astype(jnp.bfloat16),
        b1_s=stack(lambda l: row(l["b1"])),
        w2_s=stack(lambda l: l["w2"].T).astype(jnp.bfloat16),
        b2_s=stack(lambda l: row(l["b2"])),
        ln2_g_s=stack(lambda l: row(l["ln2_g"])), ln2_b_s=stack(lambda l: row(l["ln2_b"])),
        pooler_w=wt(p["pooler_w"]), pooler_b=row(p["pooler_b"]),
        n_w1=wt(p["n_w1"]), n_b1=row(p["n_b1"]),
        bn1_g=row(p["bn1_g"]), bn1_b=row(p["bn1_b"]),
        n_w2=wt(p["n_w2"]), n_b2=row(p["n_b2"]),
        bn2_g=row(p["bn2_g"]), bn2_b=row(p["bn2_b"]),
    )


# ----------------------------- deterministic init -----------------------------
def init_params(key):
    H, I = CFG["hidden"], CFG["intermediate"]
    keys = iter(jax.random.split(key, 256))

    def nrm(shape):
        return 0.02 * jax.random.normal(next(keys), shape, jnp.float32)

    params = dict(
        word_emb=nrm((CFG["vocab"], H)),
        pos_emb=nrm((CFG["max_pos"], H)),
        type_emb=nrm((CFG["types"], H)),
        emb_ln_g=jnp.ones((H,), jnp.float32),
        emb_ln_b=jnp.zeros((H,), jnp.float32),
        pooler_w=nrm((H, H)), pooler_b=jnp.zeros((H,), jnp.float32),
        # normalization head (args.normalization == True)
        n_w1=nrm((I, H)), n_b1=jnp.zeros((I,), jnp.float32),
        bn1_g=jnp.ones((I,), jnp.float32), bn1_b=jnp.zeros((I,), jnp.float32),
        n_w2=nrm((H, I)), n_b2=jnp.zeros((H,), jnp.float32),
        bn2_g=jnp.ones((H,), jnp.float32), bn2_b=jnp.zeros((H,), jnp.float32),
        layers=[],
    )
    for _ in range(CFG["layers"]):
        params["layers"].append(dict(
            wq=nrm((H, H)), bq=jnp.zeros((H,), jnp.float32),
            wk=nrm((H, H)), bk=jnp.zeros((H,), jnp.float32),
            wv=nrm((H, H)), bv=jnp.zeros((H,), jnp.float32),
            wo=nrm((H, H)), bo=jnp.zeros((H,), jnp.float32),
            ln1_g=jnp.ones((H,), jnp.float32), ln1_b=jnp.zeros((H,), jnp.float32),
            w1=nrm((I, H)), b1=jnp.zeros((I,), jnp.float32),
            w2=nrm((H, I)), b2=jnp.zeros((H,), jnp.float32),
            ln2_g=jnp.ones((H,), jnp.float32), ln2_b=jnp.zeros((H,), jnp.float32),
        ))
    return params


# ------------------------------------ main ------------------------------------
if __name__ == "__main__":
    root = jax.random.PRNGKey(0)
    pkey, ikey = jax.random.split(root, 2)

    params = init_params(pkey)
    prep = prepare_params(params)      # one-time layout prep (fused/stacked bf16 weights)

    ids = jax.random.randint(ikey, (B, S), 0, CFG["vocab"], dtype=jnp.int32)
    segments = jnp.zeros((B, S), jnp.int32)
    # second sequence has 2 padding positions to exercise masked avg pooling
    attn_mask = jnp.array([[True] * S,
                           [True] * (S - 2) + [False] * 2], dtype=jnp.bool_)

    out = hf_bert_encoder_forward(prep, ids, attn_mask, segments,
                                  pooling="avg", normalization=True)
    jax.block_until_ready(out)
    assert out.shape == (B, CFG["hidden"]) and out.dtype == jnp.float32
    print("KERNEL_OK")
</pallas_src>

<mosaic_0001>
module attributes {stable_mosaic.version = 11 : i64} {
  func.func @_encoder_kernel(%arg0: i32, %arg1: memref<16x32xf32, #tpu.memory_space<vmem>>, %arg2: memref<2x1x8xf32, #tpu.memory_space<vmem>>, %arg3: memref<16x1xf32, #tpu.memory_space<vmem>>, %arg4: memref<1x32xf32, #tpu.memory_space<vmem>>, %arg5: memref<1x32xf32, #tpu.memory_space<vmem>>, %arg6: memref<1x32x96xbf16, #tpu.memory_space<vmem>>, %arg7: memref<1x1x96xf32, #tpu.memory_space<vmem>>, %arg8: memref<1x4x8x32xbf16, #tpu.memory_space<vmem>>, %arg9: memref<1x1x32xf32, #tpu.memory_space<vmem>>, %arg10: memref<1x1x32xf32, #tpu.memory_space<vmem>>, %arg11: memref<1x1x32xf32, #tpu.memory_space<vmem>>, %arg12: memref<1x32x64xbf16, #tpu.memory_space<vmem>>, %arg13: memref<1x1x64xf32, #tpu.memory_space<vmem>>, %arg14: memref<1x64x32xbf16, #tpu.memory_space<vmem>>, %arg15: memref<1x1x32xf32, #tpu.memory_space<vmem>>, %arg16: memref<1x1x32xf32, #tpu.memory_space<vmem>>, %arg17: memref<1x1x32xf32, #tpu.memory_space<vmem>>, %arg18: memref<32x32xbf16, #tpu.memory_space<vmem>>, %arg19: memref<1x32xf32, #tpu.memory_space<vmem>>, %arg20: memref<32x64xbf16, #tpu.memory_space<vmem>>, %arg21: memref<1x64xf32, #tpu.memory_space<vmem>>, %arg22: memref<1x64xf32, #tpu.memory_space<vmem>>, %arg23: memref<1x64xf32, #tpu.memory_space<vmem>>, %arg24: memref<64x32xbf16, #tpu.memory_space<vmem>>, %arg25: memref<1x32xf32, #tpu.memory_space<vmem>>, %arg26: memref<1x32xf32, #tpu.memory_space<vmem>>, %arg27: memref<1x32xf32, #tpu.memory_space<vmem>>, %arg28: memref<2x32xf32, #tpu.memory_space<vmem>>, %arg29: memref<16x32xf32, #tpu.memory_space<vmem>>) attributes {dimension_semantics = [#tpu.dimension_semantics<arbitrary>], iteration_bounds = array<i64: 2>, scalar_prefetch = 0 : i64, scratch_operands = 1 : i64, tpu.core_type = #tpu.core_type<tc>, window_params = [{pipeline_mode = #tpu.pipeline_mode<synchronous>, transform_indices = @transform_0, window_bounds = array<i64: 16, 32>}, {pipeline_mode = #tpu.pipeline_mode<synchronous>, transform_indices = @transform_1, window_bounds = array<i64: 2, 1, 8>}, {pipeline_mode = #tpu.pipeline_mode<synchronous>, transform_indices = @transform_2, window_bounds = array<i64: 16, 1>}, {pipeline_mode = #tpu.pipeline_mode<synchronous>, transform_indices = @transform_3, window_bounds = array<i64: 1, 32>}, {pipeline_mode = #tpu.pipeline_mode<synchronous>, transform_indices = @transform_4, window_bounds = array<i64: 1, 32>}, {transform_indices = @transform_5, window_bounds = array<i64: 1, 32, 96>}, {transform_indices = @transform_6, window_bounds = array<i64: 1, 1, 96>}, {transform_indices = @transform_7, window_bounds = array<i64: 1, 4, 8, 32>}, {transform_indices = @transform_8, window_bounds = array<i64: 1, 1, 32>}, {transform_indices = @transform_9, window_bounds = array<i64: 1, 1, 32>}, {transform_indices = @transform_10, window_bounds = array<i64: 1, 1, 32>}, {transform_indices = @transform_11, window_bounds = array<i64: 1, 32, 64>}, {transform_indices = @transform_12, window_bounds = array<i64: 1, 1, 64>}, {transform_indices = @transform_13, window_bounds = array<i64: 1, 64, 32>}, {transform_indices = @transform_14, window_bounds = array<i64: 1, 1, 32>}, {transform_indices = @transform_15, window_bounds = array<i64: 1, 1, 32>}, {transform_indices = @transform_16, window_bounds = array<i64: 1, 1, 32>}, {pipeline_mode = #tpu.pipeline_mode<synchronous>, transform_indices = @transform_17, window_bounds = array<i64: 32, 32>}, {pipeline_mode = #tpu.pipeline_mode<synchronous>, transform_indices = @transform_18, window_bounds = array<i64: 1, 32>}, {pipeline_mode = #tpu.pipeline_mode<synchronous>, transform_indices = @transform_19, window_bounds = array<i64: 32, 64>}, {pipeline_mode = #tpu.pipeline_mode<synchronous>, transform_indices = @transform_20, window_bounds = array<i64: 1, 64>}, {pipeline_mode = #tpu.pipeline_mode<synchronous>, transform_indices = @transform_21, window_bounds = array<i64: 1, 64>}, {pipeline_mode = #tpu.pipeline_mode<synchronous>, transform_indices = @transform_22, window_bounds = array<i64: 1, 64>}, {pipeline_mode = #tpu.pipeline_mode<synchronous>, transform_indices = @transform_23, window_bounds = array<i64: 64, 32>}, {pipeline_mode = #tpu.pipeline_mode<synchronous>, transform_indices = @transform_24, window_bounds = array<i64: 1, 32>}, {pipeline_mode = #tpu.pipeline_mode<synchronous>, transform_indices = @transform_25, window_bounds = array<i64: 1, 32>}, {pipeline_mode = #tpu.pipeline_mode<synchronous>, transform_indices = @transform_26, window_bounds = array<i64: 1, 32>}, {pipeline_mode = #tpu.pipeline_mode<synchronous>, transform_indices = @transform_27, window_bounds = array<i64: 2, 32>}]} {
    %c0_i32 = arith.constant 0 : i32
    %0 = arith.cmpi eq, %arg0, %c0_i32 : i32
    %1 = arith.extui %0 : i1 to i32
    %c0_i32_0 = arith.constant 0 : i32
    %2 = arith.cmpi ne, %1, %c0_i32_0 : i32
    scf.if %2 {
      %c0_74 = arith.constant 0 : index
      %c0_75 = arith.constant 0 : index
      %204 = vector.load %arg1[%c0_74, %c0_75] : memref<16x32xf32, #tpu.memory_space<vmem>>, vector<16x32xf32>
      %c0_76 = arith.constant 0 : index
      %c0_77 = arith.constant 0 : index
      %205 = vector.load %arg4[%c0_76, %c0_77] : memref<1x32xf32, #tpu.memory_space<vmem>>, vector<1x32xf32>
      %c0_78 = arith.constant 0 : index
      %c0_79 = arith.constant 0 : index
      %206 = vector.load %arg5[%c0_78, %c0_79] : memref<1x32xf32, #tpu.memory_space<vmem>>, vector<1x32xf32>
      %cst_80 = arith.constant dense<0.000000e+00> : vector<16xf32>
      %207 = vector.multi_reduction <add>, %204, %cst_80 [1] : vector<16x32xf32> to vector<16xf32>
      %208 = vector.shape_cast %207 : vector<16xf32> to vector<16x1xf32>
      %cst_81 = arith.constant 3.200000e+01 : f32
      %209 = vector.broadcast %cst_81 : f32 to vector<16x1xf32>
      %210 = arith.divf %208, %209 : vector<16x1xf32>
      %211 = vector.broadcast %210 : vector<16x1xf32> to vector<16x32xf32>
      %212 = arith.subf %204, %211 : vector<16x32xf32>
      %213 = arith.mulf %212, %212 : vector<16x32xf32>
      %cst_82 = arith.constant dense<0.000000e+00> : vector<16xf32>
      %214 = vector.multi_reduction <add>, %213, %cst_82 [1] : vector<16x32xf32> to vector<16xf32>
      %215 = vector.shape_cast %214 : vector<16xf32> to vector<16x1xf32>
      %cst_83 = arith.constant 3.200000e+01 : f32
      %216 = vector.broadcast %cst_83 : f32 to vector<16x1xf32>
      %217 = arith.divf %215, %216 : vector<16x1xf32>
      %218 = vector.broadcast %210 : vector<16x1xf32> to vector<16x32xf32>
      %219 = arith.subf %204, %218 : vector<16x32xf32>
      %cst_84 = arith.constant 9.99999996E-13 : f32
      %220 = vector.broadcast %cst_84 : f32 to vector<16x1xf32>
      %221 = arith.addf %217, %220 : vector<16x1xf32>
      %222 = math.rsqrt %221 : vector<16x1xf32>
      %223 = vector.broadcast %222 : vector<16x1xf32> to vector<16x32xf32>
      %224 = arith.mulf %219, %223 : vector<16x32xf32>
      %225 = vector.broadcast %205 : vector<1x32xf32> to vector<16x32xf32>
      %226 = arith.mulf %224, %225 : vector<16x32xf32>
      %227 = vector.broadcast %206 : vector<1x32xf32> to vector<16x32xf32>
      %228 = arith.addf %226, %227 : vector<16x32xf32>
      %c0_85 = arith.constant 0 : index
      %c0_86 = arith.constant 0 : index
      %229 = vector.load %arg29[%c0_85, %c0_86] : memref<16x32xf32, #tpu.memory_space<vmem>>, vector<16x32xf32>
      tpu.vector_store %arg29[%c0_85, %c0_86], %228 {strides = array<i32>} : memref<16x32xf32, #tpu.memory_space<vmem>>, vector<16x32xf32>,
    } else {
    }
    %c0 = arith.constant 0 : index
    %c0_1 = arith.constant 0 : index
    %3 = vector.load %arg29[%c0, %c0_1] : memref<16x32xf32, #tpu.memory_space<vmem>>, vector<16x32xf32>
    %c0_2 = arith.constant 0 : index
    %c0_3 = arith.constant 0 : index
    %c0_4 = arith.constant 0 : index
    %4 = vector.load %arg6[%c0_2, %c0_3, %c0_4] : memref<1x32x96xbf16, #tpu.memory_space<vmem>>, vector<1x32x96xbf16>
    %5 = vector.shape_cast %4 : vector<1x32x96xbf16> to vector<32x96xbf16>
    %c0_5 = arith.constant 0 : index
    %c0_6 = arith.constant 0 : index
    %c0_7 = arith.constant 0 : index
    %6 = vector.load %arg7[%c0_5, %c0_6, %c0_7] : memref<1x1x96xf32, #tpu.memory_space<vmem>>, vector<1x1x96xf32>
    %7 = vector.shape_cast %6 : vector<1x1x96xf32> to vector<1x96xf32>
    %8 = arith.truncf %3 : vector<16x32xf32> to vector<16x32xbf16>
    %cst = arith.constant dense<0.000000e+00> : vector<16x96xf32>
    %9 = tpu.matmul %8, %5, %cst {dimension_numbers = #tpu.dot_dimension_numbers<[1], [0], [0], [1], [0, 0, 1, 1], [], []>} : vector<16x32xbf16>, vector<32x96xbf16>, vector<16x96xf32> -> vector<16x96xf32>
    %10 = vector.broadcast %7 : vector<1x96xf32> to vector<16x96xf32>
    %11 = arith.addf %9, %10 : vector<16x96xf32>
    %c0_8 = arith.constant 0 : index
    %c0_9 = arith.constant 0 : index
    %c0_10 = arith.constant 0 : index
    %c0_11 = arith.constant 0 : index
    %12 = vector.load %arg8[%c0_8, %c0_9, %c0_10, %c0_11] : memref<1x4x8x32xbf16, #tpu.memory_space<vmem>>, vector<1x4x8x32xbf16>
    %13 = vector.shape_cast %12 : vector<1x4x8x32xbf16> to vector<4x8x32xbf16>
    %c0_12 = arith.constant 0 : index
    %c0_13 = arith.constant 0 : index
    %c0_14 = arith.constant 0 : index
    %14 = vector.load %arg2[%c0_12, %c0_13, %c0_14] : memref<2x1x8xf32, #tpu.memory_space<vmem>>, vector<2x1x8xf32>
    %15 = vector.extract_strided_slice %11 {offsets = [0, 0], sizes = [8, 8], strides = [1, 1]} : vector<16x96xf32> to vector<8x8xf32>
    %16 = vector.extract_strided_slice %11 {offsets = [0, 8], sizes = [8, 8], strides = [1, 1]} : vector<16x96xf32> to vector<8x8xf32>
    %17 = vector.extract_strided_slice %11 {offsets = [0, 16], sizes = [8, 8], strides = [1, 1]} : vector<16x96xf32> to vector<8x8xf32>
    %18 = vector.extract_strided_slice %11 {offsets = [0, 24], sizes = [8, 8], strides = [1, 1]} : vector<16x96xf32> to vector<8x8xf32>
    %19 = vector.shape_cast %15 : vector<8x8xf32> to vector<1x8x8xf32>
    %20 = vector.shape_cast %16 : vector<8x8xf32> to vector<1x8x8xf32>
    %21 = vector.shape_cast %17 : vector<8x8xf32> to vector<1x8x8xf32>
    %22 = vector.shape_cast %18 : vector<8x8xf32> to vector<1x8x8xf32>
    %23 = tpu.concatenate %19, %20, %21, %22 in 0 : vector<1x8x8xf32>, vector<1x8x8xf32>, vector<1x8x8xf32>, vector<1x8x8xf32> -> vector<4x8x8xf32>
    %24 = arith.truncf %23 : vector<4x8x8xf32> to vector<4x8x8xbf16>
    %25 = vector.extract_strided_slice %11 {offsets = [0, 32], sizes = [8, 8], strides = [1, 1]} : vector<16x96xf32> to vector<8x8xf32>
    %26 = vector.extract_strided_slice %11 {offsets = [0, 40], sizes = [8, 8], strides = [1, 1]} : vector<16x96xf32> to vector<8x8xf32>
    %27 = vector.extract_strided_slice %11 {offsets = [0, 48], sizes = [8, 8], strides = [1, 1]} : vector<16x96xf32> to vector<8x8xf32>
    %28 = vector.extract_strided_slice %11 {offsets = [0, 56], sizes = [8, 8], strides = [1, 1]} : vector<16x96xf32> to vector<8x8xf32>
    %29 = vector.shape_cast %25 : vector<8x8xf32> to vector<1x8x8xf32>
    %30 = vector.shape_cast %26 : vector<8x8xf32> to vector<1x8x8xf32>
    %31 = vector.shape_cast %27 : vector<8x8xf32> to vector<1x8x8xf32>
    %32 = vector.shape_cast %28 : vector<8x8xf32> to vector<1x8x8xf32>
    %33 = tpu.concatenate %29, %30, %31, %32 in 0 : vector<1x8x8xf32>, vector<1x8x8xf32>, vector<1x8x8xf32>, vector<1x8x8xf32> -> vector<4x8x8xf32>
    %34 = arith.truncf %33 : vector<4x8x8xf32> to vector<4x8x8xbf16>
    %35 = vector.extract_strided_slice %11 {offsets = [0, 64], sizes = [8, 8], strides = [1, 1]} : vector<16x96xf32> to vector<8x8xf32>
    %36 = vector.extract_strided_slice %11 {offsets = [0, 72], sizes = [8, 8], strides = [1, 1]} : vector<16x96xf32> to vector<8x8xf32>
    %37 = vector.extract_strided_slice %11 {offsets = [0, 80], sizes = [8, 8], strides = [1, 1]} : vector<16x96xf32> to vector<8x8xf32>
    %38 = vector.extract_strided_slice %11 {offsets = [0, 88], sizes = [8, 8], strides = [1, 1]} : vector<16x96xf32> to vector<8x8xf32>
    %39 = vector.shape_cast %35 : vector<8x8xf32> to vector<1x8x8xf32>
    %40 = vector.shape_cast %36 : vector<8x8xf32> to vector<1x8x8xf32>
    %41 = vector.shape_cast %37 : vector<8x8xf32> to vector<1x8x8xf32>
    %42 = vector.shape_cast %38 : vector<8x8xf32> to vector<1x8x8xf32>
    %43 = tpu.concatenate %39, %40, %41, %42 in 0 : vector<1x8x8xf32>, vector<1x8x8xf32>, vector<1x8x8xf32>, vector<1x8x8xf32> -> vector<4x8x8xf32>
    %44 = arith.truncf %43 : vector<4x8x8xf32> to vector<4x8x8xbf16>
    "tpu.trace_start"() <{level = 10 : i32, message = "hqd,hkd->hqk"}> : () -> ()
    %cst_15 = arith.constant dense<0.000000e+00> : vector<4x8x8xf32>
    %45 = tpu.matmul %24, %34, %cst_15 {dimension_numbers = #tpu.dot_dimension_numbers<[2], [2], [1], [1], [0, 0, 0, 1, 1, 1], [0], [0]>} : vector<4x8x8xbf16>, vector<4x8x8xbf16>, vector<4x8x8xf32> -> vector<4x8x8xf32>
    "tpu.trace_stop"() : () -> ()
    %cst_16 = arith.constant 0.353553385 : f32
    %46 = vector.broadcast %cst_16 : f32 to vector<4x8x8xf32>
    %47 = arith.mulf %45, %46 : vector<4x8x8xf32>
    %48 = vector.extract_strided_slice %14 {offsets = [0, 0, 0], sizes = [1, 1, 8], strides = [1, 1, 1]} : vector<2x1x8xf32> to vector<1x1x8xf32>
    %49 = vector.broadcast %48 : vector<1x1x8xf32> to vector<4x8x8xf32>
    %50 = arith.addf %47, %49 : vector<4x8x8xf32>
    %cst_17 = arith.constant dense<0xFF800000> : vector<4x8xf32>
    %51 = vector.multi_reduction <maximumf>, %50, %cst_17 [2] : vector<4x8x8xf32> to vector<4x8xf32>
    %52 = vector.shape_cast %51 : vector<4x8xf32> to vector<4x8x1xf32>
    %53 = vector.broadcast %52 : vector<4x8x1xf32> to vector<4x8x8xf32>
    %54 = arith.subf %50, %53 : vector<4x8x8xf32>
    %55 = math.exp %54 : vector<4x8x8xf32>
    %cst_18 = arith.constant dense<0.000000e+00> : vector<4x8xf32>
    %56 = vector.multi_reduction <add>, %55, %cst_18 [2] : vector<4x8x8xf32> to vector<4x8xf32>
    %57 = vector.shape_cast %56 : vector<4x8xf32> to vector<4x8x1xf32>
    %58 = tpu.reciprocal %57 {approx = true} : vector<4x8x1xf32> -> vector<4x8x1xf32>
    %59 = vector.broadcast %58 : vector<4x8x1xf32> to vector<4x8x8xf32>
    %60 = arith.mulf %55, %59 : vector<4x8x8xf32>
    %61 = arith.truncf %60 : vector<4x8x8xf32> to vector<4x8x8xbf16>
    "tpu.trace_start"() <{level = 10 : i32, message = "hqk,hkd->hqd"}> : () -> ()
    %cst_19 = arith.constant dense<0.000000e+00> : vector<4x8x8xf32>
    %62 = tpu.matmul %61, %44, %cst_19 {dimension_numbers = #tpu.dot_dimension_numbers<[2], [1], [1], [2], [0, 0, 0, 1, 1, 2], [0], [0]>} : vector<4x8x8xbf16>, vector<4x8x8xbf16>, vector<4x8x8xf32> -> vector<4x8x8xf32>
    "tpu.trace_stop"() : () -> ()
    %63 = arith.truncf %62 : vector<4x8x8xf32> to vector<4x8x8xbf16>
    "tpu.trace_start"() <{level = 10 : i32, message = "hsd,hdo->hso"}> : () -> ()
    %cst_20 = arith.constant dense<0.000000e+00> : vector<4x8x32xf32>
    %64 = tpu.matmul %63, %13, %cst_20 {dimension_numbers = #tpu.dot_dimension_numbers<[2], [1], [1], [2], [0, 0, 0, 1, 1, 2], [0], [0]>} : vector<4x8x8xbf16>, vector<4x8x32xbf16>, vector<4x8x32xf32> -> vector<4x8x32xf32>
    "tpu.trace_stop"() : () -> ()
    %cst_21 = arith.constant dense<0.000000e+00> : vector<8x32xf32>
    %65 = vector.multi_reduction <add>, %64, %cst_21 [0] : vector<4x8x32xf32> to vector<8x32xf32>
    %66 = vector.extract_strided_slice %11 {offsets = [8, 0], sizes = [8, 8], strides = [1, 1]} : vector<16x96xf32> to vector<8x8xf32>
    %67 = vector.extract_strided_slice %11 {offsets = [8, 8], sizes = [8, 8], strides = [1, 1]} : vector<16x96xf32> to vector<8x8xf32>
    %68 = vector.extract_strided_slice %11 {offsets = [8, 16], sizes = [8, 8], strides = [1, 1]} : vector<16x96xf32> to vector<8x8xf32>
    %69 = vector.extract_strided_slice %11 {offsets = [8, 24], sizes = [8, 8], strides = [1, 1]} : vector<16x96xf32> to vector<8x8xf32>
    %70 = vector.shape_cast %66 : vector<8x8xf32> to vector<1x8x8xf32>
    %71 = vector.shape_cast %67 : vector<8x8xf32> to vector<1x8x8xf32>
    %72 = vector.shape_cast %68 : vector<8x8xf32> to vector<1x8x8xf32>
    %73 = vector.shape_cast %69 : vector<8x8xf32> to vector<1x8x8xf32>
    %74 = tpu.concatenate %70, %71, %72, %73 in 0 : vector<1x8x8xf32>, vector<1x8x8xf32>, vector<1x8x8xf32>, vector<1x8x8xf32> -> vector<4x8x8xf32>
    %75 = arith.truncf %74 : vector<4x8x8xf32> to vector<4x8x8xbf16>
    %76 = vector.extract_strided_slice %11 {offsets = [8, 32], sizes = [8, 8], strides = [1, 1]} : vector<16x96xf32> to vector<8x8xf32>
    %77 = vector.extract_strided_slice %11 {offsets = [8, 40], sizes = [8, 8], strides = [1, 1]} : vector<16x96xf32> to vector<8x8xf32>
    %78 = vector.extract_strided_slice %11 {offsets = [8, 48], sizes = [8, 8], strides = [1, 1]} : vector<16x96xf32> to vector<8x8xf32>
    %79 = vector.extract_strided_slice %11 {offsets = [8, 56], sizes = [8, 8], strides = [1, 1]} : vector<16x96xf32> to vector<8x8xf32>
    %80 = vector.shape_cast %76 : vector<8x8xf32> to vector<1x8x8xf32>
    %81 = vector.shape_cast %77 : vector<8x8xf32> to vector<1x8x8xf32>
    %82 = vector.shape_cast %78 : vector<8x8xf32> to vector<1x8x8xf32>
    %83 = vector.shape_cast %79 : vector<8x8xf32> to vector<1x8x8xf32>
    %84 = tpu.concatenate %80, %81, %82, %83 in 0 : vector<1x8x8xf32>, vector<1x8x8xf32>, vector<1x8x8xf32>, vector<1x8x8xf32> -> vector<4x8x8xf32>
    %85 = arith.truncf %84 : vector<4x8x8xf32> to vector<4x8x8xbf16>
    %86 = vector.extract_strided_slice %11 {offsets = [8, 64], sizes = [8, 8], strides = [1, 1]} : vector<16x96xf32> to vector<8x8xf32>
    %87 = vector.extract_strided_slice %11 {offsets = [8, 72], sizes = [8, 8], strides = [1, 1]} : vector<16x96xf32> to vector<8x8xf32>
    %88 = vector.extract_strided_slice %11 {offsets = [8, 80], sizes = [8, 8], strides = [1, 1]} : vector<16x96xf32> to vector<8x8xf32>
    %89 = vector.extract_strided_slice %11 {offsets = [8, 88], sizes = [8, 8], strides = [1, 1]} : vector<16x96xf32> to vector<8x8xf32>
    %90 = vector.shape_cast %86 : vector<8x8xf32> to vector<1x8x8xf32>
    %91 = vector.shape_cast %87 : vector<8x8xf32> to vector<1x8x8xf32>
    %92 = vector.shape_cast %88 : vector<8x8xf32> to vector<1x8x8xf32>
    %93 = vector.shape_cast %89 : vector<8x8xf32> to vector<1x8x8xf32>
    %94 = tpu.concatenate %90, %91, %92, %93 in 0 : vector<1x8x8xf32>, vector<1x8x8xf32>, vector<1x8x8xf32>, vector<1x8x8xf32> -> vector<4x8x8xf32>
    %95 = arith.truncf %94 : vector<4x8x8xf32> to vector<4x8x8xbf16>
    "tpu.trace_start"() <{level = 10 : i32, message = "hqd,hkd->hqk"}> : () -> ()
    %cst_22 = arith.constant dense<0.000000e+00> : vector<4x8x8xf32>
    %96 = tpu.matmul %75, %85, %cst_22 {dimension_numbers = #tpu.dot_dimension_numbers<[2], [2], [1], [1], [0, 0, 0, 1, 1, 1], [0], [0]>} : vector<4x8x8xbf16>, vector<4x8x8xbf16>, vector<4x8x8xf32> -> vector<4x8x8xf32>
    "tpu.trace_stop"() : () -> ()
    %cst_23 = arith.constant 0.353553385 : f32
    %97 = vector.broadcast %cst_23 : f32 to vector<4x8x8xf32>
    %98 = arith.mulf %96, %97 : vector<4x8x8xf32>
    %99 = vector.extract_strided_slice %14 {offsets = [1, 0, 0], sizes = [1, 1, 8], strides = [1, 1, 1]} : vector<2x1x8xf32> to vector<1x1x8xf32>
    %100 = vector.broadcast %99 : vector<1x1x8xf32> to vector<4x8x8xf32>
    %101 = arith.addf %98, %100 : vector<4x8x8xf32>
    %cst_24 = arith.constant dense<0xFF800000> : vector<4x8xf32>
    %102 = vector.multi_reduction <maximumf>, %101, %cst_24 [2] : vector<4x8x8xf32> to vector<4x8xf32>
    %103 = vector.shape_cast %102 : vector<4x8xf32> to vector<4x8x1xf32>
    %104 = vector.broadcast %103 : vector<4x8x1xf32> to vector<4x8x8xf32>
    %105 = arith.subf %101, %104 : vector<4x8x8xf32>
    %106 = math.exp %105 : vector<4x8x8xf32>
    %cst_25 = arith.constant dense<0.000000e+00> : vector<4x8xf32>
    %107 = vector.multi_reduction <add>, %106, %cst_25 [2] : vector<4x8x8xf32> to vector<4x8xf32>
    %108 = vector.shape_cast %107 : vector<4x8xf32> to vector<4x8x1xf32>
    %109 = tpu.reciprocal %108 {approx = true} : vector<4x8x1xf32> -> vector<4x8x1xf32>
    %110 = vector.broadcast %109 : vector<4x8x1xf32> to vector<4x8x8xf32>
    %111 = arith.mulf %106, %110 : vector<4x8x8xf32>
    %112 = arith.truncf %111 : vector<4x8x8xf32> to vector<4x8x8xbf16>
    "tpu.trace_start"() <{level = 10 : i32, message = "hqk,hkd->hqd"}> : () -> ()
    %cst_26 = arith.constant dense<0.000000e+00> : vector<4x8x8xf32>
    %113 = tpu.matmul %112, %95, %cst_26 {dimension_numbers = #tpu.dot_dimension_numbers<[2], [1], [1], [2], [0, 0, 0, 1, 1, 2], [0], [0]>} : vector<4x8x8xbf16>, vector<4x8x8xbf16>, vector<4x8x8xf32> -> vector<4x8x8xf32>
    "tpu.trace_stop"() : () -> ()
    %114 = arith.truncf %113 : vector<4x8x8xf32> to vector<4x8x8xbf16>
    "tpu.trace_start"() <{level = 10 : i32, message = "hsd,hdo->hso"}> : () -> ()
    %cst_27 = arith.constant dense<0.000000e+00> : vector<4x8x32xf32>
    %115 = tpu.matmul %114, %13, %cst_27 {dimension_numbers = #tpu.dot_dimension_numbers<[2], [1], [1], [2], [0, 0, 0, 1, 1, 2], [0], [0]>} : vector<4x8x8xbf16>, vector<4x8x32xbf16>, vector<4x8x32xf32> -> vector<4x8x32xf32>
    "tpu.trace_stop"() : () -> ()
    %cst_28 = arith.constant dense<0.000000e+00> : vector<8x32xf32>
    %116 = vector.multi_reduction <add>, %115, %cst_28 [0] : vector<4x8x32xf32> to vector<8x32xf32>
    %117 = tpu.concatenate %65, %116 in 0 : vector<8x32xf32>, vector<8x32xf32> -> vector<16x32xf32>
    %c0_29 = arith.constant 0 : index
    %c0_30 = arith.constant 0 : index
    %c0_31 = arith.constant 0 : index
    %118 = vector.load %arg9[%c0_29, %c0_30, %c0_31] : memref<1x1x32xf32, #tpu.memory_space<vmem>>, vector<1x1x32xf32>
    %119 = vector.shape_cast %118 : vector<1x1x32xf32> to vector<1x32xf32>
    %120 = vector.broadcast %119 : vector<1x32xf32> to vector<16x32xf32>
    %121 = arith.addf %117, %120 : vector<16x32xf32>
    %122 = arith.addf %121, %3 : vector<16x32xf32>
    %c0_32 = arith.constant 0 : index
    %c0_33 = arith.constant 0 : index
    %c0_34 = arith.constant 0 : index
    %123 = vector.load %arg10[%c0_32, %c0_33, %c0_34] : memref<1x1x32xf32, #tpu.memory_space<vmem>>, vector<1x1x32xf32>
    %124 = vector.shape_cast %123 : vector<1x1x32xf32> to vector<1x32xf32>
    %c0_35 = arith.constant 0 : index
    %c0_36 = arith.constant 0 : index
    %c0_37 = arith.constant 0 : index
    %125 = vector.load %arg11[%c0_35, %c0_36, %c0_37] : memref<1x1x32xf32, #tpu.memory_space<vmem>>, vector<1x1x32xf32>
    %126 = vector.shape_cast %125 : vector<1x1x32xf32> to vector<1x32xf32>
    %cst_38 = arith.constant dense<0.000000e+00> : vector<16xf32>
    %127 = vector.multi_reduction <add>, %122, %cst_38 [1] : vector<16x32xf32> to vector<16xf32>
    %128 = vector.shape_cast %127 : vector<16xf32> to vector<16x1xf32>
    %cst_39 = arith.constant 3.200000e+01 : f32
    %129 = vector.broadcast %cst_39 : f32 to vector<16x1xf32>
    %130 = arith.divf %128, %129 : vector<16x1xf32>
    %131 = vector.broadcast %130 : vector<16x1xf32> to vector<16x32xf32>
    %132 = arith.subf %122, %131 : vector<16x32xf32>
    %133 = arith.mulf %132, %132 : vector<16x32xf32>
    %cst_40 = arith.constant dense<0.000000e+00> : vector<16xf32>
    %134 = vector.multi_reduction <add>, %133, %cst_40 [1] : vector<16x32xf32> to vector<16xf32>
    %135 = vector.shape_cast %134 : vector<16xf32> to vector<16x1xf32>
    %cst_41 = arith.constant 3.200000e+01 : f32
    %136 = vector.broadcast %cst_41 : f32 to vector<16x1xf32>
    %137 = arith.divf %135, %136 : vector<16x1xf32>
    %138 = vector.broadcast %130 : vector<16x1xf32> to vector<16x32xf32>
    %139 = arith.subf %122, %138 : vector<16x32xf32>
    %cst_42 = arith.constant 9.99999996E-13 : f32
    %140 = vector.broadcast %cst_42 : f32 to vector<16x1xf32>
    %141 = arith.addf %137, %140 : vector<16x1xf32>
    %142 = math.rsqrt %141 : vector<16x1xf32>
    %143 = vector.broadcast %142 : vector<16x1xf32> to vector<16x32xf32>
    %144 = arith.mulf %139, %143 : vector<16x32xf32>
    %145 = vector.broadcast %124 : vector<1x32xf32> to vector<16x32xf32>
    %146 = arith.mulf %144, %145 : vector<16x32xf32>
    %147 = vector.broadcast %126 : vector<1x32xf32> to vector<16x32xf32>
    %148 = arith.addf %146, %147 : vector<16x32xf32>
    %c0_43 = arith.constant 0 : index
    %c0_44 = arith.constant 0 : index
    %c0_45 = arith.constant 0 : index
    %149 = vector.load %arg12[%c0_43, %c0_44, %c0_45] : memref<1x32x64xbf16, #tpu.memory_space<vmem>>, vector<1x32x64xbf16>
    %150 = vector.shape_cast %149 : vector<1x32x64xbf16> to vector<32x64xbf16>
    %c0_46 = arith.constant 0 : index
    %c0_47 = arith.constant 0 : index
    %c0_48 = arith.constant 0 : index
    %151 = vector.load %arg13[%c0_46, %c0_47, %c0_48] : memref<1x1x64xf32, #tpu.memory_space<vmem>>, vector<1x1x64xf32>
    %152 = vector.shape_cast %151 : vector<1x1x64xf32> to vector<1x64xf32>
    %153 = arith.truncf %148 : vector<16x32xf32> to vector<16x32xbf16>
    %cst_49 = arith.constant dense<0.000000e+00> : vector<16x64xf32>
    %154 = tpu.matmul %153, %150, %cst_49 {dimension_numbers = #tpu.dot_dimension_numbers<[1], [0], [0], [1], [0, 0, 1, 1], [], []>} : vector<16x32xbf16>, vector<32x64xbf16>, vector<16x64xf32> -> vector<16x64xf32>
    %155 = vector.broadcast %152 : vector<1x64xf32> to vector<16x64xf32>
    %156 = arith.addf %154, %155 : vector<16x64xf32>
    %cst_50 = arith.constant 5.000000e-01 : f32
    %157 = vector.broadcast %cst_50 : f32 to vector<16x64xf32>
    %158 = arith.mulf %157, %156 : vector<16x64xf32>
    %cst_51 = arith.constant 0.707106769 : f32
    %159 = vector.broadcast %cst_51 : f32 to vector<16x64xf32>
    %160 = arith.mulf %156, %159 : vector<16x64xf32>
    %161 = math.erf %160 : vector<16x64xf32>
    %cst_52 = arith.constant 1.000000e+00 : f32
    %162 = vector.broadcast %cst_52 : f32 to vector<16x64xf32>
    %163 = arith.addf %162, %161 : vector<16x64xf32>
    %164 = arith.mulf %158, %163 : vector<16x64xf32>
    %c0_53 = arith.constant 0 : index
    %c0_54 = arith.constant 0 : index
    %c0_55 = arith.constant 0 : index
    %165 = vector.load %arg14[%c0_53, %c0_54, %c0_55] : memref<1x64x32xbf16, #tpu.memory_space<vmem>>, vector<1x64x32xbf16>
    %166 = vector.shape_cast %165 : vector<1x64x32xbf16> to vector<64x32xbf16>
    %c0_56 = arith.constant 0 : index
    %c0_57 = arith.constant 0 : index
    %c0_58 = arith.constant 0 : index
    %167 = vector.load %arg15[%c0_56, %c0_57, %c0_58] : memref<1x1x32xf32, #tpu.memory_space<vmem>>, vector<1x1x32xf32>
    %168 = vector.shape_cast %167 : vector<1x1x32xf32> to vector<1x32xf32>
    %169 = arith.truncf %164 : vector<16x64xf32> to vector<16x64xbf16>
    %cst_59 = arith.constant dense<0.000000e+00> : vector<16x32xf32>
    %170 = tpu.matmul %169, %166, %cst_59 {dimension_numbers = #tpu.dot_dimension_numbers<[1], [0], [0], [1], [0, 0, 1, 1], [], []>} : vector<16x64xbf16>, vector<64x32xbf16>, vector<16x32xf32> -> vector<16x32xf32>
    %171 = vector.broadcast %168 : vector<1x32xf32> to vector<16x32xf32>
    %172 = arith.addf %170, %171 : vector<16x32xf32>
    %173 = arith.addf %172, %148 : vector<16x32xf32>
    %c0_60 = arith.constant 0 : index
    %c0_61 = arith.constant 0 : index
    %c0_62 = arith.constant 0 : index
    %174 = vector.load %arg16[%c0_60, %c0_61, %c0_62] : memref<1x1x32xf32, #tpu.memory_space<vmem>>, vector<1x1x32xf32>
    %175 = vector.shape_cast %174 : vector<1x1x32xf32> to vector<1x32xf32>
    %c0_63 = arith.constant 0 : index
    %c0_64 = arith.constant 0 : index
    %c0_65 = arith.constant 0 : index
    %176 = vector.load %arg17[%c0_63, %c0_64, %c0_65] : memref<1x1x32xf32, #tpu.memory_space<vmem>>, vector<1x1x32xf32>
    %177 = vector.shape_cast %176 : vector<1x1x32xf32> to vector<1x32xf32>
    %cst_66 = arith.constant dense<0.000000e+00> : vector<16xf32>
    %178 = vector.multi_reduction <add>, %173, %cst_66 [1] : vector<16x32xf32> to vector<16xf32>
    %179 = vector.shape_cast %178 : vector<16xf32> to vector<16x1xf32>
    %cst_67 = arith.constant 3.200000e+01 : f32
    %180 = vector.broadcast %cst_67 : f32 to vector<16x1xf32>
    %181 = arith.divf %179, %180 : vector<16x1xf32>
    %182 = vector.broadcast %181 : vector<16x1xf32> to vector<16x32xf32>
    %183 = arith.subf %173, %182 : vector<16x32xf32>
    %184 = arith.mulf %183, %183 : vector<16x32xf32>
    %cst_68 = arith.constant dense<0.000000e+00> : vector<16xf32>
    %185 = vector.multi_reduction <add>, %184, %cst_68 [1] : vector<16x32xf32> to vector<16xf32>
    %186 = vector.shape_cast %185 : vector<16xf32> to vector<16x1xf32>
    %cst_69 = arith.constant 3.200000e+01 : f32
    %187 = vector.broadcast %cst_69 : f32 to vector<16x1xf32>
    %188 = arith.divf %186, %187 : vector<16x1xf32>
    %189 = vector.broadcast %181 : vector<16x1xf32> to vector<16x32xf32>
    %190 = arith.subf %173, %189 : vector<16x32xf32>
    %cst_70 = arith.constant 9.99999996E-13 : f32
    %191 = vector.broadcast %cst_70 : f32 to vector<16x1xf32>
    %192 = arith.addf %188, %191 : vector<16x1xf32>
    %193 = math.rsqrt %192 : vector<16x1xf32>
    %194 = vector.broadcast %193 : vector<16x1xf32> to vector<16x32xf32>
    %195 = arith.mulf %190, %194 : vector<16x32xf32>
    %196 = vector.broadcast %175 : vector<1x32xf32> to vector<16x32xf32>
    %197 = arith.mulf %195, %196 : vector<16x32xf32>
    %198 = vector.broadcast %177 : vector<1x32xf32> to vector<16x32xf32>
    %199 = arith.addf %197, %198 : vector<16x32xf32>
    %c0_71 = arith.constant 0 : index
    %c0_72 = arith.constant 0 : index
    %200 = vector.load %arg29[%c0_71, %c0_72] : memref<16x32xf32, #tpu.memory_space<vmem>>, vector<16x32xf32>
    tpu.vector_store %arg29[%c0_71, %c0_72], %199 {strides = array<i32>} : memref<16x32xf32, #tpu.memory_space<vmem>>, vector<16x32xf32>,
    %c1_i32 = arith.constant 1 : i32
    %201 = arith.cmpi eq, %arg0, %c1_i32 : i32
    %202 = arith.extui %201 : i1 to i32
    %c0_i32_73 = arith.constant 0 : i32
    %203 = arith.cmpi ne, %202, %c0_i32_73 : i32
    scf.if %203 {
      %c0_74 = arith.constant 0 : index
      %c0_75 = arith.constant 0 : index
      %204 = vector.load %arg3[%c0_74, %c0_75] : memref<16x1xf32, #tpu.memory_space<vmem>>, vector<16x1xf32>
      %205 = vector.broadcast %204 : vector<16x1xf32> to vector<16x32xf32>
      %206 = arith.mulf %199, %205 : vector<16x32xf32>
      %207 = vector.extract_strided_slice %206 {offsets = [0, 0], sizes = [8, 32], strides = [1, 1]} : vector<16x32xf32> to vector<8x32xf32>
      %cst_76 = arith.constant dense<0.000000e+00> : vector<32xf32>
      %208 = vector.multi_reduction <add>, %207, %cst_76 [0] : vector<8x32xf32> to vector<32xf32>
      %209 = vector.shape_cast %208 : vector<32xf32> to vector<1x32xf32>
      %210 = vector.extract_strided_slice %204 {offsets = [0, 0], sizes = [8, 1], strides = [1, 1]} : vector<16x1xf32> to vector<8x1xf32>
      %cst_77 = arith.constant dense<0.000000e+00> : vector<1xf32>
      %211 = vector.multi_reduction <add>, %210, %cst_77 [0] : vector<8x1xf32> to vector<1xf32>
      %212 = vector.shape_cast %211 : vector<1xf32> to vector<1x1xf32>
      %213 = vector.extract_strided_slice %206 {offsets = [8, 0], sizes = [8, 32], strides = [1, 1]} : vector<16x32xf32> to vector<8x32xf32>
      %cst_78 = arith.constant dense<0.000000e+00> : vector<32xf32>
      %214 = vector.multi_reduction <add>, %213, %cst_78 [0] : vector<8x32xf32> to vector<32xf32>
      %215 = vector.shape_cast %214 : vector<32xf32> to vector<1x32xf32>
      %216 = vector.extract_strided_slice %204 {offsets = [8, 0], sizes = [8, 1], strides = [1, 1]} : vector<16x1xf32> to vector<8x1xf32>
      %cst_79 = arith.constant dense<0.000000e+00> : vector<1xf32>
      %217 = vector.multi_reduction <add>, %216, %cst_79 [0] : vector<8x1xf32> to vector<1xf32>
      %218 = vector.shape_cast %217 : vector<1xf32> to vector<1x1xf32>
      %219 = tpu.concatenate %209, %215 in 0 : vector<1x32xf32>, vector<1x32xf32> -> vector<2x32xf32>
      %220 = tpu.concatenate %212, %218 in 0 : vector<1x1xf32>, vector<1x1xf32> -> vector<2x1xf32>
      %cst_80 = arith.constant 9.99999971E-10 : f32
      %221 = vector.broadcast %cst_80 : f32 to vector<2x1xf32>
      %222 = arith.maximumf %220, %221 : vector<2x1xf32>
      %223 = vector.broadcast %222 : vector<2x1xf32> to vector<2x32xf32>
      %224 = arith.divf %219, %223 : vector<2x32xf32>
      %c0_81 = arith.constant 0 : index
      %c0_82 = arith.constant 0 : index
      %225 = vector.load %arg20[%c0_81, %c0_82] : memref<32x64xbf16, #tpu.memory_space<vmem>>, vector<32x64xbf16>
      %c0_83 = arith.constant 0 : index
      %c0_84 = arith.constant 0 : index
      %226 = vector.load %arg21[%c0_83, %c0_84] : memref<1x64xf32, #tpu.memory_space<vmem>>, vector<1x64xf32>
      %227 = arith.truncf %224 : vector<2x32xf32> to vector<2x32xbf16>
      %cst_85 = arith.constant dense<0.000000e+00> : vector<2x64xf32>
      %228 = tpu.matmul %227, %225, %cst_85 {dimension_numbers = #tpu.dot_dimension_numbers<[1], [0], [0], [1], [0, 0, 1, 1], [], []>} : vector<2x32xbf16>, vector<32x64xbf16>, vector<2x64xf32> -> vector<2x64xf32>
      %229 = vector.broadcast %226 : vector<1x64xf32> to vector<2x64xf32>
      %230 = arith.addf %228, %229 : vector<2x64xf32>
      %cst_86 = arith.constant 0.000000e+00 : f32
      %231 = vector.broadcast %cst_86 : f32 to vector<2x64xf32>
      %232 = arith.maximumf %230, %231 : vector<2x64xf32>
      %c0_87 = arith.constant 0 : index
      %c0_88 = arith.constant 0 : index
      %233 = vector.load %arg22[%c0_87, %c0_88] : memref<1x64xf32, #tpu.memory_space<vmem>>, vector<1x64xf32>
      %c0_89 = arith.constant 0 : index
      %c0_90 = arith.constant 0 : index
      %234 = vector.load %arg23[%c0_89, %c0_90] : memref<1x64xf32, #tpu.memory_space<vmem>>, vector<1x64xf32>
      %cst_91 = arith.constant dense<0.000000e+00> : vector<64xf32>
      %235 = vector.multi_reduction <add>, %232, %cst_91 [0] : vector<2x64xf32> to vector<64xf32>
      %236 = vector.shape_cast %235 : vector<64xf32> to vector<1x64xf32>
      %cst_92 = arith.constant 2.000000e+00 : f32
      %237 = vector.broadcast %cst_92 : f32 to vector<1x64xf32>
      %238 = arith.divf %236, %237 : vector<1x64xf32>
      %239 = vector.broadcast %238 : vector<1x64xf32> to vector<2x64xf32>
      %240 = arith.subf %232, %239 : vector<2x64xf32>
      %241 = arith.mulf %240, %240 : vector<2x64xf32>
      %cst_93 = arith.constant dense<0.000000e+00> : vector<64xf32>
      %242 = vector.multi_reduction <add>, %241, %cst_93 [0] : vector<2x64xf32> to vector<64xf32>
      %243 = vector.shape_cast %242 : vector<64xf32> to vector<1x64xf32>
      %cst_94 = arith.constant 2.000000e+00 : f32
      %244 = vector.broadcast %cst_94 : f32 to vector<1x64xf32>
      %245 = arith.divf %243, %244 : vector<1x64xf32>
      %246 = vector.broadcast %238 : vector<1x64xf32> to vector<2x64xf32>
      %247 = arith.subf %232, %246 : vector<2x64xf32>
      %cst_95 = arith.constant 9.99999974E-6 : f32
      %248 = vector.broadcast %cst_95 : f32 to vector<1x64xf32>
      %249 = arith.addf %245, %248 : vector<1x64xf32>
      %250 = math.rsqrt %249 : vector<1x64xf32>
      %251 = vector.broadcast %250 : vector<1x64xf32> to vector<2x64xf32>
      %252 = arith.mulf %247, %251 : vector<2x64xf32>
      %253 = vector.broadcast %233 : vector<1x64xf32> to vector<2x64xf32>
      %254 = arith.mulf %252, %253 : vector<2x64xf32>
      %255 = vector.broadcast %234 : vector<1x64xf32> to vector<2x64xf32>
      %256 = arith.addf %254, %255 : vector<2x64xf32>
      %c0_96 = arith.constant 0 : index
      %c0_97 = arith.constant 0 : index
      %257 = vector.load %arg24[%c0_96, %c0_97] : memref<64x32xbf16, #tpu.memory_space<vmem>>, vector<64x32xbf16>
      %c0_98 = arith.constant 0 : index
      %c0_99 = arith.constant 0 : index
      %258 = vector.load %arg25[%c0_98, %c0_99] : memref<1x32xf32, #tpu.memory_space<vmem>>, vector<1x32xf32>
      %259 = arith.truncf %256 : vector<2x64xf32> to vector<2x64xbf16>
      %cst_100 = arith.constant dense<0.000000e+00> : vector<2x32xf32>
      %260 = tpu.matmul %259, %257, %cst_100 {dimension_numbers = #tpu.dot_dimension_numbers<[1], [0], [0], [1], [0, 0, 1, 1], [], []>} : vector<2x64xbf16>, vector<64x32xbf16>, vector<2x32xf32> -> vector<2x32xf32>
      %261 = vector.broadcast %258 : vector<1x32xf32> to vector<2x32xf32>
      %262 = arith.addf %260, %261 : vector<2x32xf32>
      %cst_101 = arith.constant 0.000000e+00 : f32
      %263 = vector.broadcast %cst_101 : f32 to vector<2x32xf32>
      %264 = arith.maximumf %262, %263 : vector<2x32xf32>
      %c0_102 = arith.constant 0 : index
      %c0_103 = arith.constant 0 : index
      %265 = vector.load %arg26[%c0_102, %c0_103] : memref<1x32xf32, #tpu.memory_space<vmem>>, vector<1x32xf32>
      %c0_104 = arith.constant 0 : index
      %c0_105 = arith.constant 0 : index
      %266 = vector.load %arg27[%c0_104, %c0_105] : memref<1x32xf32, #tpu.memory_space<vmem>>, vector<1x32xf32>
      %cst_106 = arith.constant dense<0.000000e+00> : vector<32xf32>
      %267 = vector.multi_reduction <add>, %264, %cst_106 [0] : vector<2x32xf32> to vector<32xf32>
      %268 = vector.shape_cast %267 : vector<32xf32> to vector<1x32xf32>
      %cst_107 = arith.constant 2.000000e+00 : f32
      %269 = vector.broadcast %cst_107 : f32 to vector<1x32xf32>
      %270 = arith.divf %268, %269 : vector<1x32xf32>
      %271 = vector.broadcast %270 : vector<1x32xf32> to vector<2x32xf32>
      %272 = arith.subf %264, %271 : vector<2x32xf32>
      %273 = arith.mulf %272, %272 : vector<2x32xf32>
      %cst_108 = arith.constant dense<0.000000e+00> : vector<32xf32>
      %274 = vector.multi_reduction <add>, %273, %cst_108 [0] : vector<2x32xf32> to vector<32xf32>
      %275 = vector.shape_cast %274 : vector<32xf32> to vector<1x32xf32>
      %cst_109 = arith.constant 2.000000e+00 : f32
      %276 = vector.broadcast %cst_109 : f32 to vector<1x32xf32>
      %277 = arith.divf %275, %276 : vector<1x32xf32>
      %278 = vector.broadcast %270 : vector<1x32xf32> to vector<2x32xf32>
      %279 = arith.subf %264, %278 : vector<2x32xf32>
      %cst_110 = arith.constant 9.99999974E-6 : f32
      %280 = vector.broadcast %cst_110 : f32 to vector<1x32xf32>
      %281 = arith.addf %277, %280 : vector<1x32xf32>
      %282 = math.rsqrt %281 : vector<1x32xf32>
      %283 = vector.broadcast %282 : vector<1x32xf32> to vector<2x32xf32>
      %284 = arith.mulf %279, %283 : vector<2x32xf32>
      %285 = vector.broadcast %265 : vector<1x32xf32> to vector<2x32xf32>
      %286 = arith.mulf %284, %285 : vector<2x32xf32>
      %287 = vector.broadcast %266 : vector<1x32xf32> to vector<2x32xf32>
      %288 = arith.addf %286, %287 : vector<2x32xf32>
      %c0_111 = arith.constant 0 : index
      %c0_112 = arith.constant 0 : index
      %289 = vector.load %arg28[%c0_111, %c0_112] : memref<2x32xf32, #tpu.memory_space<vmem>>, vector<2x32xf32>
      tpu.vector_store %arg28[%c0_111, %c0_112], %288 {strides = array<i32>} : memref<2x32xf32, #tpu.memory_space<vmem>>, vector<2x32xf32>,
    } else {
    }
    return
  }
  func.func @transform_0(%arg0: i32) -> (i32, i32) {
    %c0_i32 = arith.constant 0 : i32
    %c0_i32_0 = arith.constant 0 : i32
    %c0_i32_1 = arith.constant 0 : i32
    return %c0_i32, %c0_i32_0 : i32, i32
  }
  func.func @transform_1(%arg0: i32) -> (i32, i32, i32) {
    %c0_i32 = arith.constant 0 : i32
    %c0_i32_0 = arith.constant 0 : i32
    %c0_i32_1 = arith.constant 0 : i32
    %c0_i32_2 = arith.constant 0 : i32
    return %c0_i32, %c0_i32_0, %c0_i32_1 : i32, i32, i32
  }
  func.func @transform_2(%arg0: i32) -> (i32, i32) {
    %c0_i32 = arith.constant 0 : i32
    %c0_i32_0 = arith.constant 0 : i32
    %c0_i32_1 = arith.constant 0 : i32
    return %c0_i32, %c0_i32_0 : i32, i32
  }
  func.func @transform_3(%arg0: i32) -> (i32, i32) {
    %c0_i32 = arith.constant 0 : i32
    %c0_i32_0 = arith.constant 0 : i32
    %c0_i32_1 = arith.constant 0 : i32
    return %c0_i32, %c0_i32_0 : i32, i32
  }
  func.func @transform_4(%arg0: i32) -> (i32, i32) {
    %c0_i32 = arith.constant 0 : i32
    %c0_i32_0 = arith.constant 0 : i32
    %c0_i32_1 = arith.constant 0 : i32
    return %c0_i32, %c0_i32_0 : i32, i32
  }
  func.func @transform_5(%arg0: i32) -> (i32, i32, i32) {
    %c0_i32 = arith.constant 0 : i32
    %c0_i32_0 = arith.constant 0 : i32
    %c0_i32_1 = arith.constant 0 : i32
    return %arg0, %c0_i32, %c0_i32_0 : i32, i32, i32
  }
  func.func @transform_6(%arg0: i32) -> (i32, i32, i32) {
    %c0_i32 = arith.constant 0 : i32
    %c0_i32_0 = arith.constant 0 : i32
    %c0_i32_1 = arith.constant 0 : i32
    return %arg0, %c0_i32, %c0_i32_0 : i32, i32, i32
  }
  func.func @transform_7(%arg0: i32) -> (i32, i32, i32, i32) {
    %c0_i32 = arith.constant 0 : i32
    %c0_i32_0 = arith.constant 0 : i32
    %c0_i32_1 = arith.constant 0 : i32
    %c0_i32_2 = arith.constant 0 : i32
    return %arg0, %c0_i32, %c0_i32_0, %c0_i32_1 : i32, i32, i32, i32
  }
  func.func @transform_8(%arg0: i32) -> (i32, i32, i32) {
    %c0_i32 = arith.constant 0 : i32
    %c0_i32_0 = arith.constant 0 : i32
    %c0_i32_1 = arith.constant 0 : i32
    return %arg0, %c0_i32, %c0_i32_0 : i32, i32, i32
  }
  func.func @transform_9(%arg0: i32) -> (i32, i32, i32) {
    %c0_i32 = arith.constant 0 : i32
    %c0_i32_0 = arith.constant 0 : i32
    %c0_i32_1 = arith.constant 0 : i32
    return %arg0, %c0_i32, %c0_i32_0 : i32, i32, i32
  }
  func.func @transform_10(%arg0: i32) -> (i32, i32, i32) {
    %c0_i32 = arith.constant 0 : i32
    %c0_i32_0 = arith.constant 0 : i32
    %c0_i32_1 = arith.constant 0 : i32
    return %arg0, %c0_i32, %c0_i32_0 : i32, i32, i32
  }
  func.func @transform_11(%arg0: i32) -> (i32, i32, i32) {
    %c0_i32 = arith.constant 0 : i32
    %c0_i32_0 = arith.constant 0 : i32
    %c0_i32_1 = arith.constant 0 : i32
    return %arg0, %c0_i32, %c0_i32_0 : i32, i32, i32
  }
  func.func @transform_12(%arg0: i32) -> (i32, i32, i32) {
    %c0_i32 = arith.constant 0 : i32
    %c0_i32_0 = arith.constant 0 : i32
    %c0_i32_1 = arith.constant 0 : i32
    return %arg0, %c0_i32, %c0_i32_0 : i32, i32, i32
  }
  func.func @transform_13(%arg0: i32) -> (i32, i32, i32) {
    %c0_i32 = arith.constant 0 : i32
    %c0_i32_0 = arith.constant 0 : i32
    %c0_i32_1 = arith.constant 0 : i32
    return %arg0, %c0_i32, %c0_i32_0 : i32, i32, i32
  }
  func.func @transform_14(%arg0: i32) -> (i32, i32, i32) {
    %c0_i32 = arith.constant 0 : i32
    %c0_i32_0 = arith.constant 0 : i32
    %c0_i32_1 = arith.constant 0 : i32
    return %arg0, %c0_i32, %c0_i32_0 : i32, i32, i32
  }
  func.func @transform_15(%arg0: i32) -> (i32, i32, i32) {
    %c0_i32 = arith.constant 0 : i32
    %c0_i32_0 = arith.constant 0 : i32
    %c0_i32_1 = arith.constant 0 : i32
    return %arg0, %c0_i32, %c0_i32_0 : i32, i32, i32
  }
  func.func @transform_16(%arg0: i32) -> (i32, i32, i32) {
    %c0_i32 = arith.constant 0 : i32
    %c0_i32_0 = arith.constant 0 : i32
    %c0_i32_1 = arith.constant 0 : i32
    return %arg0, %c0_i32, %c0_i32_0 : i32, i32, i32
  }
  func.func @transform_17(%arg0: i32) -> (i32, i32) {
    %c0_i32 = arith.constant 0 : i32
    %c0_i32_0 = arith.constant 0 : i32
    %c0_i32_1 = arith.constant 0 : i32
    return %c0_i32, %c0_i32_0 : i32, i32
  }
  func.func @transform_18(%arg0: i32) -> (i32, i32) {
    %c0_i32 = arith.constant 0 : i32
    %c0_i32_0 = arith.constant 0 : i32
    %c0_i32_1 = arith.constant 0 : i32
    return %c0_i32, %c0_i32_0 : i32, i32
  }
  func.func @transform_19(%arg0: i32) -> (i32, i32) {
    %c0_i32 = arith.constant 0 : i32
    %c0_i32_0 = arith.constant 0 : i32
    %c0_i32_1 = arith.constant 0 : i32
    return %c0_i32, %c0_i32_0 : i32, i32
  }
  func.func @transform_20(%arg0: i32) -> (i32, i32) {
    %c0_i32 = arith.constant 0 : i32
    %c0_i32_0 = arith.constant 0 : i32
    %c0_i32_1 = arith.constant 0 : i32
    return %c0_i32, %c0_i32_0 : i32, i32
  }
  func.func @transform_21(%arg0: i32) -> (i32, i32) {
    %c0_i32 = arith.constant 0 : i32
    %c0_i32_0 = arith.constant 0 : i32
    %c0_i32_1 = arith.constant 0 : i32
    return %c0_i32, %c0_i32_0 : i32, i32
  }
  func.func @transform_22(%arg0: i32) -> (i32, i32) {
    %c0_i32 = arith.constant 0 : i32
    %c0_i32_0 = arith.constant 0 : i32
    %c0_i32_1 = arith.constant 0 : i32
    return %c0_i32, %c0_i32_0 : i32, i32
  }
  func.func @transform_23(%arg0: i32) -> (i32, i32) {
    %c0_i32 = arith.constant 0 : i32
    %c0_i32_0 = arith.constant 0 : i32
    %c0_i32_1 = arith.constant 0 : i32
    return %c0_i32, %c0_i32_0 : i32, i32
  }
  func.func @transform_24(%arg0: i32) -> (i32, i32) {
    %c0_i32 = arith.constant 0 : i32
    %c0_i32_0 = arith.constant 0 : i32
    %c0_i32_1 = arith.constant 0 : i32
    return %c0_i32, %c0_i32_0 : i32, i32
  }
  func.func @transform_25(%arg0: i32) -> (i32, i32) {
    %c0_i32 = arith.constant 0 : i32
    %c0_i32_0 = arith.constant 0 : i32
    %c0_i32_1 = arith.constant 0 : i32
    return %c0_i32, %c0_i32_0 : i32, i32
  }
  func.func @transform_26(%arg0: i32) -> (i32, i32) {
    %c0_i32 = arith.constant 0 : i32
    %c0_i32_0 = arith.constant 0 : i32
    %c0_i32_1 = arith.constant 0 : i32
    return %c0_i32, %c0_i32_0 : i32, i32
  }
  func.func @transform_27(%arg0: i32) -> (i32, i32) {
    %c0_i32 = arith.constant 0 : i32
    %c0_i32_0 = arith.constant 0 : i32
    %c0_i32_1 = arith.constant 0 : i32
    return %c0_i32, %c0_i32_0 : i32, i32
  }
}

</mosaic_0001>

<llo_original>
// kernel: hf_bert_encoder_forward.1
$region0: #{hf_bert_encoder_forward.1}
  #allocation0 [shape = 'u32[]', space=smem, size = 0x4, offset = 0x4, fixed_abs, tag = 'smem constant byte address 0x4 - core index']
  #allocation1 [shape = 'u32[144,128]{1,0:T(1,128)}', space=vmem, size = 0x12000, scoped, tag = 'internal scratch']
  #allocation2 [shape = 'f32[16,32]{1,0:T(8,128)}', space=vmem, size = 0x2000, scoped, tag = 'scratch operand']
  %s0 = inlined_call_operand.vmem [shape: f32[16,32], index: 0, kind: input, shape index: {}]
  %s1 = inlined_call_operand.vmem [shape: f32[2,1,8], index: 1, kind: input, shape index: {}]
  %s2 = inlined_call_operand.vmem [shape: f32[16,1], index: 2, kind: input, shape index: {}]
  %s3 = inlined_call_operand.vmem [shape: f32[1,32], index: 3, kind: input, shape index: {}]
  %s4 = inlined_call_operand.vmem [shape: f32[1,32], index: 4, kind: input, shape index: {}]
  %s5 = inlined_call_operand.vmem [shape: bf16[2,32,96], index: 5, kind: input, shape index: {}]
  %s6 = inlined_call_operand.vmem [shape: f32[2,1,96], index: 6, kind: input, shape index: {}]
  %s7 = inlined_call_operand.vmem [shape: bf16[2,4,8,32], index: 7, kind: input, shape index: {}]
  %s8 = inlined_call_operand.vmem [shape: f32[2,1,32], index: 8, kind: input, shape index: {}]
  %s9 = inlined_call_operand.vmem [shape: f32[2,1,32], index: 9, kind: input, shape index: {}]
  %s10 = inlined_call_operand.vmem [shape: f32[2,1,32], index: 10, kind: input, shape index: {}]
  %s11 = inlined_call_operand.vmem [shape: bf16[2,32,64], index: 11, kind: input, shape index: {}]
  %s12 = inlined_call_operand.vmem [shape: f32[2,1,64], index: 12, kind: input, shape index: {}]
  %s13 = inlined_call_operand.vmem [shape: bf16[2,64,32], index: 13, kind: input, shape index: {}]
  %s14 = inlined_call_operand.vmem [shape: f32[2,1,32], index: 14, kind: input, shape index: {}]
  %s15 = inlined_call_operand.vmem [shape: f32[2,1,32], index: 15, kind: input, shape index: {}]
  %s16 = inlined_call_operand.vmem [shape: f32[2,1,32], index: 16, kind: input, shape index: {}]
  %s17 = inlined_call_operand.vmem [shape: bf16[32,32], index: 17, kind: input, shape index: {}]
  %s18 = inlined_call_operand.vmem [shape: f32[1,32], index: 18, kind: input, shape index: {}]
  %s19 = inlined_call_operand.vmem [shape: bf16[32,64], index: 19, kind: input, shape index: {}]
  %s20 = inlined_call_operand.vmem [shape: f32[1,64], index: 20, kind: input, shape index: {}]
  %s21 = inlined_call_operand.vmem [shape: f32[1,64], index: 21, kind: input, shape index: {}]
  %s22 = inlined_call_operand.vmem [shape: f32[1,64], index: 22, kind: input, shape index: {}]
  %s23 = inlined_call_operand.vmem [shape: bf16[64,32], index: 23, kind: input, shape index: {}]
  %s24 = inlined_call_operand.vmem [shape: f32[1,32], index: 24, kind: input, shape index: {}]
  %s25 = inlined_call_operand.vmem [shape: f32[1,32], index: 25, kind: input, shape index: {}]
  %s26 = inlined_call_operand.vmem [shape: f32[1,32], index: 26, kind: input, shape index: {}]
  %s27 = inlined_call_operand.hbm [shape: f32[2,32], index: 27, kind: output, shape index: {}]
  %s28 = sld [smem:[#allocation0]]
  $region149: #{hf_bert_encoder_forward.1} parent=0
    _
  %s30 = ssub.s32 1, %s28
  %s31 = scalar_select 0, %s30, %s28
  $region1: #{hf_bert_encoder_forward.1} parent=0
    #allocation3 [shape = 'u8[1024]{0}', space=vmem, size = 0x400, scoped, tag = 'output window, operand 0, single buffered']
    #allocation4 [shape = 's32[2]{0}', space=sflag, size = 0x8, scoped, tag = 'scoped memory for hf_bert_encoder_forward.1']
    %32 = vsyncpa [#allocation4], 0
    loop: start=0, step=1, limit=4
    $region2: #{hf_bert_encoder_forward.1} parent=1 // loop_pre_header
      _
    $region3: #{hf_bert_encoder_forward.1} parent=1 // loop_header
      %s34 = sphi 0, %s38
      %p35 = scmp.ge.s32.totalorder %s34, 4
      %s42 = sphi 0, %s42
      %s44 = sphi 0, %s42
      %s45 = sphi 0, %s44
      %s59 = sphi 0, %s45
      %s63 = sphi 0, %s63
      %s65 = sphi 0, %s63
      %s66 = sphi 0, %s65
      %s80 = sphi 0, %s66
      %s84 = sphi 0, %s84
      %s86 = sphi 0, %s84
      %s87 = sphi 0, %s86
      %s101 = sphi 0, %s87
      %s105 = sphi 0, %s105
      %s107 = sphi 0, %s105
      %s108 = sphi 0, %s107
      %s122 = sphi 0, %s108
      %s126 = sphi 0, %s126
      %s128 = sphi 0, %s126
      %s129 = sphi 0, %s128
      %s143 = sphi 0, %s129
      %s149 = sphi 0, %s151
      %s152 = sphi 0, %s149
      %s153 = sphi 0, %s152
      %s169 = sphi 0, %s153
      %s175 = sphi 0, %s177
      %s178 = sphi 0, %s175
      %s179 = sphi 0, %s178
      %s195 = sphi 0, %s179
      %s201 = sphi 0, %s203
      %s204 = sphi 0, %s201
      %s205 = sphi 0, %s204
      %s221 = sphi 0, %s205
      %s227 = sphi 0, %s229
      %s230 = sphi 0, %s227
      %s231 = sphi 0, %s230
      %s247 = sphi 0, %s231
      %s253 = sphi 0, %s255
      %s256 = sphi 0, %s253
      %s257 = sphi 0, %s256
      %s273 = sphi 0, %s257
      %s279 = sphi 0, %s281
      %s282 = sphi 0, %s279
      %s283 = sphi 0, %s282
      %s299 = sphi 0, %s283
      %s305 = sphi 0, %s307
      %s308 = sphi 0, %s305
      %s309 = sphi 0, %s308
      %s325 = sphi 0, %s309
      %s331 = sphi 0, %s333
      %s334 = sphi 0, %s331
      %s335 = sphi 0, %s334
      %s351 = sphi 0, %s335
      %s357 = sphi 0, %s359
      %s360 = sphi 0, %s357
      %s361 = sphi 0, %s360
      %s377 = sphi 0, %s361
      %s383 = sphi 0, %s385
      %s386 = sphi 0, %s383
      %s387 = sphi 0, %s386
      %s403 = sphi 0, %s387
      %s409 = sphi 0, %s411
      %s412 = sphi 0, %s409
      %s413 = sphi 0, %s412
      %s429 = sphi 0, %s413
      %s435 = sphi 0, %s437
      %s438 = sphi 0, %s435
      %s439 = sphi 0, %s438
      %s455 = sphi 0, %s439
      %s459 = sphi 0, %s459
      %s461 = sphi 0, %s459
      %s462 = sphi 0, %s461
      %s476 = sphi 0, %s462
      %s480 = sphi 0, %s480
      %s482 = sphi 0, %s480
      %s483 = sphi 0, %s482
      %s497 = sphi 0, %s483
      %s501 = sphi 0, %s501
      %s503 = sphi 0, %s501
      %s504 = sphi 0, %s503
      %s518 = sphi 0, %s504
      %s522 = sphi 0, %s522
      %s524 = sphi 0, %s522
      %s525 = sphi 0, %s524
      %s539 = sphi 0, %s525
      %s543 = sphi 0, %s543
      %s545 = sphi 0, %s543
      %s546 = sphi 0, %s545
      %s560 = sphi 0, %s546
      %s564 = sphi 0, %s564
      %s566 = sphi 0, %s564
      %s567 = sphi 0, %s566
      %s581 = sphi 0, %s567
      %s585 = sphi 0, %s585
      %s587 = sphi 0, %s585
      %s588 = sphi 0, %s587
      %s602 = sphi 0, %s588
      %s606 = sphi 0, %s606
      %s608 = sphi 0, %s606
      %s609 = sphi 0, %s608
      %s623 = sphi 0, %s609
      %s627 = sphi 0, %s627
      %s629 = sphi 0, %s627
      %s630 = sphi 0, %s629
      %s644 = sphi 0, %s630
      %s648 = sphi 0, %s648
      %s650 = sphi 0, %s648
      %s651 = sphi 0, %s650
      %s665 = sphi 0, %s651
      %s669 = sphi 0, %s669
      %s671 = sphi 0, %s669
      %s672 = sphi 0, %s671
      %s686 = sphi 0, %s672
    $region4: #{hf_bert_encoder_forward.1} parent=1 // loop_header_branch
      %37 = sbr.rel (%p35) target = $region8
    $region5: #{hf_bert_encoder_forward.1} parent=1 // loop_body
      %s39 = ssub.s32 %s34, 1
      %s40 = ssub.s32 %s34, 2
      %s41 = sadd.s32 %s34, 1
      %s43 = sadd.s32 %s42, 1
      %p46 = scmp.eq.s32.totalorder %s34, 1
      %p47 = scmp.ne.s32.totalorder %s42, %s44
      %p48 = scmp.eq.s32.totalorder %s34, 0
      %p49 = por %p47, %p48
      %p50 = scmp.ne.s32.totalorder %s42, %s44
      %p51 = scmp.eq.s32.totalorder %s39, 1
      %p52 = por %p50, %p51
      %p53 = scmp.ne.s32.totalorder %s44, %s45
      %p54 = scmp.eq.s32.totalorder %s39, 0
      %p55 = por %p53, %p54
      %p56 = scmp.ne.s32.totalorder %s44, %s45
      %p57 = scmp.eq.s32.totalorder %s40, 1
      %p58 = por %p56, %p57
      %p60 = scmp.ne.s32.totalorder %s45, %s59
      %p61 = scmp.eq.s32.totalorder %s40, 0
      %p62 = por %p60, %p61
      %s64 = sadd.s32 %s63, 1
      %p67 = scmp.eq.s32.totalorder %s34, 1
      %p68 = scmp.ne.s32.totalorder %s63, %s65
      %p69 = scmp.eq.s32.totalorder %s34, 0
      %p70 = por %p68, %p69
      %p71 = scmp.ne.s32.totalorder %s63, %s65
      %p72 = scmp.eq.s32.totalorder %s39, 1
      %p73 = por %p71, %p72
      %p74 = scmp.ne.s32.totalorder %s65, %s66
      %p75 = scmp.eq.s32.totalorder %s39, 0
      %p76 = por %p74, %p75
      %p77 = scmp.ne.s32.totalorder %s65, %s66
      %p78 = scmp.eq.s32.totalorder %s40, 1
      %p79 = por %p77, %p78
      %p81 = scmp.ne.s32.totalorder %s66, %s80
      %p82 = scmp.eq.s32.totalorder %s40, 0
      %p83 = por %p81, %p82
      %s85 = sadd.s32 %s84, 1
      %p88 = scmp.eq.s32.totalorder %s34, 1
      %p89 = scmp.ne.s32.totalorder %s84, %s86
      %p90 = scmp.eq.s32.totalorder %s34, 0
      %p91 = por %p89, %p90
      %p92 = scmp.ne.s32.totalorder %s84, %s86
      %p93 = scmp.eq.s32.totalorder %s39, 1
      %p94 = por %p92, %p93
      %p95 = scmp.ne.s32.totalorder %s86, %s87
      %p96 = scmp.eq.s32.totalorder %s39, 0
      %p97 = por %p95, %p96
      %p98 = scmp.ne.s32.totalorder %s86, %s87
      %p99 = scmp.eq.s32.totalorder %s40, 1
      %p100 = por %p98, %p99
      %p102 = scmp.ne.s32.totalorder %s87, %s101
      %p103 = scmp.eq.s32.totalorder %s40, 0
      %p104 = por %p102, %p103
      %s106 = sadd.s32 %s105, 1
      %p109 = scmp.eq.s32.totalorder %s34, 1
      %p110 = scmp.ne.s32.totalorder %s105, %s107
      %p111 = scmp.eq.s32.totalorder %s34, 0
      %p112 = por %p110, %p111
      %p113 = scmp.ne.s32.totalorder %s105, %s107
      %p114 = scmp.eq.s32.totalorder %s39, 1
      %p115 = por %p113, %p114
      %p116 = scmp.ne.s32.totalorder %s107, %s108
      %p117 = scmp.eq.s32.totalorder %s39, 0
      %p118 = por %p116, %p117
      %p119 = scmp.ne.s32.totalorder %s107, %s108
      %p120 = scmp.eq.s32.totalorder %s40, 1
      %p121 = por %p119, %p120
      %p123 = scmp.ne.s32.totalorder %s108, %s122
      %p124 = scmp.eq.s32.totalorder %s40, 0
      %p125 = por %p123, %p124
      %s127 = sadd.s32 %s126, 1
      %p130 = scmp.eq.s32.totalorder %s34, 1
      %p131 = scmp.ne.s32.totalorder %s126, %s128
      %p132 = scmp.eq.s32.totalorder %s34, 0
      %p133 = por %p131, %p132
      %p134 = scmp.ne.s32.totalorder %s126, %s128
      %p135 = scmp.eq.s32.totalorder %s39, 1
      %p136 = por %p134, %p135
      %p137 = scmp.ne.s32.totalorder %s128, %s129
      %p138 = scmp.eq.s32.totalorder %s39, 0
      %p139 = por %p137, %p138
      %p140 = scmp.ne.s32.totalorder %s128, %s129
      %p141 = scmp.eq.s32.totalorder %s40, 1
      %p142 = por %p140, %p141
      %p144 = scmp.ne.s32.totalorder %s129, %s143
      %p145 = scmp.eq.s32.totalorder %s40, 0
      %p146 = por %p144, %p145
      %s147 = ssub.s32 %s34, %s41
      %p148 = scmp.eq.s32.totalorder %s147, 0
      %s150 = sadd.s32 %s149, 1
      %s151 = scalar_select %p148, %s149, %s150
      %p154 = pneg %p148
      %p155 = scmp.eq.s32.totalorder %s34, 1
      %p156 = por %p154, %p155
      %p157 = scmp.ne.s32.totalorder %s149, %s152
      %p158 = scmp.eq.s32.totalorder %s34, 0
      %p159 = por %p157, %p158
      %p160 = scmp.ne.s32.totalorder %s149, %s152
      %p161 = scmp.eq.s32.totalorder %s39, 1
      %p162 = por %p160, %p161
      %p163 = scmp.ne.s32.totalorder %s152, %s153
      %p164 = scmp.eq.s32.totalorder %s39, 0
      %p165 = por %p163, %p164
      %p166 = scmp.ne.s32.totalorder %s152, %s153
      %p167 = scmp.eq.s32.totalorder %s40, 1
      %p168 = por %p166, %p167
      %p170 = scmp.ne.s32.totalorder %s153, %s169
      %p171 = scmp.eq.s32.totalorder %s40, 0
      %p172 = por %p170, %p171
      %s173 = ssub.s32 %s34, %s41
      %p174 = scmp.eq.s32.totalorder %s173, 0
      %s176 = sadd.s32 %s175, 1
      %s177 = scalar_select %p174, %s175, %s176
      %p180 = pneg %p174
      %p181 = scmp.eq.s32.totalorder %s34, 1
      %p182 = por %p180, %p181
      %p183 = scmp.ne.s32.totalorder %s175, %s178
      %p184 = scmp.eq.s32.totalorder %s34, 0
      %p185 = por %p183, %p184
      %p186 = scmp.ne.s32.totalorder %s175, %s178
      %p187 = scmp.eq.s32.totalorder %s39, 1
      %p188 = por %p186, %p187
      %p189 = scmp.ne.s32.totalorder %s178, %s179
      %p190 = scmp.eq.s32.totalorder %s39, 0
      %p191 = por %p189, %p190
      %p192 = scmp.ne.s32.totalorder %s178, %s179
      %p193 = scmp.eq.s32.totalorder %s40, 1
      %p194 = por %p192, %p193
      %p196 = scmp.ne.s32.totalorder %s179, %s195
      %p197 = scmp.eq.s32.totalorder %s40, 0
      %p198 = por %p196, %p197
      %s199 = ssub.s32 %s34, %s41
      %p200 = scmp.eq.s32.totalorder %s199, 0
      %s202 = sadd.s32 %s201, 1
      %s203 = scalar_select %p200, %s201, %s202
      %p206 = pneg %p200
      %p207 = scmp.eq.s32.totalorder %s34, 1
      %p208 = por %p206, %p207
      %p209 = scmp.ne.s32.totalorder %s201, %s204
      %p210 = scmp.eq.s32.totalorder %s34, 0
      %p211 = por %p209, %p210
      %p212 = scmp.ne.s32.totalorder %s201, %s204
      %p213 = scmp.eq.s32.totalorder %s39, 1
      %p214 = por %p212, %p213
      %p215 = scmp.ne.s32.totalorder %s204, %s205
      %p216 = scmp.eq.s32.totalorder %s39, 0
      %p217 = por %p215, %p216
      %p218 = scmp.ne.s32.totalorder %s204, %s205
      %p219 = scmp.eq.s32.totalorder %s40, 1
      %p220 = por %p218, %p219
      %p222 = scmp.ne.s32.totalorder %s205, %s221
      %p223 = scmp.eq.s32.totalorder %s40, 0
      %p224 = por %p222, %p223
      %s225 = ssub.s32 %s34, %s41
      %p226 = scmp.eq.s32.totalorder %s225, 0
      %s228 = sadd.s32 %s227, 1
      %s229 = scalar_select %p226, %s227, %s228
      %p232 = pneg %p226
      %p233 = scmp.eq.s32.totalorder %s34, 1
      %p234 = por %p232, %p233
      %p235 = scmp.ne.s32.totalorder %s227, %s230
      %p236 = scmp.eq.s32.totalorder %s34, 0
      %p237 = por %p235, %p236
      %p238 = scmp.ne.s32.totalorder %s227, %s230
      %p239 = scmp.eq.s32.totalorder %s39, 1
      %p240 = por %p238, %p239
      %p241 = scmp.ne.s32.totalorder %s230, %s231
      %p242 = scmp.eq.s32.totalorder %s39, 0
      %p243 = por %p241, %p242
      %p244 = scmp.ne.s32.totalorder %s230, %s231
      %p245 = scmp.eq.s32.totalorder %s40, 1
      %p246 = por %p244, %p245
      %p248 = scmp.ne.s32.totalorder %s231, %s247
      %p249 = scmp.eq.s32.totalorder %s40, 0
      %p250 = por %p248, %p249
      %s251 = ssub.s32 %s34, %s41
      %p252 = scmp.eq.s32.totalorder %s251, 0
      %s254 = sadd.s32 %s253, 1
      %s255 = scalar_select %p252, %s253, %s254
      %p258 = pneg %p252
      %p259 = scmp.eq.s32.totalorder %s34, 1
      %p260 = por %p258, %p259
      %p261 = scmp.ne.s32.totalorder %s253, %s256
      %p262 = scmp.eq.s32.totalorder %s34, 0
      %p263 = por %p261, %p262
      %p264 = scmp.ne.s32.totalorder %s253, %s256
      %p265 = scmp.eq.s32.totalorder %s39, 1
      %p266 = por %p264, %p265
      %p267 = scmp.ne.s32.totalorder %s256, %s257
      %p268 = scmp.eq.s32.totalorder %s39, 0
      %p269 = por %p267, %p268
      %p270 = scmp.ne.s32.totalorder %s256, %s257
      %p271 = scmp.eq.s32.totalorder %s40, 1
      %p272 = por %p270, %p271
      %p274 = scmp.ne.s32.totalorder %s257, %s273
      %p275 = scmp.eq.s32.totalorder %s40, 0
      %p276 = por %p274, %p275
      %s277 = ssub.s32 %s34, %s41
      %p278 = scmp.eq.s32.totalorder %s277, 0
      %s280 = sadd.s32 %s279, 1
      %s281 = scalar_select %p278, %s279, %s280
      %p284 = pneg %p278
      %p285 = scmp.eq.s32.totalorder %s34, 1
      %p286 = por %p284, %p285
      %p287 = scmp.ne.s32.totalorder %s279, %s282
      %p288 = scmp.eq.s32.totalorder %s34, 0
      %p289 = por %p287, %p288
      %p290 = scmp.ne.s32.totalorder %s279, %s282
      %p291 = scmp.eq.s32.totalorder %s39, 1
      %p292 = por %p290, %p291
      %p293 = scmp.ne.s32.totalorder %s282, %s283
      %p294 = scmp.eq.s32.totalorder %s39, 0
      %p295 = por %p293, %p294
      %p296 = scmp.ne.s32.totalorder %s282, %s283
      %p297 = scmp.eq.s32.totalorder %s40, 1
      %p298 = por %p296, %p297
      %p300 = scmp.ne.s32.totalorder %s283, %s299
      %p301 = scmp.eq.s32.totalorder %s40, 0
      %p302 = por %p300, %p301
      %s303 = ssub.s32 %s34, %s41
      %p304 = scmp.eq.s32.totalorder %s303, 0
      %s306 = sadd.s32 %s305, 1
      %s307 = scalar_select %p304, %s305, %s306
      %p310 = pneg %p304
      %p311 = scmp.eq.s32.totalorder %s34, 1
      %p312 = por %p310, %p311
      %p313 = scmp.ne.s32.totalorder %s305, %s308
      %p314 = scmp.eq.s32.totalorder %s34, 0
      %p315 = por %p313, %p314
      %p316 = scmp.ne.s32.totalorder %s305, %s308
      %p317 = scmp.eq.s32.totalorder %s39, 1
      %p318 = por %p316, %p317
      %p319 = scmp.ne.s32.totalorder %s308, %s309
      %p320 = scmp.eq.s32.totalorder %s39, 0
      %p321 = por %p319, %p320
      %p322 = scmp.ne.s32.totalorder %s308, %s309
      %p323 = scmp.eq.s32.totalorder %s40, 1
      %p324 = por %p322, %p323
      %p326 = scmp.ne.s32.totalorder %s309, %s325
      %p327 = scmp.eq.s32.totalorder %s40, 0
      %p328 = por %p326, %p327
      %s329 = ssub.s32 %s34, %s41
      %p330 = scmp.eq.s32.totalorder %s329, 0
      %s332 = sadd.s32 %s331, 1
      %s333 = scalar_select %p330, %s331, %s332
      %p336 = pneg %p330
      %p337 = scmp.eq.s32.totalorder %s34, 1
      %p338 = por %p336, %p337
      %p339 = scmp.ne.s32.totalorder %s331, %s334
      %p340 = scmp.eq.s32.totalorder %s34, 0
      %p341 = por %p339, %p340
      %p342 = scmp.ne.s32.totalorder %s331, %s334
      %p343 = scmp.eq.s32.totalorder %s39, 1
      %p344 = por %p342, %p343
      %p345 = scmp.ne.s32.totalorder %s334, %s335
      %p346 = scmp.eq.s32.totalorder %s39, 0
      %p347 = por %p345, %p346
      %p348 = scmp.ne.s32.totalorder %s334, %s335
      %p349 = scmp.eq.s32.totalorder %s40, 1
      %p350 = por %p348, %p349
      %p352 = scmp.ne.s32.totalorder %s335, %s351
      %p353 = scmp.eq.s32.totalorder %s40, 0
      %p354 = por %p352, %p353
      %s355 = ssub.s32 %s34, %s41
      %p356 = scmp.eq.s32.totalorder %s355, 0
      %s358 = sadd.s32 %s357, 1
      %s359 = scalar_select %p356, %s357, %s358
      %p362 = pneg %p356
      %p363 = scmp.eq.s32.totalorder %s34, 1
      %p364 = por %p362, %p363
      %p365 = scmp.ne.s32.totalorder %s357, %s360
      %p366 = scmp.eq.s32.totalorder %s34, 0
      %p367 = por %p365, %p366
      %p368 = scmp.ne.s32.totalorder %s357, %s360
      %p369 = scmp.eq.s32.totalorder %s39, 1
      %p370 = por %p368, %p369
      %p371 = scmp.ne.s32.totalorder %s360, %s361
      %p372 = scmp.eq.s32.totalorder %s39, 0
      %p373 = por %p371, %p372
      %p374 = scmp.ne.s32.totalorder %s360, %s361
      %p375 = scmp.eq.s32.totalorder %s40, 1
      %p376 = por %p374, %p375
      %p378 = scmp.ne.s32.totalorder %s361, %s377
      %p379 = scmp.eq.s32.totalorder %s40, 0
      %p380 = por %p378, %p379
      %s381 = ssub.s32 %s34, %s41
      %p382 = scmp.eq.s32.totalorder %s381, 0
      %s384 = sadd.s32 %s383, 1
      %s385 = scalar_select %p382, %s383, %s384
      %p388 = pneg %p382
      %p389 = scmp.eq.s32.totalorder %s34, 1
      %p390 = por %p388, %p389
      %p391 = scmp.ne.s32.totalorder %s383, %s386
      %p392 = scmp.eq.s32.totalorder %s34, 0
      %p393 = por %p391, %p392
      %p394 = scmp.ne.s32.totalorder %s383, %s386
      %p395 = scmp.eq.s32.totalorder %s39, 1
      %p396 = por %p394, %p395
      %p397 = scmp.ne.s32.totalorder %s386, %s387
      %p398 = scmp.eq.s32.totalorder %s39, 0
      %p399 = por %p397, %p398
      %p400 = scmp.ne.s32.totalorder %s386, %s387
      %p401 = scmp.eq.s32.totalorder %s40, 1
      %p402 = por %p400, %p401
      %p404 = scmp.ne.s32.totalorder %s387, %s403
      %p405 = scmp.eq.s32.totalorder %s40, 0
      %p406 = por %p404, %p405
      %s407 = ssub.s32 %s34, %s41
      %p408 = scmp.eq.s32.totalorder %s407, 0
      %s410 = sadd.s32 %s409, 1
      %s411 = scalar_select %p408, %s409, %s410
      %p414 = pneg %p408
      %p415 = scmp.eq.s32.totalorder %s34, 1
      %p416 = por %p414, %p415
      %p417 = scmp.ne.s32.totalorder %s409, %s412
      %p418 = scmp.eq.s32.totalorder %s34, 0
      %p419 = por %p417, %p418
      %p420 = scmp.ne.s32.totalorder %s409, %s412
      %p421 = scmp.eq.s32.totalorder %s39, 1
      %p422 = por %p420, %p421
      %p423 = scmp.ne.s32.totalorder %s412, %s413
      %p424 = scmp.eq.s32.totalorder %s39, 0
      %p425 = por %p423, %p424
      %p426 = scmp.ne.s32.totalorder %s412, %s413
      %p427 = scmp.eq.s32.totalorder %s40, 1
      %p428 = por %p426, %p427
      %p430 = scmp.ne.s32.totalorder %s413, %s429
      %p431 = scmp.eq.s32.totalorder %s40, 0
      %p432 = por %p430, %p431
      %s433 = ssub.s32 %s34, %s41
      %p434 = scmp.eq.s32.totalorder %s433, 0
      %s436 = sadd.s32 %s435, 1
      %s437 = scalar_select %p434, %s435, %s436
      %p440 = pneg %p434
      %p441 = scmp.eq.s32.totalorder %s34, 1
      %p442 = por %p440, %p441
      %p443 = scmp.ne.s32.totalorder %s435, %s438
      %p444 = scmp.eq.s32.totalorder %s34, 0
      %p445 = por %p443, %p444
      %p446 = scmp.ne.s32.totalorder %s435, %s438
      %p447 = scmp.eq.s32.totalorder %s39, 1
      %p448 = por %p446, %p447
      %p449 = scmp.ne.s32.totalorder %s438, %s439
      %p450 = scmp.eq.s32.totalorder %s39, 0
      %p451 = por %p449, %p450
      %p452 = scmp.ne.s32.totalorder %s438, %s439
      %p453 = scmp.eq.s32.totalorder %s40, 1
      %p454 = por %p452, %p453
      %p456 = scmp.ne.s32.totalorder %s439, %s455
      %p457 = scmp.eq.s32.totalorder %s40, 0
      %p458 = por %p456, %p457
      %s460 = sadd.s32 %s459, 1
      %p463 = scmp.eq.s32.totalorder %s34, 1
      %p464 = scmp.ne.s32.totalorder %s459, %s461
      %p465 = scmp.eq.s32.totalorder %s34, 0
      %p466 = por %p464, %p465
      %p467 = scmp.ne.s32.totalorder %s459, %s461
      %p468 = scmp.eq.s32.totalorder %s39, 1
      %p469 = por %p467, %p468
      %p470 = scmp.ne.s32.totalorder %s461, %s462
      %p471 = scmp.eq.s32.totalorder %s39, 0
      %p472 = por %p470, %p471
      %p473 = scmp.ne.s32.totalorder %s461, %s462
      %p474 = scmp.eq.s32.totalorder %s40, 1
      %p475 = por %p473, %p474
      %p477 = scmp.ne.s32.totalorder %s462, %s476
      %p478 = scmp.eq.s32.totalorder %s40, 0
      %p479 = por %p477, %p478
      %s481 = sadd.s32 %s480, 1
      %p484 = scmp.eq.s32.totalorder %s34, 1
      %p485 = scmp.ne.s32.totalorder %s480, %s482
      %p486 = scmp.eq.s32.totalorder %s34, 0
      %p487 = por %p485, %p486
      %p488 = scmp.ne.s32.totalorder %s480, %s482
      %p489 = scmp.eq.s32.totalorder %s39, 1
      %p490 = por %p488, %p489
      %p491 = scmp.ne.s32.totalorder %s482, %s483
      %p492 = scmp.eq.s32.totalorder %s39, 0
      %p493 = por %p491, %p492
      %p494 = scmp.ne.s32.totalorder %s482, %s483
      %p495 = scmp.eq.s32.totalorder %s40, 1
      %p496 = por %p494, %p495
      %p498 = scmp.ne.s32.totalorder %s483, %s497
      %p499 = scmp.eq.s32.totalorder %s40, 0
      %p500 = por %p498, %p499
      %s502 = sadd.s32 %s501, 1
      %p505 = scmp.eq.s32.totalorder %s34, 1
      %p506 = scmp.ne.s32.totalorder %s501, %s503
      %p507 = scmp.eq.s32.totalorder %s34, 0
      %p508 = por %p506, %p507
      %p509 = scmp.ne.s32.totalorder %s501, %s503
      %p510 = scmp.eq.s32.totalorder %s39, 1
      %p511 = por %p509, %p510
      %p512 = scmp.ne.s32.totalorder %s503, %s504
      %p513 = scmp.eq.s32.totalorder %s39, 0
      %p514 = por %p512, %p513
      %p515 = scmp.ne.s32.totalorder %s503, %s504
      %p516 = scmp.eq.s32.totalorder %s40, 1
      %p517 = por %p515, %p516
      %p519 = scmp.ne.s32.totalorder %s504, %s518
      %p520 = scmp.eq.s32.totalorder %s40, 0
      %p521 = por %p519, %p520
      %s523 = sadd.s32 %s522, 1
      %p526 = scmp.eq.s32.totalorder %s34, 1
      %p527 = scmp.ne.s32.totalorder %s522, %s524
      %p528 = scmp.eq.s32.totalorder %s34, 0
      %p529 = por %p527, %p528
      %p530 = scmp.ne.s32.totalorder %s522, %s524
      %p531 = scmp.eq.s32.totalorder %s39, 1
      %p532 = por %p530, %p531
      %p533 = scmp.ne.s32.totalorder %s524, %s525
      %p534 = scmp.eq.s32.totalorder %s39, 0
      %p535 = por %p533, %p534
      %p536 = scmp.ne.s32.totalorder %s524, %s525
      %p537 = scmp.eq.s32.totalorder %s40, 1
      %p538 = por %p536, %p537
      %p540 = scmp.ne.s32.totalorder %s525, %s539
      %p541 = scmp.eq.s32.totalorder %s40, 0
      %p542 = por %p540, %p541
      %s544 = sadd.s32 %s543, 1
      %p547 = scmp.eq.s32.totalorder %s34, 1
      %p548 = scmp.ne.s32.totalorder %s543, %s545
      %p549 = scmp.eq.s32.totalorder %s34, 0
      %p550 = por %p548, %p549
      %p551 = scmp.ne.s32.totalorder %s543, %s545
      %p552 = scmp.eq.s32.totalorder %s39, 1
      %p553 = por %p551, %p552
      %p554 = scmp.ne.s32.totalorder %s545, %s546
      %p555 = scmp.eq.s32.totalorder %s39, 0
      %p556 = por %p554, %p555
      %p557 = scmp.ne.s32.totalorder %s545, %s546
      %p558 = scmp.eq.s32.totalorder %s40, 1
      %p559 = por %p557, %p558
      %p561 = scmp.ne.s32.totalorder %s546, %s560
      %p562 = scmp.eq.s32.totalorder %s40, 0
      %p563 = por %p561, %p562
      %s565 = sadd.s32 %s564, 1
      %p568 = scmp.eq.s32.totalorder %s34, 1
      %p569 = scmp.ne.s32.totalorder %s564, %s566
      %p570 = scmp.eq.s32.totalorder %s34, 0
      %p571 = por %p569, %p570
      %p572 = scmp.ne.s32.totalorder %s564, %s566
      %p573 = scmp.eq.s32.totalorder %s39, 1
      %p574 = por %p572, %p573
      %p575 = scmp.ne.s32.totalorder %s566, %s567
      %p576 = scmp.eq.s32.totalorder %s39, 0
      %p577 = por %p575, %p576
      %p578 = scmp.ne.s32.totalorder %s566, %s567
      %p579 = scmp.eq.s32.totalorder %s40, 1
      %p580 = por %p578, %p579
      %p582 = scmp.ne.s32.totalorder %s567, %s581
      %p583 = scmp.eq.s32.totalorder %s40, 0
      %p584 = por %p582, %p583
      %s586 = sadd.s32 %s585, 1
      %p589 = scmp.eq.s32.totalorder %s34, 1
      %p590 = scmp.ne.s32.totalorder %s585, %s587
      %p591 = scmp.eq.s32.totalorder %s34, 0
      %p592 = por %p590, %p591
      %p593 = scmp.ne.s32.totalorder %s585, %s587
      %p594 = scmp.eq.s32.totalorder %s39, 1
      %p595 = por %p593, %p594
      %p596 = scmp.ne.s32.totalorder %s587, %s588
      %p597 = scmp.eq.s32.totalorder %s39, 0
      %p598 = por %p596, %p597
      %p599 = scmp.ne.s32.totalorder %s587, %s588
      %p600 = scmp.eq.s32.totalorder %s40, 1
      %p601 = por %p599, %p600
      %p603 = scmp.ne.s32.totalorder %s588, %s602
      %p604 = scmp.eq.s32.totalorder %s40, 0
      %p605 = por %p603, %p604
      %s607 = sadd.s32 %s606, 1
      %p610 = scmp.eq.s32.totalorder %s34, 1
      %p611 = scmp.ne.s32.totalorder %s606, %s608
      %p612 = scmp.eq.s32.totalorder %s34, 0
      %p613 = por %p611, %p612
      %p614 = scmp.ne.s32.totalorder %s606, %s608
      %p615 = scmp.eq.s32.totalorder %s39, 1
      %p616 = por %p614, %p615
      %p617 = scmp.ne.s32.totalorder %s608, %s609
      %p618 = scmp.eq.s32.totalorder %s39, 0
      %p619 = por %p617, %p618
      %p620 = scmp.ne.s32.totalorder %s608, %s609
      %p621 = scmp.eq.s32.totalorder %s40, 1
      %p622 = por %p620, %p621
      %p624 = scmp.ne.s32.totalorder %s609, %s623
      %p625 = scmp.eq.s32.totalorder %s40, 0
      %p626 = por %p624, %p625
      %s628 = sadd.s32 %s627, 1
      %p631 = scmp.eq.s32.totalorder %s34, 1
      %p632 = scmp.ne.s32.totalorder %s627, %s629
      %p633 = scmp.eq.s32.totalorder %s34, 0
      %p634 = por %p632, %p633
      %p635 = scmp.ne.s32.totalorder %s627, %s629
      %p636 = scmp.eq.s32.totalorder %s39, 1
      %p637 = por %p635, %p636
      %p638 = scmp.ne.s32.totalorder %s629, %s630
      %p639 = scmp.eq.s32.totalorder %s39, 0
      %p640 = por %p638, %p639
      %p641 = scmp.ne.s32.totalorder %s629, %s630
      %p642 = scmp.eq.s32.totalorder %s40, 1
      %p643 = por %p641, %p642
      %p645 = scmp.ne.s32.totalorder %s630, %s644
      %p646 = scmp.eq.s32.totalorder %s40, 0
      %p647 = por %p645, %p646
      %s649 = sadd.s32 %s648, 1
      %p652 = scmp.eq.s32.totalorder %s34, 1
      %p653 = scmp.ne.s32.totalorder %s648, %s650
      %p654 = scmp.eq.s32.totalorder %s34, 0
      %p655 = por %p653, %p654
      %p656 = scmp.ne.s32.totalorder %s648, %s650
      %p657 = scmp.eq.s32.totalorder %s39, 1
      %p658 = por %p656, %p657
      %p659 = scmp.ne.s32.totalorder %s650, %s651
      %p660 = scmp.eq.s32.totalorder %s39, 0
      %p661 = por %p659, %p660
      %p662 = scmp.ne.s32.totalorder %s650, %s651
      %p663 = scmp.eq.s32.totalorder %s40, 1
      %p664 = por %p662, %p663
      %p666 = scmp.ne.s32.totalorder %s651, %s665
      %p667 = scmp.eq.s32.totalorder %s40, 0
      %p668 = por %p666, %p667
      %s670 = sadd.s32 %s669, 1
      %p673 = scmp.eq.s32.totalorder %s34, 1
      %p674 = scmp.ne.s32.totalorder %s669, %s671
      %p675 = scmp.eq.s32.totalorder %s34, 0
      %p676 = por %p674, %p675
      %p677 = scmp.ne.s32.totalorder %s669, %s671
      %p678 = scmp.eq.s32.totalorder %s39, 1
      %p679 = por %p677, %p678
      %p680 = scmp.ne.s32.totalorder %s671, %s672
      %p681 = scmp.eq.s32.totalorder %s39, 0
      %p682 = por %p680, %p681
      %p683 = scmp.ne.s32.totalorder %s671, %s672
      %p684 = scmp.eq.s32.totalorder %s40, 1
      %p685 = por %p683, %p684
      %p687 = scmp.ne.s32.totalorder %s672, %s686
      %p688 = scmp.eq.s32.totalorder %s40, 0
      %p689 = por %p687, %p688
      %p690 = scmp.le.s32.totalorder 1, %s34
      %p691 = scmp.lt.s32.totalorder %s34, 3
      %p692 = pnand %p690, %p691
      %p693 = pneg %p692
      // Predicated region
      $region9: #{hf_bert_encoder_forward.1} parent=5 // pred_check
        _
      $region10: #{hf_bert_encoder_forward.1} parent=5 // pred_check_branch
        %695 = sbr.rel (%p692) target = $region12
      $region11: #{hf_bert_encoder_forward.1} parent=5 // pred_region
        %s696 = ssub.s32 %s34, 1
        // Predicated region
        $region13: #{hf_bert_encoder_forward.1} parent=11 // pred_check
          %p697 = pneg %p55
        $region14: #{hf_bert_encoder_forward.1} parent=11 // pred_check_branch
          %699 = sbr.rel (%p697) target = $region16
        $region15: #{hf_bert_encoder_forward.1} parent=11 // pred_region
          _
        $region16: #{hf_bert_encoder_forward.1} parent=11 // pred_fallthru
          _
        // Predicated region
        $region17: #{hf_bert_encoder_forward.1} parent=11 // pred_check
          %p700 = pneg %p76
        $region18: #{hf_bert_encoder_forward.1} parent=11 // pred_check_branch
          %702 = sbr.rel (%p700) target = $region20
        $region19: #{hf_bert_encoder_forward.1} parent=11 // pred_region
          _
        $region20: #{hf_bert_encoder_forward.1} parent=11 // pred_fallthru
          _
        // Predicated region
        $region21: #{hf_bert_encoder_forward.1} parent=11 // pred_check
          %p703 = pneg %p97
        $region22: #{hf_bert_encoder_forward.1} parent=11 // pred_check_branch
          %705 = sbr.rel (%p703) target = $region24
        $region23: #{hf_bert_encoder_forward.1} parent=11 // pred_region
          _
        $region24: #{hf_bert_encoder_forward.1} parent=11 // pred_fallthru
          _
        // Predicated region
        $region25: #{hf_bert_encoder_forward.1} parent=11 // pred_check
          %p706 = pneg %p118
        $region26: #{hf_bert_encoder_forward.1} parent=11 // pred_check_branch
          %708 = sbr.rel (%p706) target = $region28
        $region27: #{hf_bert_encoder_forward.1} parent=11 // pred_region
          _
        $region28: #{hf_bert_encoder_forward.1} parent=11 // pred_fallthru
          _
        // Predicated region
        $region29: #{hf_bert_encoder_forward.1} parent=11 // pred_check
          %p709 = pneg %p139
        $region30: #{hf_bert_encoder_forward.1} parent=11 // pred_check_branch
          %711 = sbr.rel (%p709) target = $region32
        $region31: #{hf_bert_encoder_forward.1} parent=11 // pred_region
          _
        $region32: #{hf_bert_encoder_forward.1} parent=11 // pred_fallthru
          _
        // Predicated region
        $region33: #{hf_bert_encoder_forward.1} parent=11 // pred_check
          %p712 = pneg %p472
        $region34: #{hf_bert_encoder_forward.1} parent=11 // pred_check_branch
          %714 = sbr.rel (%p712) target = $region36
        $region35: #{hf_bert_encoder_forward.1} parent=11 // pred_region
          _
        $region36: #{hf_bert_encoder_forward.1} parent=11 // pred_fallthru
          _
        // Predicated region
        $region37: #{hf_bert_encoder_forward.1} parent=11 // pred_check
          %p715 = pneg %p493
        $region38: #{hf_bert_encoder_forward.1} parent=11 // pred_check_branch
          %717 = sbr.rel (%p715) target = $region40
        $region39: #{hf_bert_encoder_forward.1} parent=11 // pred_region
          _
        $region40: #{hf_bert_encoder_forward.1} parent=11 // pred_fallthru
          _
        // Predicated region
        $region41: #{hf_bert_encoder_forward.1} parent=11 // pred_check
          %p718 = pneg %p514
        $region42: #{hf_bert_encoder_forward.1} parent=11 // pred_check_branch
          %720 = sbr.rel (%p718) target = $region44
        $region43: #{hf_bert_encoder_forward.1} parent=11 // pred_region
          _
        $region44: #{hf_bert_encoder_forward.1} parent=11 // pred_fallthru
          _
        // Predicated region
        $region45: #{hf_bert_encoder_forward.1} parent=11 // pred_check
          %p721 = pneg %p535
        $region46: #{hf_bert_encoder_forward.1} parent=11 // pred_check_branch
          %723 = sbr.rel (%p721) target = $region48
        $region47: #{hf_bert_encoder_forward.1} parent=11 // pred_region
          _
        $region48: #{hf_bert_encoder_forward.1} parent=11 // pred_fallthru
          _
        // Predicated region
        $region49: #{hf_bert_encoder_forward.1} parent=11 // pred_check
          %p724 = pneg %p556
        $region50: #{hf_bert_encoder_forward.1} parent=11 // pred_check_branch
          %726 = sbr.rel (%p724) target = $region52
        $region51: #{hf_bert_encoder_forward.1} parent=11 // pred_region
          _
        $region52: #{hf_bert_encoder_forward.1} parent=11 // pred_fallthru
          _
        // Predicated region
        $region53: #{hf_bert_encoder_forward.1} parent=11 // pred_check
          %p727 = pneg %p577
        $region54: #{hf_bert_encoder_forward.1} parent=11 // pred_check_branch
          %729 = sbr.rel (%p727) target = $region56
        $region55: #{hf_bert_encoder_forward.1} parent=11 // pred_region
          _
        $region56: #{hf_bert_encoder_forward.1} parent=11 // pred_fallthru
          _
        // Predicated region
        $region57: #{hf_bert_encoder_forward.1} parent=11 // pred_check
          %p730 = pneg %p598
        $region58: #{hf_bert_encoder_forward.1} parent=11 // pred_check_branch
          %732 = sbr.rel (%p730) target = $region60
        $region59: #{hf_bert_encoder_forward.1} parent=11 // pred_region
          _
        $region60: #{hf_bert_encoder_forward.1} parent=11 // pred_fallthru
          _
        // Predicated region
        $region61: #{hf_bert_encoder_forward.1} parent=11 // pred_check
          %p733 = pneg %p619
        $region62: #{hf_bert_encoder_forward.1} parent=11 // pred_check_branch
          %735 = sbr.rel (%p733) target = $region64
        $region63: #{hf_bert_encoder_forward.1} parent=11 // pred_region
          _
        $region64: #{hf_bert_encoder_forward.1} parent=11 // pred_fallthru
          _
        // Predicated region
        $region65: #{hf_bert_encoder_forward.1} parent=11 // pred_check
          %p736 = pneg %p640
        $region66: #{hf_bert_encoder_forward.1} parent=11 // pred_check_branch
          %738 = sbr.rel (%p736) target = $region68
        $region67: #{hf_bert_encoder_forward.1} parent=11 // pred_region
          _
        $region68: #{hf_bert_encoder_forward.1} parent=11 // pred_fallthru
          _
        // Predicated region
        $region69: #{hf_bert_encoder_forward.1} parent=11 // pred_check
          %p739 = pneg %p661
        $region70: #{hf_bert_encoder_forward.1} parent=11 // pred_check_branch
          %741 = sbr.rel (%p739) target = $region72
        $region71: #{hf_bert_encoder_forward.1} parent=11 // pred_region
          _
        $region72: #{hf_bert_encoder_forward.1} parent=11 // pred_fallthru
          _
      $region12: #{hf_bert_encoder_forward.1} parent=5 // pred_fallthru
        _
      %p742 = scmp.lt.s32.totalorder %s34, 2
      // Predicated region
      $region73: #{hf_bert_encoder_forward.1} parent=5 // pred_check
        %p743 = pneg %p742
      $region74: #{hf_bert_encoder_forward.1} parent=5 // pred_check_branch
        %745 = sbr.rel (%p743) target = $region76
      $region75: #{hf_bert_encoder_forward.1} parent=5 // pred_region
        // Predicated region
        $region77: #{hf_bert_encoder_forward.1} parent=75 // pred_check
          %p746 = pneg %p159
        $region78: #{hf_bert_encoder_forward.1} parent=75 // pred_check_branch
          %748 = sbr.rel (%p746) target = $region80
        $region79: #{hf_bert_encoder_forward.1} parent=75 // pred_region
          %p749 = scmp.lt.s32.totalorder %s34, 1
          %s750 = scalar_select %p749, %s34, 1
          %s751 = smul.addr %s750, 4
          %s752 = smul.addr %s751, 4
          %s753 = scalar_lea.vmem %s5, %s752
        $region80: #{hf_bert_encoder_forward.1} parent=75 // pred_fallthru
          _
        // Predicated region
        $region81: #{hf_bert_encoder_forward.1} parent=75 // pred_check
          %p754 = pneg %p185
        $region82: #{hf_bert_encoder_forward.1} parent=75 // pred_check_branch
          %756 = sbr.rel (%p754) target = $region84
        $region83: #{hf_bert_encoder_forward.1} parent=75 // pred_region
          %p757 = scmp.lt.s32.totalorder %s34, 1
          %s758 = scalar_select %p757, %s34, 1
          %s759 = scalar_lea.vmem %s6, %s758
        $region84: #{hf_bert_encoder_forward.1} parent=75 // pred_fallthru
          _
        // Predicated region
        $region85: #{hf_bert_encoder_forward.1} parent=75 // pred_check
          %p760 = pneg %p211
        $region86: #{hf_bert_encoder_forward.1} parent=75 // pred_check_branch
          %762 = sbr.rel (%p760) target = $region88
        $region87: #{hf_bert_encoder_forward.1} parent=75 // pred_region
          %p763 = scmp.lt.s32.totalorder %s34, 1
          %s764 = scalar_select %p763, %s34, 1
          %s765 = smul.addr %s764, 4
          %s766 = smul.addr %s765, 4
          %s767 = scalar_lea.vmem %s7, %s766
        $region88: #{hf_bert_encoder_forward.1} parent=75 // pred_fallthru
          _
        // Predicated region
        $region89: #{hf_bert_encoder_forward.1} parent=75 // pred_check
          %p768 = pneg %p237
        $region90: #{hf_bert_encoder_forward.1} parent=75 // pred_check_branch
          %770 = sbr.rel (%p768) target = $region92
        $region91: #{hf_bert_encoder_forward.1} parent=75 // pred_region
          %p771 = scmp.lt.s32.totalorder %s34, 1
          %s772 = scalar_select %p771, %s34, 1
          %s773 = scalar_lea.vmem %s8, %s772
        $region92: #{hf_bert_encoder_forward.1} parent=75 // pred_fallthru
          _
        // Predicated region
        $region93: #{hf_bert_encoder_forward.1} parent=75 // pred_check
          %p774 = pneg %p263
        $region94: #{hf_bert_encoder_forward.1} parent=75 // pred_check_branch
          %776 = sbr.rel (%p774) target = $region96
        $region95: #{hf_bert_encoder_forward.1} parent=75 // pred_region
          %p777 = scmp.lt.s32.totalorder %s34, 1
          %s778 = scalar_select %p777, %s34, 1
          %s779 = scalar_lea.vmem %s9, %s778
        $region96: #{hf_bert_encoder_forward.1} parent=75 // pred_fallthru
          _
        // Predicated region
        $region97: #{hf_bert_encoder_forward.1} parent=75 // pred_check
          %p780 = pneg %p289
        $region98: #{hf_bert_encoder_forward.1} parent=75 // pred_check_branch
          %782 = sbr.rel (%p780) target = $region100
        $region99: #{hf_bert_encoder_forward.1} parent=75 // pred_region
          %p783 = scmp.lt.s32.totalorder %s34, 1
          %s784 = scalar_select %p783, %s34, 1
          %s785 = scalar_lea.vmem %s10, %s784
        $region100: #{hf_bert_encoder_forward.1} parent=75 // pred_fallthru
          _
        // Predicated region
        $region101: #{hf_bert_encoder_forward.1} parent=75 // pred_check
          %p786 = pneg %p315
        $region102: #{hf_bert_encoder_forward.1} parent=75 // pred_check_branch
          %788 = sbr.rel (%p786) target = $region104
        $region103: #{hf_bert_encoder_forward.1} parent=75 // pred_region
          %p789 = scmp.lt.s32.totalorder %s34, 1
          %s790 = scalar_select %p789, %s34, 1
          %s791 = smul.addr %s790, 4
          %s792 = smul.addr %s791, 4
          %s793 = scalar_lea.vmem %s11, %s792
        $region104: #{hf_bert_encoder_forward.1} parent=75 // pred_fallthru
          _
        // Predicated region
        $region105: #{hf_bert_encoder_forward.1} parent=75 // pred_check
          %p794 = pneg %p341
        $region106: #{hf_bert_encoder_forward.1} parent=75 // pred_check_branch
          %796 = sbr.rel (%p794) target = $region108
        $region107: #{hf_bert_encoder_forward.1} parent=75 // pred_region
          %p797 = scmp.lt.s32.totalorder %s34, 1
          %s798 = scalar_select %p797, %s34, 1
          %s799 = scalar_lea.vmem %s12, %s798
        $region108: #{hf_bert_encoder_forward.1} parent=75 // pred_fallthru
          _
        // Predicated region
        $region109: #{hf_bert_encoder_forward.1} parent=75 // pred_check
          %p800 = pneg %p367
        $region110: #{hf_bert_encoder_forward.1} parent=75 // pred_check_branch
          %802 = sbr.rel (%p800) target = $region112
        $region111: #{hf_bert_encoder_forward.1} parent=75 // pred_region
          %p803 = scmp.lt.s32.totalorder %s34, 1
          %s804 = scalar_select %p803, %s34, 1
          %s805 = smul.addr %s804, 8
          %s806 = smul.addr %s805, 4
          %s807 = scalar_lea.vmem %s13, %s806
        $region112: #{hf_bert_encoder_forward.1} parent=75 // pred_fallthru
          _
        // Predicated region
        $region113: #{hf_bert_encoder_forward.1} parent=75 // pred_check
          %p808 = pneg %p393
        $region114: #{hf_bert_encoder_forward.1} parent=75 // pred_check_branch
          %810 = sbr.rel (%p808) target = $region116
        $region115: #{hf_bert_encoder_forward.1} parent=75 // pred_region
          %p811 = scmp.lt.s32.totalorder %s34, 1
          %s812 = scalar_select %p811, %s34, 1
          %s813 = scalar_lea.vmem %s14, %s812
        $region116: #{hf_bert_encoder_forward.1} parent=75 // pred_fallthru
          _
        // Predicated region
        $region117: #{hf_bert_encoder_forward.1} parent=75 // pred_check
          %p814 = pneg %p419
        $region118: #{hf_bert_encoder_forward.1} parent=75 // pred_check_branch
          %816 = sbr.rel (%p814) target = $region120
        $region119: #{hf_bert_encoder_forward.1} parent=75 // pred_region
          %p817 = scmp.lt.s32.totalorder %s34, 1
          %s818 = scalar_select %p817, %s34, 1
          %s819 = scalar_lea.vmem %s15, %s818
        $region120: #{hf_bert_encoder_forward.1} parent=75 // pred_fallthru
          _
        // Predicated region
        $region121: #{hf_bert_encoder_forward.1} parent=75 // pred_check
          %p820 = pneg %p445
        $region122: #{hf_bert_encoder_forward.1} parent=75 // pred_check_branch
          %822 = sbr.rel (%p820) target = $region124
        $region123: #{hf_bert_encoder_forward.1} parent=75 // pred_region
          %p823 = scmp.lt.s32.totalorder %s34, 1
          %s824 = scalar_select %p823, %s34, 1
          %s825 = scalar_lea.vmem %s16, %s824
        $region124: #{hf_bert_encoder_forward.1} parent=75 // pred_fallthru
          _
      $region76: #{hf_bert_encoder_forward.1} parent=5 // pred_fallthru
        _
      %p826 = scmp.le.s32.totalorder 1, %s34
      %p827 = scmp.lt.s32.totalorder %s34, 3
      %p828 = pnand %p826, %p827
      %p829 = pneg %p828
      // Predicated region
      $region125: #{hf_bert_encoder_forward.1} parent=5 // pred_check
        _
      $region126: #{hf_bert_encoder_forward.1} parent=5 // pred_check_branch
        %831 = sbr.rel (%p828) target = $region128
      $region127: #{hf_bert_encoder_forward.1} parent=5 // pred_region
        %s832 = ssub.s32 %s34, 1
        %p833 = pneg %p55
        %p834 = pneg %p52
        %p835 = pneg %p76
        %p836 = pneg %p73
        %p837 = pneg %p97
        %p838 = pneg %p94
        %p839 = pneg %p118
        %p840 = pneg %p115
        %p841 = pneg %p139
        %p842 = pneg %p136
        %p843 = scmp.lt.s32.totalorder %s39, 1
        %s844 = scalar_select %p843, %s39, 1
        %s845 = smul.addr %s844, 4
        %s846 = smul.addr %s845, 4
        %s847 = scalar_lea.vmem %s5, %s846
        %p848 = pneg %p165
        %p849 = pneg %p162
        %p850 = scmp.lt.s32.totalorder %s39, 1
        %s851 = scalar_select %p850, %s39, 1
        %s852 = scalar_lea.vmem %s6, %s851
        %p853 = pneg %p191
        %p854 = pneg %p188
        %p855 = scmp.lt.s32.totalorder %s39, 1
        %s856 = scalar_select %p855, %s39, 1
        %s857 = smul.addr %s856, 4
        %s858 = smul.addr %s857, 4
        %s859 = scalar_lea.vmem %s7, %s858
        %p860 = pneg %p217
        %p861 = pneg %p214
        %p862 = scmp.lt.s32.totalorder %s39, 1
        %s863 = scalar_select %p862, %s39, 1
        %s864 = scalar_lea.vmem %s8, %s863
        %p865 = pneg %p243
        %p866 = pneg %p240
        %p867 = scmp.lt.s32.totalorder %s39, 1
        %s868 = scalar_select %p867, %s39, 1
        %s869 = scalar_lea.vmem %s9, %s868
        %p870 = pneg %p269
        %p871 = pneg %p266
        %p872 = scmp.lt.s32.totalorder %s39, 1
        %s873 = scalar_select %p872, %s39, 1
        %s874 = scalar_lea.vmem %s10, %s873
        %p875 = pneg %p295
        %p876 = pneg %p292
        %p877 = scmp.lt.s32.totalorder %s39, 1
        %s878 = scalar_select %p877, %s39, 1
        %s879 = smul.addr %s878, 4
        %s880 = smul.addr %s879, 4
        %s881 = scalar_lea.vmem %s11, %s880
        %p882 = pneg %p321
        %p883 = pneg %p318
        %p884 = scmp.lt.s32.totalorder %s39, 1
        %s885 = scalar_select %p884, %s39, 1
        %s886 = scalar_lea.vmem %s12, %s885
        %p887 = pneg %p347
        %p888 = pneg %p344
        %p889 = scmp.lt.s32.totalorder %s39, 1
        %s890 = scalar_select %p889, %s39, 1
        %s891 = smul.addr %s890, 8
        %s892 = smul.addr %s891, 4
        %s893 = scalar_lea.vmem %s13, %s892
        %p894 = pneg %p373
        %p895 = pneg %p370
        %p896 = scmp.lt.s32.totalorder %s39, 1
        %s897 = scalar_select %p896, %s39, 1
        %s898 = scalar_lea.vmem %s14, %s897
        %p899 = pneg %p399
        %p900 = pneg %p396
        %p901 = scmp.lt.s32.totalorder %s39, 1
        %s902 = scalar_select %p901, %s39, 1
        %s903 = scalar_lea.vmem %s15, %s902
        %p904 = pneg %p425
        %p905 = pneg %p422
        %p906 = scmp.lt.s32.totalorder %s39, 1
        %s907 = scalar_select %p906, %s39, 1
        %s908 = scalar_lea.vmem %s16, %s907
        %p909 = pneg %p451
        %p910 = pneg %p448
        %p911 = pneg %p472
        %p912 = pneg %p469
        %p913 = pneg %p493
        %p914 = pneg %p490
        %p915 = pneg %p514
        %p916 = pneg %p511
        %p917 = pneg %p535
        %p918 = pneg %p532
        %p919 = pneg %p556
        %p920 = pneg %p553
        %p921 = pneg %p577
        %p922 = pneg %p574
        %p923 = pneg %p598
        %p924 = pneg %p595
        %p925 = pneg %p619
        %p926 = pneg %p616
        %p927 = pneg %p640
        %p928 = pneg %p637
        %p929 = pneg %p661
        %p930 = pneg %p658
        %p931 = pneg %p682
        %p932 = pneg %p679
        %p933 = scmp.lt.s32.totalorder %s39, 1
        %s934 = scalar_select %p933, %s39, 1
        %s935 = smul.addr %s934, 4
        %s936 = smul.addr %s935, 4
        %s937 = scalar_lea.vmem %s5, %s936
        %p938 = scmp.lt.s32.totalorder %s39, 1
        %s939 = scalar_select %p938, %s39, 1
        %s940 = scalar_lea.vmem %s6, %s939
        %p941 = scmp.lt.s32.totalorder %s39, 1
        %s942 = scalar_select %p941, %s39, 1
        %s943 = smul.addr %s942, 4
        %s944 = smul.addr %s943, 4
        %s945 = scalar_lea.vmem %s7, %s944
        %p946 = scmp.lt.s32.totalorder %s39, 1
        %s947 = scalar_select %p946, %s39, 1
        %s948 = scalar_lea.vmem %s8, %s947
        %p949 = scmp.lt.s32.totalorder %s39, 1
        %s950 = scalar_select %p949, %s39, 1
        %s951 = scalar_lea.vmem %s9, %s950
        %p952 = scmp.lt.s32.totalorder %s39, 1
        %s953 = scalar_select %p952, %s39, 1
        %s954 = scalar_lea.vmem %s10, %s953
        %p955 = scmp.lt.s32.totalorder %s39, 1
        %s956 = scalar_select %p955, %s39, 1
        %s957 = smul.addr %s956, 4
        %s958 = smul.addr %s957, 4
        %s959 = scalar_lea.vmem %s11, %s958
        %p960 = scmp.lt.s32.totalorder %s39, 1
        %s961 = scalar_select %p960, %s39, 1
        %s962 = scalar_lea.vmem %s12, %s961
        %p963 = scmp.lt.s32.totalorder %s39, 1
        %s964 = scalar_select %p963, %s39, 1
        %s965 = smul.addr %s964, 8
        %s966 = smul.addr %s965, 4
        %s967 = scalar_lea.vmem %s13, %s966
        %p968 = scmp.lt.s32.totalorder %s39, 1
        %s969 = scalar_select %p968, %s39, 1
        %s970 = scalar_lea.vmem %s14, %s969
        %p971 = scmp.lt.s32.totalorder %s39, 1
        %s972 = scalar_select %p971, %s39, 1
        %s973 = scalar_lea.vmem %s15, %s972
        %p974 = scmp.lt.s32.totalorder %s39, 1
        %s975 = scalar_select %p974, %s39, 1
        %s976 = scalar_lea.vmem %s16, %s975
        %p978 = scmp.eq.s32.totalorder %s39, 0
        // Predicated region
        $region129: #{hf_bert_encoder_forward.1} parent=127 // pred_check
          %p979 = pneg %p978
        $region130: #{hf_bert_encoder_forward.1} parent=127 // pred_check_branch
          %981 = sbr.rel (%p979) target = $region132
        $region131: #{hf_bert_encoder_forward.1} parent=127 // pred_region
          %v982 = vld [vmem:[%s0] sm:$0xff]
          %v983 = vld [vmem:[%s0 + $0x8] sm:$0xff]
          %v984 = vld [vmem:[%s3] sm:$0x1]
          %v985 = vld [vmem:[%s4] sm:$0x1]
          %vm986 = vcmask 261120
          %v987 = vsel %vm986, %v982, 0.0
          %988 = vadd.xlane.f32.xlu0 %v987
          %v989 = vpop.xlane.xlu0 %988
          %v990 = vsel %vm986, %v983, 0.0
          %991 = vadd.xlane.f32.xlu0 %v990
          %v992 = vpop.xlane.xlu0 %991
          %v993 = vrcp.pop 32.0
          %v994 = vmul.f32 %v989, %v993
          %v995 = vmul.f32 %v992, %v993
          %v996 = vsub.f32 %v982, %v994
          %v997 = vsub.f32 %v983, %v995
          %v998 = vmul.f32 %v996, %v996
          %v999 = vmul.f32 %v997, %v997
          %v1000 = vsel %vm986, %v998, 0.0
          %1001 = vadd.xlane.f32.xlu0 %v1000
          %v1002 = vpop.xlane.xlu0 %1001
          %v1003 = vsel %vm986, %v999, 0.0
          %1004 = vadd.xlane.f32.xlu0 %v1003
          %v1005 = vpop.xlane.xlu0 %1004
          %v1006 = vmul.f32 %v1002, %v993
          %v1007 = vmul.f32 %v1005, %v993
          %v1008 = vadd.f32 %v1006, 1e-12
          %v1009 = vadd.f32 %v1007, 1e-12
          %v1010 = vrsqrt.pop %v1008
          %v1011 = vrsqrt.pop %v1009
          %v1012 = vmul.f32 %v996, %v1010
          %v1013 = vmul.f32 %v997, %v1011
          %v1015 = vlaneseq
          %v1016 = vshrl.u32 %v1015, 7
          %v1017 = vsub.s32 0, %v1016
          %v1018 = vrot.slane %v984, %v1017
          %v1020 = vmul.f32 %v1012, %v1018
          %v1021 = vmul.f32 %v1013, %v1018
          %v1023 = vlaneseq
          %v1024 = vshrl.u32 %v1023, 7
          %v1025 = vsub.s32 0, %v1024
          %v1026 = vrot.slane %v985, %v1025
          %v1028 = vadd.f32 %v1020, %v1026
          %v1029 = vadd.f32 %v1021, %v1026
          %1030 = vst.msk [vmem:[#allocation2] sm:$0xff] %vm986, %v1028
          %1031 = vst.msk [vmem:[#allocation2 + $0x8] sm:$0xff] %vm986, %v1029
        $region132: #{hf_bert_encoder_forward.1} parent=127 // pred_fallthru
          _
        %v1032 = vld [vmem:[#allocation2] sm:$0xff]
        %v1033 = vld [vmem:[#allocation2 + $0x8] sm:$0xff]
        %v1034 = vld [vmem:[%s937] sm:$0xf]
        %v1035 = vld [vmem:[%s937 + $0x4] sm:$0xf]
        %v1036 = vld [vmem:[%s937 + $0x8] sm:$0xf]
        %v1037 = vld [vmem:[%s937 + $0xc] sm:$0xf]
        %v1038 = vld [vmem:[%s940] sm:$0x1]
        %v1039 = vpack.c.bf16 %v1033, %v1032
        %v1041 = vlaneseq
        %v1042 = vshrl.u32 %v1041, 7
        %v1043 = vsub.s32 0, %v1042
        %v1044 = vrot.slane %v1038, %v1043
        %v1050 = vunpack.c.l.b16 %v1034
        %v1051 = vunpack.c.l.b16 %v1035
        %v1052 = vunpack.c.l.b16 %v1036
        %v1053 = vunpack.c.l.b16 %v1037
        %v1054 = vpack.c.b16 %v1051, %v1050
        %v1055 = vpack.c.b16 %v1053, %v1052
        %vm1058 = vcmask 261120
        %v1060 = vsel %vm1058, %v1039, 0
        %1062 = vmatprep.subr.bf16.mxu0 0
        %1063 = vmatpush1.bf16.msra.mxu0 %v1054
        %1064 = vmatprep.subr.bf16.mxu0 0
        %1065 = vmatpush1.bf16.msra.mxu0 %v1055
        %1066 = vmatprep.subr.bf16.mxu0 0
        %1067 = vmatpush1.bf16.msra.mxu0 0
        %1068 = vmatprep.subr.bf16.mxu0 0
        %1069 = vmatpush1.bf16.msra.mxu0 0
        %1070 = vmatprep.subr.bf16.mxu0 0
        %1071 = vmatpush1.bf16.msra.mxu0 0
        %1072 = vmatprep.subr.bf16.mxu0 0
        %1073 = vmatpush1.bf16.msra.mxu0 0
        %1074 = vmatprep.subr.bf16.mxu0 0
        %1075 = vmatpush1.bf16.msra.mxu0 0
        %1076 = vmatprep.subr.bf16.mxu0 0
        %1077 = vmatpush1.bf16.msra.mxu0 0
        %1078 = vmatprep.subr.bf16.mxu0 0
        %1079 = vmatpush1.bf16.msra.mxu0 0
        %1080 = vmatprep.subr.bf16.mxu0 0
        %1081 = vmatpush1.bf16.msra.mxu0 0
        %1082 = vmatprep.subr.bf16.mxu0 0
        %1083 = vmatpush1.bf16.msra.mxu0 0
        %1084 = vmatprep.subr.bf16.mxu0 0
        %1085 = vmatpush1.bf16.msra.mxu0 0
        %1086 = vmatprep.subr.bf16.mxu0 0
        %1087 = vmatpush1.bf16.msra.mxu0 0
        %1088 = vmatprep.subr.bf16.mxu0 0
        %1089 = vmatpush1.bf16.msra.mxu0 0
        %1090 = vmatprep.subr.bf16.mxu0 0
        %1091 = vmatpush1.bf16.msra.mxu0 0
        %1092 = vmatprep.subr.bf16.mxu0 0
        %1093 = vmatpush1.bf16.msra.mxu0 0
        %1094 = vmatprep.mubr.bf16.mxu0 0
        %1095 = vmatmul.mubr.bf16.gmra.mrb[0].mxu0 %v1060
        %v1096 = vpop.f32.mrb[0].mxu0
        %v1097 = vadd.f32 %v1044, %v1096
        %v1098 = vpop.f32.mrb[0].mxu0
        %v1099 = vpop.f32.mrb[0].mxu0
        %v1100 = vadd.f32 %v1044, %v1099
        %v1101 = vpop.f32.mrb[0].mxu0
        %1102 = vdwg.mxu0
        %v1103 = vld [vmem:[%s945] sm:$0xf]
        %v1104 = vld [vmem:[%s945 + $0x4] sm:$0xf]
        %v1105 = vld [vmem:[%s945 + $0x8] sm:$0xf]
        %v1106 = vld [vmem:[%s945 + $0xc] sm:$0xf]
        %v1107 = vld [vmem:[%s1] sm:$0x1]
        %v1108 = vld [vmem:[%s1 + $0x1] sm:$0x1]
        %1110 = vrot.lane.b32.xlu0 %v1097, 120
        %v1111 = vpop.permute.xlu0 %1110
        %1113 = vrot.lane.b32.xlu0 %v1097, 112
        %v1114 = vpop.permute.xlu0 %1113
        %1116 = vrot.lane.b32.xlu0 %v1097, 104
        %v1117 = vpop.permute.xlu0 %1116
        %v1119 = vpack.c.bf16 %v1097, %v1097
        %v1120 = vpack.c.bf16 %v1111, %v1111
        %v1121 = vpack.c.bf16 %v1114, %v1114
        %v1122 = vpack.c.bf16 %v1117, %v1117
        %1124 = vrot.lane.b32.xlu0 %v1119, 96
        %v1125 = vpop.permute.xlu0 %1124
        %vm1126 = vcmask 64512
        %v1128 = vsel %vm1126, %v1119, 0
        %v1131 = vsel %vm1126, %v1125, 0
        %1133 = vmatprep.subr.bf16.mxu0 0
        %1134 = vmatpush1.bf16.xpose.msra.mxu0 %v1131
        %1135 = vmatprep.subr.bf16.mxu0 0
        %1136 = vmatpush1.bf16.xpose.msra.mxu0 0
        %1137 = vmatprep.subr.bf16.mxu0 0
        %1138 = vmatpush1.bf16.xpose.msra.mxu0 0
        %1139 = vmatprep.subr.bf16.mxu0 0
        %1140 = vmatpush1.bf16.xpose.msra.mxu0 0
        %1141 = vmatprep.subr.bf16.mxu0 0
        %1142 = vmatpush1.bf16.xpose.msra.mxu0 0
        %1143 = vmatprep.subr.bf16.mxu0 0
        %1144 = vmatpush1.bf16.xpose.msra.mxu0 0
        %1145 = vmatprep.subr.bf16.mxu0 0
        %1146 = vmatpush1.bf16.xpose.msra.mxu0 0
        %1147 = vmatprep.subr.bf16.mxu0 0
        %1148 = vmatpush1.bf16.xpose.msra.mxu0 0
        %1149 = vmatprep.subr.bf16.mxu0 0
        %1150 = vmatpush1.bf16.xpose.msra.mxu0 0
        %1151 = vmatprep.subr.bf16.mxu0 0
        %1152 = vmatpush1.bf16.xpose.msra.mxu0 0
        %1153 = vmatprep.subr.bf16.mxu0 0
        %1154 = vmatpush1.bf16.xpose.msra.mxu0 0
        %1155 = vmatprep.subr.bf16.mxu0 0
        %1156 = vmatpush1.bf16.xpose.msra.mxu0 0
        %1157 = vmatprep.subr.bf16.mxu0 0
        %1158 = vmatpush1.bf16.xpose.msra.mxu0 0
        %1159 = vmatprep.subr.bf16.mxu0 0
        %1160 = vmatpush1.bf16.xpose.msra.mxu0 0
        %1161 = vmatprep.subr.bf16.mxu0 0
        %1162 = vmatpush1.bf16.xpose.msra.mxu0 0
        %1163 = vmatprep.subr.bf16.mxu0 0
        %1164 = vmatpush1.bf16.xpose.msra.mxu0 0
        %1165 = vmatprep.mubr.bf16.mxu0 0
        %1166 = vmatmul.mubr.bf16.gmra.mrb[0].mxu0 %v1128
        %v1167 = vpop.f32.mrb[0].mxu0
        %v1168 = vadd.f32 0.0, %v1167
        %v1169 = vpop.f32.mrb[0].mxu0
        %v1170 = vpop.f32.mrb[0].mxu0
        %v1171 = vpop.f32.mrb[0].mxu0
        %1172 = vdwg.mxu0
        %1174 = vrot.lane.b32.xlu0 %v1120, 96
        %v1175 = vpop.permute.xlu0 %1174
        %v1177 = vsel %vm1126, %v1120, 0
        %v1180 = vsel %vm1126, %v1175, 0
        %1182 = vmatprep.subr.bf16.mxu0 0
        %1183 = vmatpush1.bf16.xpose.msra.mxu0 %v1180
        %1184 = vmatprep.subr.bf16.mxu0 0
        %1185 = vmatpush1.bf16.xpose.msra.mxu0 0
        %1186 = vmatprep.subr.bf16.mxu0 0
        %1187 = vmatpush1.bf16.xpose.msra.mxu0 0
        %1188 = vmatprep.subr.bf16.mxu0 0
        %1189 = vmatpush1.bf16.xpose.msra.mxu0 0
        %1190 = vmatprep.subr.bf16.mxu0 0
        %1191 = vmatpush1.bf16.xpose.msra.mxu0 0
        %1192 = vmatprep.subr.bf16.mxu0 0
        %1193 = vmatpush1.bf16.xpose.msra.mxu0 0
        %1194 = vmatprep.subr.bf16.mxu0 0
        %1195 = vmatpush1.bf16.xpose.msra.mxu0 0
        %1196 = vmatprep.subr.bf16.mxu0 0
        %1197 = vmatpush1.bf16.xpose.msra.mxu0 0
        %1198 = vmatprep.subr.bf16.mxu0 0
        %1199 = vmatpush1.bf16.xpose.msra.mxu0 0
        %1200 = vmatprep.subr.bf16.mxu0 0
        %1201 = vmatpush1.bf16.xpose.msra.mxu0 0
        %1202 = vmatprep.subr.bf16.mxu0 0
        %1203 = vmatpush1.bf16.xpose.msra.mxu0 0
        %1204 = vmatprep.subr.bf16.mxu0 0
        %1205 = vmatpush1.bf16.xpose.msra.mxu0 0
        %1206 = vmatprep.subr.bf16.mxu0 0
        %1207 = vmatpush1.bf16.xpose.msra.mxu0 0
        %1208 = vmatprep.subr.bf16.mxu0 0
        %1209 = vmatpush1.bf16.xpose.msra.mxu0 0
        %1210 = vmatprep.subr.bf16.mxu0 0
        %1211 = vmatpush1.bf16.xpose.msra.mxu0 0
        %1212 = vmatprep.subr.bf16.mxu0 0
        %1213 = vmatpush1.bf16.xpose.msra.mxu0 0
        %1214 = vmatprep.mubr.bf16.mxu0 0
        %1215 = vmatmul.mubr.bf16.gmra.mrb[0].mxu0 %v1177
        %v1216 = vpop.f32.mrb[0].mxu0
        %v1217 = vadd.f32 0.0, %v1216
        %v1218 = vpop.f32.mrb[0].mxu0
        %v1219 = vpop.f32.mrb[0].mxu0
        %v1220 = vpop.f32.mrb[0].mxu0
        %1221 = vdwg.mxu0
        %1223 = vrot.lane.b32.xlu0 %v1121, 96
        %v1224 = vpop.permute.xlu0 %1223
        %v1226 = vsel %vm1126, %v1121, 0
        %v1229 = vsel %vm1126, %v1224, 0
        %1231 = vmatprep.subr.bf16.mxu0 0
        %1232 = vmatpush1.bf16.xpose.msra.mxu0 %v1229
        %1233 = vmatprep.subr.bf16.mxu0 0
        %1234 = vmatpush1.bf16.xpose.msra.mxu0 0
        %1235 = vmatprep.subr.bf16.mxu0 0
        %1236 = vmatpush1.bf16.xpose.msra.mxu0 0
        %1237 = vmatprep.subr.bf16.mxu0 0
        %1238 = vmatpush1.bf16.xpose.msra.mxu0 0
        %1239 = vmatprep.subr.bf16.mxu0 0
        %1240 = vmatpush1.bf16.xpose.msra.mxu0 0
        %1241 = vmatprep.subr.bf16.mxu0 0
        %1242 = vmatpush1.bf16.xpose.msra.mxu0 0
        %1243 = vmatprep.subr.bf16.mxu0 0
        %1244 = vmatpush1.bf16.xpose.msra.mxu0 0
        %1245 = vmatprep.subr.bf16.mxu0 0
        %1246 = vmatpush1.bf16.xpose.msra.mxu0 0
        %1247 = vmatprep.subr.bf16.mxu0 0
        %1248 = vmatpush1.bf16.xpose.msra.mxu0 0
        %1249 = vmatprep.subr.bf16.mxu0 0
        %1250 = vmatpush1.bf16.xpose.msra.mxu0 0
        %1251 = vmatprep.subr.bf16.mxu0 0
        %1252 = vmatpush1.bf16.xpose.msra.mxu0 0
        %1253 = vmatprep.subr.bf16.mxu0 0
        %1254 = vmatpush1.bf16.xpose.msra.mxu0 0
        %1255 = vmatprep.subr.bf16.mxu0 0
        %1256 = vmatpush1.bf16.xpose.msra.mxu0 0
        %1257 = vmatprep.subr.bf16.mxu0 0
        %1258 = vmatpush1.bf16.xpose.msra.mxu0 0
        %1259 = vmatprep.subr.bf16.mxu0 0
        %1260 = vmatpush1.bf16.xpose.msra.mxu0 0
        %1261 = vmatprep.subr.bf16.mxu0 0
        %1262 = vmatpush1.bf16.xpose.msra.mxu0 0
        %1263 = vmatprep.mubr.bf16.mxu0 0
        %1264 = vmatmul.mubr.bf16.gmra.mrb[0].mxu0 %v1226
        %v1265 = vpop.f32.mrb[0].mxu0
        %v1266 = vadd.f32 0.0, %v1265
        %v1267 = vpop.f32.mrb[0].mxu0
        %v1268 = vpop.f32.mrb[0].mxu0
        %v1269 = vpop.f32.mrb[0].mxu0
        %1270 = vdwg.mxu0
        %1272 = vrot.lane.b32.xlu0 %v1122, 96
        %v1273 = vpop.permute.xlu0 %1272
        %v1275 = vsel %vm1126, %v1122, 0
        %v1278 = vsel %vm1126, %v1273, 0
        %1280 = vmatprep.subr.bf16.mxu0 0
        %1281 = vmatpush1.bf16.xpose.msra.mxu0 %v1278
        %1282 = vmatprep.subr.bf16.mxu0 0
        %1283 = vmatpush1.bf16.xpose.msra.mxu0 0
        %1284 = vmatprep.subr.bf16.mxu0 0
        %1285 = vmatpush1.bf16.xpose.msra.mxu0 0
        %1286 = vmatprep.subr.bf16.mxu0 0
        %1287 = vmatpush1.bf16.xpose.msra.mxu0 0
        %1288 = vmatprep.subr.bf16.mxu0 0
        %1289 = vmatpush1.bf16.xpose.msra.mxu0 0
        %1290 = vmatprep.subr.bf16.mxu0 0
        %1291 = vmatpush1.bf16.xpose.msra.mxu0 0
        %1292 = vmatprep.subr.bf16.mxu0 0
        %1293 = vmatpush1.bf16.xpose.msra.mxu0 0
        %1294 = vmatprep.subr.bf16.mxu0 0
        %1295 = vmatpush1.bf16.xpose.msra.mxu0 0
        %1296 = vmatprep.subr.bf16.mxu0 0
        %1297 = vmatpush1.bf16.xpose.msra.mxu0 0
        %1298 = vmatprep.subr.bf16.mxu0 0
        %1299 = vmatpush1.bf16.xpose.msra.mxu0 0
        %1300 = vmatprep.subr.bf16.mxu0 0
        %1301 = vmatpush1.bf16.xpose.msra.mxu0 0
        %1302 = vmatprep.subr.bf16.mxu0 0
        %1303 = vmatpush1.bf16.xpose.msra.mxu0 0
        %1304 = vmatprep.subr.bf16.mxu0 0
        %1305 = vmatpush1.bf16.xpose.msra.mxu0 0
        %1306 = vmatprep.subr.bf16.mxu0 0
        %1307 = vmatpush1.bf16.xpose.msra.mxu0 0
        %1308 = vmatprep.subr.bf16.mxu0 0
        %1309 = vmatpush1.bf16.xpose.msra.mxu0 0
        %1310 = vmatprep.subr.bf16.mxu0 0
        %1311 = vmatpush1.bf16.xpose.msra.mxu0 0
        %1312 = vmatprep.mubr.bf16.mxu0 0
        %1313 = vmatmul.mubr.bf16.gmra.mrb[0].mxu0 %v1275
        %v1314 = vpop.f32.mrb[0].mxu0
        %v1315 = vadd.f32 0.0, %v1314
        %v1316 = vpop.f32.mrb[0].mxu0
        %v1317 = vpop.f32.mrb[0].mxu0
        %v1318 = vpop.f32.mrb[0].mxu0
        %1319 = vdwg.mxu0
        %v1320 = vmul.f32 %v1168, 0.35355338
        %v1321 = vmul.f32 %v1217, 0.35355338
        %v1322 = vmul.f32 %v1266, 0.35355338
        %v1323 = vmul.f32 %v1315, 0.35355338
        %v1325 = vlaneseq
        %v1326 = vshrl.u32 %v1325, 7
        %v1327 = vsub.s32 0, %v1326
        %v1328 = vrot.slane %v1107, %v1327
        %v1330 = vadd.f32 %v1320, %v1328
        %v1331 = vadd.f32 %v1321, %v1328
        %v1332 = vadd.f32 %v1322, %v1328
        %v1333 = vadd.f32 %v1323, %v1328
        %v1334 = vsel %vm1126, %v1330, -inf
        %1335 = vmax.xlane.f32.xlu0 %v1334
        %v1336 = vpop.xlane.xlu0 %1335
        %v1337 = vsel %vm1126, %v1331, -inf
        %1338 = vmax.xlane.f32.xlu0 %v1337
        %v1339 = vpop.xlane.xlu0 %1338
        %v1340 = vsel %vm1126, %v1332, -inf
        %1341 = vmax.xlane.f32.xlu0 %v1340
        %v1342 = vpop.xlane.xlu0 %1341
        %v1343 = vsel %vm1126, %v1333, -inf
        %1344 = vmax.xlane.f32.xlu0 %v1343
        %v1345 = vpop.xlane.xlu0 %1344
        %v1346 = vsub.f32 %v1330, %v1336
        %v1347 = vsub.f32 %v1331, %v1339
        %v1348 = vsub.f32 %v1332, %v1342
        %v1349 = vsub.f32 %v1333, %v1345
        %v1350 = vmul.f32 %v1346, 1.442695
        %v1351 = vpow.pop %v1350
        %v1352 = vmul.f32 %v1347, 1.442695
        %v1353 = vpow.pop %v1352
        %v1354 = vmul.f32 %v1348, 1.442695
        %v1355 = vpow.pop %v1354
        %v1356 = vmul.f32 %v1349, 1.442695
        %v1357 = vpow.pop %v1356
        %v1358 = vsel %vm1126, %v1351, 0.0
        %1359 = vadd.xlane.f32.xlu0 %v1358
        %v1360 = vpop.xlane.xlu0 %1359
        %v1361 = vsel %vm1126, %v1353, 0.0
        %1362 = vadd.xlane.f32.xlu0 %v1361
        %v1363 = vpop.xlane.xlu0 %1362
        %v1364 = vsel %vm1126, %v1355, 0.0
        %1365 = vadd.xlane.f32.xlu0 %v1364
        %v1366 = vpop.xlane.xlu0 %1365
        %v1367 = vsel %vm1126, %v1357, 0.0
        %1368 = vadd.xlane.f32.xlu0 %v1367
        %v1369 = vpop.xlane.xlu0 %1368
        %v1370 = vrcp.pop %v1360
        %v1371 = vrcp.pop %v1363
        %v1372 = vrcp.pop %v1366
        %v1373 = vrcp.pop %v1369
        %v1374 = vmul.f32 %v1351, %v1370
        %v1375 = vmul.f32 %v1353, %v1371
        %v1376 = vmul.f32 %v1355, %v1372
        %v1377 = vmul.f32 %v1357, %v1373
        %v1378 = vpack.c.bf16 %v1374, %v1374
        %v1379 = vpack.c.bf16 %v1375, %v1375
        %v1380 = vpack.c.bf16 %v1376, %v1376
        %v1381 = vpack.c.bf16 %v1377, %v1377
        %1382 = vrot.lane.b32.xlu0 %v1119, 64
        %v1383 = vpop.permute.xlu0 %1382
        %v1385 = vsel %vm1126, %v1378, 0
        %vm1387 = vcmask 1043456
        %v1389 = vsel %vm1387, %v1383, 0
        %1391 = vmatprep.subr.bf16.mxu0 0
        %1392 = vmatpush1.bf16.msra.mxu0 %v1389
        %1393 = vmatprep.subr.bf16.mxu0 0
        %1394 = vmatpush1.bf16.msra.mxu0 0
        %1395 = vmatprep.subr.bf16.mxu0 0
        %1396 = vmatpush1.bf16.msra.mxu0 0
        %1397 = vmatprep.subr.bf16.mxu0 0
        %1398 = vmatpush1.bf16.msra.mxu0 0
        %1399 = vmatprep.subr.bf16.mxu0 0
        %1400 = vmatpush1.bf16.msra.mxu0 0
        %1401 = vmatprep.subr.bf16.mxu0 0
        %1402 = vmatpush1.bf16.msra.mxu0 0
        %1403 = vmatprep.subr.bf16.mxu0 0
        %1404 = vmatpush1.bf16.msra.mxu0 0
        %1405 = vmatprep.subr.bf16.mxu0 0
        %1406 = vmatpush1.bf16.msra.mxu0 0
        %1407 = vmatprep.subr.bf16.mxu0 0
        %1408 = vmatpush1.bf16.msra.mxu0 0
        %1409 = vmatprep.subr.bf16.mxu0 0
        %1410 = vmatpush1.bf16.msra.mxu0 0
        %1411 = vmatprep.subr.bf16.mxu0 0
        %1412 = vmatpush1.bf16.msra.mxu0 0
        %1413 = vmatprep.subr.bf16.mxu0 0
        %1414 = vmatpush1.bf16.msra.mxu0 0
        %1415 = vmatprep.subr.bf16.mxu0 0
        %1416 = vmatpush1.bf16.msra.mxu0 0
        %1417 = vmatprep.subr.bf16.mxu0 0
        %1418 = vmatpush1.bf16.msra.mxu0 0
        %1419 = vmatprep.subr.bf16.mxu0 0
        %1420 = vmatpush1.bf16.msra.mxu0 0
        %1421 = vmatprep.subr.bf16.mxu0 0
        %1422 = vmatpush1.bf16.msra.mxu0 0
        %1423 = vmatprep.mubr.bf16.mxu0 0
        %1424 = vmatmul.mubr.bf16.gmra.mrb[0].mxu0 %v1385
        %v1425 = vpop.f32.mrb[0].mxu0
        %v1426 = vadd.f32 0.0, %v1425
        %v1427 = vpop.f32.mrb[0].mxu0
        %v1428 = vpop.f32.mrb[0].mxu0
        %v1429 = vpop.f32.mrb[0].mxu0
        %1430 = vdwg.mxu0
        %1431 = vrot.lane.b32.xlu0 %v1120, 64
        %v1432 = vpop.permute.xlu0 %1431
        %v1434 = vsel %vm1126, %v1379, 0
        %v1437 = vsel %vm1387, %v1432, 0
        %1439 = vmatprep.subr.bf16.mxu0 0
        %1440 = vmatpush1.bf16.msra.mxu0 %v1437
        %1441 = vmatprep.subr.bf16.mxu0 0
        %1442 = vmatpush1.bf16.msra.mxu0 0
        %1443 = vmatprep.subr.bf16.mxu0 0
        %1444 = vmatpush1.bf16.msra.mxu0 0
        %1445 = vmatprep.subr.bf16.mxu0 0
        %1446 = vmatpush1.bf16.msra.mxu0 0
        %1447 = vmatprep.subr.bf16.mxu0 0
        %1448 = vmatpush1.bf16.msra.mxu0 0
        %1449 = vmatprep.subr.bf16.mxu0 0
        %1450 = vmatpush1.bf16.msra.mxu0 0
        %1451 = vmatprep.subr.bf16.mxu0 0
        %1452 = vmatpush1.bf16.msra.mxu0 0
        %1453 = vmatprep.subr.bf16.mxu0 0
        %1454 = vmatpush1.bf16.msra.mxu0 0
        %1455 = vmatprep.subr.bf16.mxu0 0
        %1456 = vmatpush1.bf16.msra.mxu0 0
        %1457 = vmatprep.subr.bf16.mxu0 0
        %1458 = vmatpush1.bf16.msra.mxu0 0
        %1459 = vmatprep.subr.bf16.mxu0 0
        %1460 = vmatpush1.bf16.msra.mxu0 0
        %1461 = vmatprep.subr.bf16.mxu0 0
        %1462 = vmatpush1.bf16.msra.mxu0 0
        %1463 = vmatprep.subr.bf16.mxu0 0
        %1464 = vmatpush1.bf16.msra.mxu0 0
        %1465 = vmatprep.subr.bf16.mxu0 0
        %1466 = vmatpush1.bf16.msra.mxu0 0
        %1467 = vmatprep.subr.bf16.mxu0 0
        %1468 = vmatpush1.bf16.msra.mxu0 0
        %1469 = vmatprep.subr.bf16.mxu0 0
        %1470 = vmatpush1.bf16.msra.mxu0 0
        %1471 = vmatprep.mubr.bf16.mxu0 0
        %1472 = vmatmul.mubr.bf16.gmra.mrb[0].mxu0 %v1434
        %v1473 = vpop.f32.mrb[0].mxu0
        %v1474 = vadd.f32 0.0, %v1473
        %v1475 = vpop.f32.mrb[0].mxu0
        %v1476 = vpop.f32.mrb[0].mxu0
        %v1477 = vpop.f32.mrb[0].mxu0
        %1478 = vdwg.mxu0
        %1479 = vrot.lane.b32.xlu0 %v1121, 64
        %v1480 = vpop.permute.xlu0 %1479
        %v1482 = vsel %vm1126, %v1380, 0
        %v1485 = vsel %vm1387, %v1480, 0
        %1487 = vmatprep.subr.bf16.mxu0 0
        %1488 = vmatpush1.bf16.msra.mxu0 %v1485
        %1489 = vmatprep.subr.bf16.mxu0 0
        %1490 = vmatpush1.bf16.msra.mxu0 0
        %1491 = vmatprep.subr.bf16.mxu0 0
        %1492 = vmatpush1.bf16.msra.mxu0 0
        %1493 = vmatprep.subr.bf16.mxu0 0
        %1494 = vmatpush1.bf16.msra.mxu0 0
        %1495 = vmatprep.subr.bf16.mxu0 0
        %1496 = vmatpush1.bf16.msra.mxu0 0
        %1497 = vmatprep.subr.bf16.mxu0 0
        %1498 = vmatpush1.bf16.msra.mxu0 0
        %1499 = vmatprep.subr.bf16.mxu0 0
        %1500 = vmatpush1.bf16.msra.mxu0 0
        %1501 = vmatprep.subr.bf16.mxu0 0
        %1502 = vmatpush1.bf16.msra.mxu0 0
        %1503 = vmatprep.subr.bf16.mxu0 0
        %1504 = vmatpush1.bf16.msra.mxu0 0
        %1505 = vmatprep.subr.bf16.mxu0 0
        %1506 = vmatpush1.bf16.msra.mxu0 0
        %1507 = vmatprep.subr.bf16.mxu0 0
        %1508 = vmatpush1.bf16.msra.mxu0 0
        %1509 = vmatprep.subr.bf16.mxu0 0
        %1510 = vmatpush1.bf16.msra.mxu0 0
        %1511 = vmatprep.subr.bf16.mxu0 0
        %1512 = vmatpush1.bf16.msra.mxu0 0
        %1513 = vmatprep.subr.bf16.mxu0 0
        %1514 = vmatpush1.bf16.msra.mxu0 0
        %1515 = vmatprep.subr.bf16.mxu0 0
        %1516 = vmatpush1.bf16.msra.mxu0 0
        %1517 = vmatprep.subr.bf16.mxu0 0
        %1518 = vmatpush1.bf16.msra.mxu0 0
        %1519 = vmatprep.mubr.bf16.mxu0 0
        %1520 = vmatmul.mubr.bf16.gmra.mrb[0].mxu0 %v1482
        %v1521 = vpop.f32.mrb[0].mxu0
        %v1522 = vadd.f32 0.0, %v1521
        %v1523 = vpop.f32.mrb[0].mxu0
        %v1524 = vpop.f32.mrb[0].mxu0
        %v1525 = vpop.f32.mrb[0].mxu0
        %1526 = vdwg.mxu0
        %1527 = vrot.lane.b32.xlu0 %v1122, 64
        %v1528 = vpop.permute.xlu0 %1527
        %v1530 = vsel %vm1126, %v1381, 0
        %v1533 = vsel %vm1387, %v1528, 0
        %1535 = vmatprep.subr.bf16.mxu0 0
        %1536 = vmatpush1.bf16.msra.mxu0 %v1533
        %1537 = vmatprep.subr.bf16.mxu0 0
        %1538 = vmatpush1.bf16.msra.mxu0 0
        %1539 = vmatprep.subr.bf16.mxu0 0
        %1540 = vmatpush1.bf16.msra.mxu0 0
        %1541 = vmatprep.subr.bf16.mxu0 0
        %1542 = vmatpush1.bf16.msra.mxu0 0
        %1543 = vmatprep.subr.bf16.mxu0 0
        %1544 = vmatpush1.bf16.msra.mxu0 0
        %1545 = vmatprep.subr.bf16.mxu0 0
        %1546 = vmatpush1.bf16.msra.mxu0 0
        %1547 = vmatprep.subr.bf16.mxu0 0
        %1548 = vmatpush1.bf16.msra.mxu0 0
        %1549 = vmatprep.subr.bf16.mxu0 0
        %1550 = vmatpush1.bf16.msra.mxu0 0
        %1551 = vmatprep.subr.bf16.mxu0 0
        %1552 = vmatpush1.bf16.msra.mxu0 0
        %1553 = vmatprep.subr.bf16.mxu0 0
        %1554 = vmatpush1.bf16.msra.mxu0 0
        %1555 = vmatprep.subr.bf16.mxu0 0
        %1556 = vmatpush1.bf16.msra.mxu0 0
        %1557 = vmatprep.subr.bf16.mxu0 0
        %1558 = vmatpush1.bf16.msra.mxu0 0
        %1559 = vmatprep.subr.bf16.mxu0 0
        %1560 = vmatpush1.bf16.msra.mxu0 0
        %1561 = vmatprep.subr.bf16.mxu0 0
        %1562 = vmatpush1.bf16.msra.mxu0 0
        %1563 = vmatprep.subr.bf16.mxu0 0
        %1564 = vmatpush1.bf16.msra.mxu0 0
        %1565 = vmatprep.subr.bf16.mxu0 0
        %1566 = vmatpush1.bf16.msra.mxu0 0
        %1567 = vmatprep.mubr.bf16.mxu0 0
        %1568 = vmatmul.mubr.bf16.gmra.mrb[0].mxu0 %v1530
        %v1569 = vpop.f32.mrb[0].mxu0
        %v1570 = vadd.f32 0.0, %v1569
        %v1571 = vpop.f32.mrb[0].mxu0
        %v1572 = vpop.f32.mrb[0].mxu0
        %v1573 = vpop.f32.mrb[0].mxu0
        %1574 = vdwg.mxu0
        %v1575 = vpack.c.bf16 %v1426, %v1426
        %v1576 = vpack.c.bf16 %v1474, %v1474
        %v1577 = vpack.c.bf16 %v1522, %v1522
        %v1578 = vpack.c.bf16 %v1570, %v1570
        %v1580 = vsel %vm1126, %v1575, 0
        %v1583 = vsel %vm1387, %v1103, 0
        %1585 = vmatprep.subr.bf16.mxu0 0
        %1586 = vmatpush1.bf16.msra.mxu0 %v1583
        %1587 = vmatprep.subr.bf16.mxu0 0
        %1588 = vmatpush1.bf16.msra.mxu0 0
        %1589 = vmatprep.subr.bf16.mxu0 0
        %1590 = vmatpush1.bf16.msra.mxu0 0
        %1591 = vmatprep.subr.bf16.mxu0 0
        %1592 = vmatpush1.bf16.msra.mxu0 0
        %1593 = vmatprep.subr.bf16.mxu0 0
        %1594 = vmatpush1.bf16.msra.mxu0 0
        %1595 = vmatprep.subr.bf16.mxu0 0
        %1596 = vmatpush1.bf16.msra.mxu0 0
        %1597 = vmatprep.subr.bf16.mxu0 0
        %1598 = vmatpush1.bf16.msra.mxu0 0
        %1599 = vmatprep.subr.bf16.mxu0 0
        %1600 = vmatpush1.bf16.msra.mxu0 0
        %1601 = vmatprep.subr.bf16.mxu0 0
        %1602 = vmatpush1.bf16.msra.mxu0 0
        %1603 = vmatprep.subr.bf16.mxu0 0
        %1604 = vmatpush1.bf16.msra.mxu0 0
        %1605 = vmatprep.subr.bf16.mxu0 0
        %1606 = vmatpush1.bf16.msra.mxu0 0
        %1607 = vmatprep.subr.bf16.mxu0 0
        %1608 = vmatpush1.bf16.msra.mxu0 0
        %1609 = vmatprep.subr.bf16.mxu0 0
        %1610 = vmatpush1.bf16.msra.mxu0 0
        %1611 = vmatprep.subr.bf16.mxu0 0
        %1612 = vmatpush1.bf16.msra.mxu0 0
        %1613 = vmatprep.subr.bf16.mxu0 0
        %1614 = vmatpush1.bf16.msra.mxu0 0
        %1615 = vmatprep.subr.bf16.mxu0 0
        %1616 = vmatpush1.bf16.msra.mxu0 0
        %1617 = vmatprep.mubr.bf16.mxu0 0
        %1618 = vmatmul.mubr.bf16.gmra.mrb[0].mxu0 %v1580
        %v1619 = vpop.f32.mrb[0].mxu0
        %v1620 = vadd.f32 0.0, %v1619
        %v1621 = vpop.f32.mrb[0].mxu0
        %v1622 = vpop.f32.mrb[0].mxu0
        %v1623 = vpop.f32.mrb[0].mxu0
        %1624 = vdwg.mxu0
        %v1626 = vsel %vm1126, %v1576, 0
        %v1629 = vsel %vm1387, %v1104, 0
        %1631 = vmatprep.subr.bf16.mxu0 0
        %1632 = vmatpush1.bf16.msra.mxu0 %v1629
        %1633 = vmatprep.subr.bf16.mxu0 0
        %1634 = vmatpush1.bf16.msra.mxu0 0
        %1635 = vmatprep.subr.bf16.mxu0 0
        %1636 = vmatpush1.bf16.msra.mxu0 0
        %1637 = vmatprep.subr.bf16.mxu0 0
        %1638 = vmatpush1.bf16.msra.mxu0 0
        %1639 = vmatprep.subr.bf16.mxu0 0
        %1640 = vmatpush1.bf16.msra.mxu0 0
        %1641 = vmatprep.subr.bf16.mxu0 0
        %1642 = vmatpush1.bf16.msra.mxu0 0
        %1643 = vmatprep.subr.bf16.mxu0 0
        %1644 = vmatpush1.bf16.msra.mxu0 0
        %1645 = vmatprep.subr.bf16.mxu0 0
        %1646 = vmatpush1.bf16.msra.mxu0 0
        %1647 = vmatprep.subr.bf16.mxu0 0
        %1648 = vmatpush1.bf16.msra.mxu0 0
        %1649 = vmatprep.subr.bf16.mxu0 0
        %1650 = vmatpush1.bf16.msra.mxu0 0
        %1651 = vmatprep.subr.bf16.mxu0 0
        %1652 = vmatpush1.bf16.msra.mxu0 0
        %1653 = vmatprep.subr.bf16.mxu0 0
        %1654 = vmatpush1.bf16.msra.mxu0 0
        %1655 = vmatprep.subr.bf16.mxu0 0
        %1656 = vmatpush1.bf16.msra.mxu0 0
        %1657 = vmatprep.subr.bf16.mxu0 0
        %1658 = vmatpush1.bf16.msra.mxu0 0
        %1659 = vmatprep.subr.bf16.mxu0 0
        %1660 = vmatpush1.bf16.msra.mxu0 0
        %1661 = vmatprep.subr.bf16.mxu0 0
        %1662 = vmatpush1.bf16.msra.mxu0 0
        %1663 = vmatprep.mubr.bf16.mxu0 0
        %1664 = vmatmul.mubr.bf16.gmra.mrb[0].mxu0 %v1626
        %v1665 = vpop.f32.mrb[0].mxu0
        %v1666 = vadd.f32 0.0, %v1665
        %v1667 = vpop.f32.mrb[0].mxu0
        %v1668 = vpop.f32.mrb[0].mxu0
        %v1669 = vpop.f32.mrb[0].mxu0
        %1670 = vdwg.mxu0
        %v1672 = vsel %vm1126, %v1577, 0
        %v1675 = vsel %vm1387, %v1105, 0
        %1677 = vmatprep.subr.bf16.mxu0 0
        %1678 = vmatpush1.bf16.msra.mxu0 %v1675
        %1679 = vmatprep.subr.bf16.mxu0 0
        %1680 = vmatpush1.bf16.msra.mxu0 0
        %1681 = vmatprep.subr.bf16.mxu0 0
        %1682 = vmatpush1.bf16.msra.mxu0 0
        %1683 = vmatprep.subr.bf16.mxu0 0
        %1684 = vmatpush1.bf16.msra.mxu0 0
        %1685 = vmatprep.subr.bf16.mxu0 0
        %1686 = vmatpush1.bf16.msra.mxu0 0
        %1687 = vmatprep.subr.bf16.mxu0 0
        %1688 = vmatpush1.bf16.msra.mxu0 0
        %1689 = vmatprep.subr.bf16.mxu0 0
        %1690 = vmatpush1.bf16.msra.mxu0 0
        %1691 = vmatprep.subr.bf16.mxu0 0
        %1692 = vmatpush1.bf16.msra.mxu0 0
        %1693 = vmatprep.subr.bf16.mxu0 0
        %1694 = vmatpush1.bf16.msra.mxu0 0
        %1695 = vmatprep.subr.bf16.mxu0 0
        %1696 = vmatpush1.bf16.msra.mxu0 0
        %1697 = vmatprep.subr.bf16.mxu0 0
        %1698 = vmatpush1.bf16.msra.mxu0 0
        %1699 = vmatprep.subr.bf16.mxu0 0
        %1700 = vmatpush1.bf16.msra.mxu0 0
        %1701 = vmatprep.subr.bf16.mxu0 0
        %1702 = vmatpush1.bf16.msra.mxu0 0
        %1703 = vmatprep.subr.bf16.mxu0 0
        %1704 = vmatpush1.bf16.msra.mxu0 0
        %1705 = vmatprep.subr.bf16.mxu0 0
        %1706 = vmatpush1.bf16.msra.mxu0 0
        %1707 = vmatprep.subr.bf16.mxu0 0
        %1708 = vmatpush1.bf16.msra.mxu0 0
        %1709 = vmatprep.mubr.bf16.mxu0 0
        %1710 = vmatmul.mubr.bf16.gmra.mrb[0].mxu0 %v1672
        %v1711 = vpop.f32.mrb[0].mxu0
        %v1712 = vadd.f32 0.0, %v1711
        %v1713 = vpop.f32.mrb[0].mxu0
        %v1714 = vpop.f32.mrb[0].mxu0
        %v1715 = vpop.f32.mrb[0].mxu0
        %1716 = vdwg.mxu0
        %v1718 = vsel %vm1126, %v1578, 0
        %v1721 = vsel %vm1387, %v1106, 0
        %1723 = vmatprep.subr.bf16.mxu0 0
        %1724 = vmatpush1.bf16.msra.mxu0 %v1721
        %1725 = vmatprep.subr.bf16.mxu0 0
        %1726 = vmatpush1.bf16.msra.mxu0 0
        %1727 = vmatprep.subr.bf16.mxu0 0
        %1728 = vmatpush1.bf16.msra.mxu0 0
        %1729 = vmatprep.subr.bf16.mxu0 0
        %1730 = vmatpush1.bf16.msra.mxu0 0
        %1731 = vmatprep.subr.bf16.mxu0 0
        %1732 = vmatpush1.bf16.msra.mxu0 0
        %1733 = vmatprep.subr.bf16.mxu0 0
        %1734 = vmatpush1.bf16.msra.mxu0 0
        %1735 = vmatprep.subr.bf16.mxu0 0
        %1736 = vmatpush1.bf16.msra.mxu0 0
        %1737 = vmatprep.subr.bf16.mxu0 0
        %1738 = vmatpush1.bf16.msra.mxu0 0
        %1739 = vmatprep.subr.bf16.mxu0 0
        %1740 = vmatpush1.bf16.msra.mxu0 0
        %1741 = vmatprep.subr.bf16.mxu0 0
        %1742 = vmatpush1.bf16.msra.mxu0 0
        %1743 = vmatprep.subr.bf16.mxu0 0
        %1744 = vmatpush1.bf16.msra.mxu0 0
        %1745 = vmatprep.subr.bf16.mxu0 0
        %1746 = vmatpush1.bf16.msra.mxu0 0
        %1747 = vmatprep.subr.bf16.mxu0 0
        %1748 = vmatpush1.bf16.msra.mxu0 0
        %1749 = vmatprep.subr.bf16.mxu0 0
        %1750 = vmatpush1.bf16.msra.mxu0 0
        %1751 = vmatprep.subr.bf16.mxu0 0
        %1752 = vmatpush1.bf16.msra.mxu0 0
        %1753 = vmatprep.subr.bf16.mxu0 0
        %1754 = vmatpush1.bf16.msra.mxu0 0
        %1755 = vmatprep.mubr.bf16.mxu0 0
        %1756 = vmatmul.mubr.bf16.gmra.mrb[0].mxu0 %v1718
        %v1757 = vpop.f32.mrb[0].mxu0
        %v1758 = vadd.f32 0.0, %v1757
        %v1759 = vpop.f32.mrb[0].mxu0
        %v1760 = vpop.f32.mrb[0].mxu0
        %v1761 = vpop.f32.mrb[0].mxu0
        %1762 = vdwg.mxu0
        %v1763 = vsel %vm1058, %v1620, 0.0
        %v1764 = vsel %vm1058, %v1666, 0.0
        %v1765 = vadd.f32 %v1763, %v1764
        %v1766 = vsel %vm1058, %v1712, 0.0
        %v1767 = vadd.f32 %v1765, %v1766
        %v1768 = vsel %vm1058, %v1758, 0.0
        %v1769 = vadd.f32 %v1767, %v1768
        %1771 = vrot.lane.b32.xlu0 %v1100, 120
        %v1772 = vpop.permute.xlu0 %1771
        %1774 = vrot.lane.b32.xlu0 %v1100, 112
        %v1775 = vpop.permute.xlu0 %1774
        %1777 = vrot.lane.b32.xlu0 %v1100, 104
        %v1778 = vpop.permute.xlu0 %1777
        %v1780 = vpack.c.bf16 %v1100, %v1100
        %v1781 = vpack.c.bf16 %v1772, %v1772
        %v1782 = vpack.c.bf16 %v1775, %v1775
        %v1783 = vpack.c.bf16 %v1778, %v1778
        %1785 = vrot.lane.b32.xlu0 %v1780, 96
        %v1786 = vpop.permute.xlu0 %1785
        %v1788 = vsel %vm1126, %v1780, 0
        %v1791 = vsel %vm1126, %v1786, 0
        %1793 = vmatprep.subr.bf16.mxu0 0
        %1794 = vmatpush1.bf16.xpose.msra.mxu0 %v1791
        %1795 = vmatprep.subr.bf16.mxu0 0
        %1796 = vmatpush1.bf16.xpose.msra.mxu0 0
        %1797 = vmatprep.subr.bf16.mxu0 0
        %1798 = vmatpush1.bf16.xpose.msra.mxu0 0
        %1799 = vmatprep.subr.bf16.mxu0 0
        %1800 = vmatpush1.bf16.xpose.msra.mxu0 0
        %1801 = vmatprep.subr.bf16.mxu0 0
        %1802 = vmatpush1.bf16.xpose.msra.mxu0 0
        %1803 = vmatprep.subr.bf16.mxu0 0
        %1804 = vmatpush1.bf16.xpose.msra.mxu0 0
        %1805 = vmatprep.subr.bf16.mxu0 0
        %1806 = vmatpush1.bf16.xpose.msra.mxu0 0
        %1807 = vmatprep.subr.bf16.mxu0 0
        %1808 = vmatpush1.bf16.xpose.msra.mxu0 0
        %1809 = vmatprep.subr.bf16.mxu0 0
        %1810 = vmatpush1.bf16.xpose.msra.mxu0 0
        %1811 = vmatprep.subr.bf16.mxu0 0
        %1812 = vmatpush1.bf16.xpose.msra.mxu0 0
        %1813 = vmatprep.subr.bf16.mxu0 0
        %1814 = vmatpush1.bf16.xpose.msra.mxu0 0
        %1815 = vmatprep.subr.bf16.mxu0 0
        %1816 = vmatpush1.bf16.xpose.msra.mxu0 0
        %1817 = vmatprep.subr.bf16.mxu0 0
        %1818 = vmatpush1.bf16.xpose.msra.mxu0 0
        %1819 = vmatprep.subr.bf16.mxu0 0
        %1820 = vmatpush1.bf16.xpose.msra.mxu0 0
        %1821 = vmatprep.subr.bf16.mxu0 0
        %1822 = vmatpush1.bf16.xpose.msra.mxu0 0
        %1823 = vmatprep.subr.bf16.mxu0 0
        %1824 = vmatpush1.bf16.xpose.msra.mxu0 0
        %1825 = vmatprep.mubr.bf16.mxu0 0
        %1826 = vmatmul.mubr.bf16.gmra.mrb[0].mxu0 %v1788
        %v1827 = vpop.f32.mrb[0].mxu0
        %v1828 = vadd.f32 0.0, %v1827
        %v1829 = vpop.f32.mrb[0].mxu0
        %v1830 = vpop.f32.mrb[0].mxu0
        %v1831 = vpop.f32.mrb[0].mxu0
        %1832 = vdwg.mxu0
        %1834 = vrot.lane.b32.xlu0 %v1781, 96
        %v1835 = vpop.permute.xlu0 %1834
        %v1837 = vsel %vm1126, %v1781, 0
        %v1840 = vsel %vm1126, %v1835, 0
        %1842 = vmatprep.subr.bf16.mxu0 0
        %1843 = vmatpush1.bf16.xpose.msra.mxu0 %v1840
        %1844 = vmatprep.subr.bf16.mxu0 0
        %1845 = vmatpush1.bf16.xpose.msra.mxu0 0
        %1846 = vmatprep.subr.bf16.mxu0 0
        %1847 = vmatpush1.bf16.xpose.msra.mxu0 0
        %1848 = vmatprep.subr.bf16.mxu0 0
        %1849 = vmatpush1.bf16.xpose.msra.mxu0 0
        %1850 = vmatprep.subr.bf16.mxu0 0
        %1851 = vmatpush1.bf16.xpose.msra.mxu0 0
        %1852 = vmatprep.subr.bf16.mxu0 0
        %1853 = vmatpush1.bf16.xpose.msra.mxu0 0
        %1854 = vmatprep.subr.bf16.mxu0 0
        %1855 = vmatpush1.bf16.xpose.msra.mxu0 0
        %1856 = vmatprep.subr.bf16.mxu0 0
        %1857 = vmatpush1.bf16.xpose.msra.mxu0 0
        %1858 = vmatprep.subr.bf16.mxu0 0
        %1859 = vmatpush1.bf16.xpose.msra.mxu0 0
        %1860 = vmatprep.subr.bf16.mxu0 0
        %1861 = vmatpush1.bf16.xpose.msra.mxu0 0
        %1862 = vmatprep.subr.bf16.mxu0 0
        %1863 = vmatpush1.bf16.xpose.msra.mxu0 0
        %1864 = vmatprep.subr.bf16.mxu0 0
        %1865 = vmatpush1.bf16.xpose.msra.mxu0 0
        %1866 = vmatprep.subr.bf16.mxu0 0
        %1867 = vmatpush1.bf16.xpose.msra.mxu0 0
        %1868 = vmatprep.subr.bf16.mxu0 0
        %1869 = vmatpush1.bf16.xpose.msra.mxu0 0
        %1870 = vmatprep.subr.bf16.mxu0 0
        %1871 = vmatpush1.bf16.xpose.msra.mxu0 0
        %1872 = vmatprep.subr.bf16.mxu0 0
        %1873 = vmatpush1.bf16.xpose.msra.mxu0 0
        %1874 = vmatprep.mubr.bf16.mxu0 0
        %1875 = vmatmul.mubr.bf16.gmra.mrb[0].mxu0 %v1837
        %v1876 = vpop.f32.mrb[0].mxu0
        %v1877 = vadd.f32 0.0, %v1876
        %v1878 = vpop.f32.mrb[0].mxu0
        %v1879 = vpop.f32.mrb[0].mxu0
        %v1880 = vpop.f32.mrb[0].mxu0
        %1881 = vdwg.mxu0
        %1883 = vrot.lane.b32.xlu0 %v1782, 96
        %v1884 = vpop.permute.xlu0 %1883
        %v1886 = vsel %vm1126, %v1782, 0
        %v1889 = vsel %vm1126, %v1884, 0
        %1891 = vmatprep.subr.bf16.mxu0 0
        %1892 = vmatpush1.bf16.xpose.msra.mxu0 %v1889
        %1893 = vmatprep.subr.bf16.mxu0 0
        %1894 = vmatpush1.bf16.xpose.msra.mxu0 0
        %1895 = vmatprep.subr.bf16.mxu0 0
        %1896 = vmatpush1.bf16.xpose.msra.mxu0 0
        %1897 = vmatprep.subr.bf16.mxu0 0
        %1898 = vmatpush1.bf16.xpose.msra.mxu0 0
        %1899 = vmatprep.subr.bf16.mxu0 0
        %1900 = vmatpush1.bf16.xpose.msra.mxu0 0
        %1901 = vmatprep.subr.bf16.mxu0 0
        %1902 = vmatpush1.bf16.xpose.msra.mxu0 0
        %1903 = vmatprep.subr.bf16.mxu0 0
        %1904 = vmatpush1.bf16.xpose.msra.mxu0 0
        %1905 = vmatprep.subr.bf16.mxu0 0
        %1906 = vmatpush1.bf16.xpose.msra.mxu0 0
        %1907 = vmatprep.subr.bf16.mxu0 0
        %1908 = vmatpush1.bf16.xpose.msra.mxu0 0
        %1909 = vmatprep.subr.bf16.mxu0 0
        %1910 = vmatpush1.bf16.xpose.msra.mxu0 0
        %1911 = vmatprep.subr.bf16.mxu0 0
        %1912 = vmatpush1.bf16.xpose.msra.mxu0 0
        %1913 = vmatprep.subr.bf16.mxu0 0
        %1914 = vmatpush1.bf16.xpose.msra.mxu0 0
        %1915 = vmatprep.subr.bf16.mxu0 0
        %1916 = vmatpush1.bf16.xpose.msra.mxu0 0
        %1917 = vmatprep.subr.bf16.mxu0 0
        %1918 = vmatpush1.bf16.xpose.msra.mxu0 0
        %1919 = vmatprep.subr.bf16.mxu0 0
        %1920 = vmatpush1.bf16.xpose.msra.mxu0 0
        %1921 = vmatprep.subr.bf16.mxu0 0
        %1922 = vmatpush1.bf16.xpose.msra.mxu0 0
        %1923 = vmatprep.mubr.bf16.mxu0 0
        %1924 = vmatmul.mubr.bf16.gmra.mrb[0].mxu0 %v1886
        %v1925 = vpop.f32.mrb[0].mxu0
        %v1926 = vadd.f32 0.0, %v1925
        %v1927 = vpop.f32.mrb[0].mxu0
        %v1928 = vpop.f32.mrb[0].mxu0
        %v1929 = vpop.f32.mrb[0].mxu0
        %1930 = vdwg.mxu0
        %1932 = vrot.lane.b32.xlu0 %v1783, 96
        %v1933 = vpop.permute.xlu0 %1932
        %v1935 = vsel %vm1126, %v1783, 0
        %v1938 = vsel %vm1126, %v1933, 0
        %1940 = vmatprep.subr.bf16.mxu0 0
        %1941 = vmatpush1.bf16.xpose.msra.mxu0 %v1938
        %1942 = vmatprep.subr.bf16.mxu0 0
        %1943 = vmatpush1.bf16.xpose.msra.mxu0 0
        %1944 = vmatprep.subr.bf16.mxu0 0
        %1945 = vmatpush1.bf16.xpose.msra.mxu0 0
        %1946 = vmatprep.subr.bf16.mxu0 0
        %1947 = vmatpush1.bf16.xpose.msra.mxu0 0
        %1948 = vmatprep.subr.bf16.mxu0 0
        %1949 = vmatpush1.bf16.xpose.msra.mxu0 0
        %1950 = vmatprep.subr.bf16.mxu0 0
        %1951 = vmatpush1.bf16.xpose.msra.mxu0 0
        %1952 = vmatprep.subr.bf16.mxu0 0
        %1953 = vmatpush1.bf16.xpose.msra.mxu0 0
        %1954 = vmatprep.subr.bf16.mxu0 0
        %1955 = vmatpush1.bf16.xpose.msra.mxu0 0
        %1956 = vmatprep.subr.bf16.mxu0 0
        %1957 = vmatpush1.bf16.xpose.msra.mxu0 0
        %1958 = vmatprep.subr.bf16.mxu0 0
        %1959 = vmatpush1.bf16.xpose.msra.mxu0 0
        %1960 = vmatprep.subr.bf16.mxu0 0
        %1961 = vmatpush1.bf16.xpose.msra.mxu0 0
        %1962 = vmatprep.subr.bf16.mxu0 0
        %1963 = vmatpush1.bf16.xpose.msra.mxu0 0
        %1964 = vmatprep.subr.bf16.mxu0 0
        %1965 = vmatpush1.bf16.xpose.msra.mxu0 0
        %1966 = vmatprep.subr.bf16.mxu0 0
        %1967 = vmatpush1.bf16.xpose.msra.mxu0 0
        %1968 = vmatprep.subr.bf16.mxu0 0
        %1969 = vmatpush1.bf16.xpose.msra.mxu0 0
        %1970 = vmatprep.subr.bf16.mxu0 0
        %1971 = vmatpush1.bf16.xpose.msra.mxu0 0
        %1972 = vmatprep.mubr.bf16.mxu0 0
        %1973 = vmatmul.mubr.bf16.gmra.mrb[0].mxu0 %v1935
        %v1974 = vpop.f32.mrb[0].mxu0
        %v1975 = vadd.f32 0.0, %v1974
        %v1976 = vpop.f32.mrb[0].mxu0
        %v1977 = vpop.f32.mrb[0].mxu0
        %v1978 = vpop.f32.mrb[0].mxu0
        %1979 = vdwg.mxu0
        %v1980 = vmul.f32 %v1828, 0.35355338
        %v1981 = vmul.f32 %v1877, 0.35355338
        %v1982 = vmul.f32 %v1926, 0.35355338
        %v1983 = vmul.f32 %v1975, 0.35355338
        %v1985 = vlaneseq
        %v1986 = vshrl.u32 %v1985, 7
        %v1987 = vsub.s32 0, %v1986
        %v1988 = vrot.slane %v1108, %v1987
        %v1990 = vadd.f32 %v1980, %v1988
        %v1991 = vadd.f32 %v1981, %v1988
        %v1992 = vadd.f32 %v1982, %v1988
        %v1993 = vadd.f32 %v1983, %v1988
        %v1994 = vsel %vm1126, %v1990, -inf
        %1995 = vmax.xlane.f32.xlu0 %v1994
        %v1996 = vpop.xlane.xlu0 %1995
        %v1997 = vsel %vm1126, %v1991, -inf
        %1998 = vmax.xlane.f32.xlu0 %v1997
        %v1999 = vpop.xlane.xlu0 %1998
        %v2000 = vsel %vm1126, %v1992, -inf
        %2001 = vmax.xlane.f32.xlu0 %v2000
        %v2002 = vpop.xlane.xlu0 %2001
        %v2003 = vsel %vm1126, %v1993, -inf
        %2004 = vmax.xlane.f32.xlu0 %v2003
        %v2005 = vpop.xlane.xlu0 %2004
        %v2006 = vsub.f32 %v1990, %v1996
        %v2007 = vsub.f32 %v1991, %v1999
        %v2008 = vsub.f32 %v1992, %v2002
        %v2009 = vsub.f32 %v1993, %v2005
        %v2010 = vmul.f32 %v2006, 1.442695
        %v2011 = vpow.pop %v2010
        %v2012 = vmul.f32 %v2007, 1.442695
        %v2013 = vpow.pop %v2012
        %v2014 = vmul.f32 %v2008, 1.442695
        %v2015 = vpow.pop %v2014
        %v2016 = vmul.f32 %v2009, 1.442695
        %v2017 = vpow.pop %v2016
        %v2018 = vsel %vm1126, %v2011, 0.0
        %2019 = vadd.xlane.f32.xlu0 %v2018
        %v2020 = vpop.xlane.xlu0 %2019
        %v2021 = vsel %vm1126, %v2013, 0.0
        %2022 = vadd.xlane.f32.xlu0 %v2021
        %v2023 = vpop.xlane.xlu0 %2022
        %v2024 = vsel %vm1126, %v2015, 0.0
        %2025 = vadd.xlane.f32.xlu0 %v2024
        %v2026 = vpop.xlane.xlu0 %2025
        %v2027 = vsel %vm1126, %v2017, 0.0
        %2028 = vadd.xlane.f32.xlu0 %v2027
        %v2029 = vpop.xlane.xlu0 %2028
        %v2030 = vrcp.pop %v2020
        %v2031 = vrcp.pop %v2023
        %v2032 = vrcp.pop %v2026
        %v2033 = vrcp.pop %v2029
        %v2034 = vmul.f32 %v2011, %v2030
        %v2035 = vmul.f32 %v2013, %v2031
        %v2036 = vmul.f32 %v2015, %v2032
        %v2037 = vmul.f32 %v2017, %v2033
        %v2038 = vpack.c.bf16 %v2034, %v2034
        %v2039 = vpack.c.bf16 %v2035, %v2035
        %v2040 = vpack.c.bf16 %v2036, %v2036
        %v2041 = vpack.c.bf16 %v2037, %v2037
        %2042 = vrot.lane.b32.xlu0 %v1780, 64
        %v2043 = vpop.permute.xlu0 %2042
        %v2045 = vsel %vm1126, %v2038, 0
        %v2048 = vsel %vm1387, %v2043, 0
        %2050 = vmatprep.subr.bf16.mxu0 0
        %2051 = vmatpush1.bf16.msra.mxu0 %v2048
        %2052 = vmatprep.subr.bf16.mxu0 0
        %2053 = vmatpush1.bf16.msra.mxu0 0
        %2054 = vmatprep.subr.bf16.mxu0 0
        %2055 = vmatpush1.bf16.msra.mxu0 0
        %2056 = vmatprep.subr.bf16.mxu0 0
        %2057 = vmatpush1.bf16.msra.mxu0 0
        %2058 = vmatprep.subr.bf16.mxu0 0
        %2059 = vmatpush1.bf16.msra.mxu0 0
        %2060 = vmatprep.subr.bf16.mxu0 0
        %2061 = vmatpush1.bf16.msra.mxu0 0
        %2062 = vmatprep.subr.bf16.mxu0 0
        %2063 = vmatpush1.bf16.msra.mxu0 0
        %2064 = vmatprep.subr.bf16.mxu0 0
        %2065 = vmatpush1.bf16.msra.mxu0 0
        %2066 = vmatprep.subr.bf16.mxu0 0
        %2067 = vmatpush1.bf16.msra.mxu0 0
        %2068 = vmatprep.subr.bf16.mxu0 0
        %2069 = vmatpush1.bf16.msra.mxu0 0
        %2070 = vmatprep.subr.bf16.mxu0 0
        %2071 = vmatpush1.bf16.msra.mxu0 0
        %2072 = vmatprep.subr.bf16.mxu0 0
        %2073 = vmatpush1.bf16.msra.mxu0 0
        %2074 = vmatprep.subr.bf16.mxu0 0
        %2075 = vmatpush1.bf16.msra.mxu0 0
        %2076 = vmatprep.subr.bf16.mxu0 0
        %2077 = vmatpush1.bf16.msra.mxu0 0
        %2078 = vmatprep.subr.bf16.mxu0 0
        %2079 = vmatpush1.bf16.msra.mxu0 0
        %2080 = vmatprep.subr.bf16.mxu0 0
        %2081 = vmatpush1.bf16.msra.mxu0 0
        %2082 = vmatprep.mubr.bf16.mxu0 0
        %2083 = vmatmul.mubr.bf16.gmra.mrb[0].mxu0 %v2045
        %v2084 = vpop.f32.mrb[0].mxu0
        %v2085 = vadd.f32 0.0, %v2084
        %v2086 = vpop.f32.mrb[0].mxu0
        %v2087 = vpop.f32.mrb[0].mxu0
        %v2088 = vpop.f32.mrb[0].mxu0
        %2089 = vdwg.mxu0
        %2090 = vrot.lane.b32.xlu0 %v1781, 64
        %v2091 = vpop.permute.xlu0 %2090
        %v2093 = vsel %vm1126, %v2039, 0
        %v2096 = vsel %vm1387, %v2091, 0
        %2098 = vmatprep.subr.bf16.mxu0 0
        %2099 = vmatpush1.bf16.msra.mxu0 %v2096
        %2100 = vmatprep.subr.bf16.mxu0 0
        %2101 = vmatpush1.bf16.msra.mxu0 0
        %2102 = vmatprep.subr.bf16.mxu0 0
        %2103 = vmatpush1.bf16.msra.mxu0 0
        %2104 = vmatprep.subr.bf16.mxu0 0
        %2105 = vmatpush1.bf16.msra.mxu0 0
        %2106 = vmatprep.subr.bf16.mxu0 0
        %2107 = vmatpush1.bf16.msra.mxu0 0
        %2108 = vmatprep.subr.bf16.mxu0 0
        %2109 = vmatpush1.bf16.msra.mxu0 0
        %2110 = vmatprep.subr.bf16.mxu0 0
        %2111 = vmatpush1.bf16.msra.mxu0 0
        %2112 = vmatprep.subr.bf16.mxu0 0
        %2113 = vmatpush1.bf16.msra.mxu0 0
        %2114 = vmatprep.subr.bf16.mxu0 0
        %2115 = vmatpush1.bf16.msra.mxu0 0
        %2116 = vmatprep.subr.bf16.mxu0 0
        %2117 = vmatpush1.bf16.msra.mxu0 0
        %2118 = vmatprep.subr.bf16.mxu0 0
        %2119 = vmatpush1.bf16.msra.mxu0 0
        %2120 = vmatprep.subr.bf16.mxu0 0
        %2121 = vmatpush1.bf16.msra.mxu0 0
        %2122 = vmatprep.subr.bf16.mxu0 0
        %2123 = vmatpush1.bf16.msra.mxu0 0
        %2124 = vmatprep.subr.bf16.mxu0 0
        %2125 = vmatpush1.bf16.msra.mxu0 0
        %2126 = vmatprep.subr.bf16.mxu0 0
        %2127 = vmatpush1.bf16.msra.mxu0 0
        %2128 = vmatprep.subr.bf16.mxu0 0
        %2129 = vmatpush1.bf16.msra.mxu0 0
        %2130 = vmatprep.mubr.bf16.mxu0 0
        %2131 = vmatmul.mubr.bf16.gmra.mrb[0].mxu0 %v2093
        %v2132 = vpop.f32.mrb[0].mxu0
        %v2133 = vadd.f32 0.0, %v2132
        %v2134 = vpop.f32.mrb[0].mxu0
        %v2135 = vpop.f32.mrb[0].mxu0
        %v2136 = vpop.f32.mrb[0].mxu0
        %2137 = vdwg.mxu0
        %2138 = vrot.lane.b32.xlu0 %v1782, 64
        %v2139 = vpop.permute.xlu0 %2138
        %v2141 = vsel %vm1126, %v2040, 0
        %v2144 = vsel %vm1387, %v2139, 0
        %2146 = vmatprep.subr.bf16.mxu0 0
        %2147 = vmatpush1.bf16.msra.mxu0 %v2144
        %2148 = vmatprep.subr.bf16.mxu0 0
        %2149 = vmatpush1.bf16.msra.mxu0 0
        %2150 = vmatprep.subr.bf16.mxu0 0
        %2151 = vmatpush1.bf16.msra.mxu0 0
        %2152 = vmatprep.subr.bf16.mxu0 0
        %2153 = vmatpush1.bf16.msra.mxu0 0
        %2154 = vmatprep.subr.bf16.mxu0 0
        %2155 = vmatpush1.bf16.msra.mxu0 0
        %2156 = vmatprep.subr.bf16.mxu0 0
        %2157 = vmatpush1.bf16.msra.mxu0 0
        %2158 = vmatprep.subr.bf16.mxu0 0
        %2159 = vmatpush1.bf16.msra.mxu0 0
        %2160 = vmatprep.subr.bf16.mxu0 0
        %2161 = vmatpush1.bf16.msra.mxu0 0
        %2162 = vmatprep.subr.bf16.mxu0 0
        %2163 = vmatpush1.bf16.msra.mxu0 0
        %2164 = vmatprep.subr.bf16.mxu0 0
        %2165 = vmatpush1.bf16.msra.mxu0 0
        %2166 = vmatprep.subr.bf16.mxu0 0
        %2167 = vmatpush1.bf16.msra.mxu0 0
        %2168 = vmatprep.subr.bf16.mxu0 0
        %2169 = vmatpush1.bf16.msra.mxu0 0
        %2170 = vmatprep.subr.bf16.mxu0 0
        %2171 = vmatpush1.bf16.msra.mxu0 0
        %2172 = vmatprep.subr.bf16.mxu0 0
        %2173 = vmatpush1.bf16.msra.mxu0 0
        %2174 = vmatprep.subr.bf16.mxu0 0
        %2175 = vmatpush1.bf16.msra.mxu0 0
        %2176 = vmatprep.subr.bf16.mxu0 0
        %2177 = vmatpush1.bf16.msra.mxu0 0
        %2178 = vmatprep.mubr.bf16.mxu0 0
        %2179 = vmatmul.mubr.bf16.gmra.mrb[0].mxu0 %v2141
        %v2180 = vpop.f32.mrb[0].mxu0
        %v2181 = vadd.f32 0.0, %v2180
        %v2182 = vpop.f32.mrb[0].mxu0
        %v2183 = vpop.f32.mrb[0].mxu0
        %v2184 = vpop.f32.mrb[0].mxu0
        %2185 = vdwg.mxu0
        %2186 = vrot.lane.b32.xlu0 %v1783, 64
        %v2187 = vpop.permute.xlu0 %2186
        %v2189 = vsel %vm1126, %v2041, 0
        %v2192 = vsel %vm1387, %v2187, 0
        %2194 = vmatprep.subr.bf16.mxu0 0
        %2195 = vmatpush1.bf16.msra.mxu0 %v2192
        %2196 = vmatprep.subr.bf16.mxu0 0
        %2197 = vmatpush1.bf16.msra.mxu0 0
        %2198 = vmatprep.subr.bf16.mxu0 0
        %2199 = vmatpush1.bf16.msra.mxu0 0
        %2200 = vmatprep.subr.bf16.mxu0 0
        %2201 = vmatpush1.bf16.msra.mxu0 0
        %2202 = vmatprep.subr.bf16.mxu0 0
        %2203 = vmatpush1.bf16.msra.mxu0 0
        %2204 = vmatprep.subr.bf16.mxu0 0
        %2205 = vmatpush1.bf16.msra.mxu0 0
        %2206 = vmatprep.subr.bf16.mxu0 0
        %2207 = vmatpush1.bf16.msra.mxu0 0
        %2208 = vmatprep.subr.bf16.mxu0 0
        %2209 = vmatpush1.bf16.msra.mxu0 0
        %2210 = vmatprep.subr.bf16.mxu0 0
        %2211 = vmatpush1.bf16.msra.mxu0 0
        %2212 = vmatprep.subr.bf16.mxu0 0
        %2213 = vmatpush1.bf16.msra.mxu0 0
        %2214 = vmatprep.subr.bf16.mxu0 0
        %2215 = vmatpush1.bf16.msra.mxu0 0
        %2216 = vmatprep.subr.bf16.mxu0 0
        %2217 = vmatpush1.bf16.msra.mxu0 0
        %2218 = vmatprep.subr.bf16.mxu0 0
        %2219 = vmatpush1.bf16.msra.mxu0 0
        %2220 = vmatprep.subr.bf16.mxu0 0
        %2221 = vmatpush1.bf16.msra.mxu0 0
        %2222 = vmatprep.subr.bf16.mxu0 0
        %2223 = vmatpush1.bf16.msra.mxu0 0
        %2224 = vmatprep.subr.bf16.mxu0 0
        %2225 = vmatpush1.bf16.msra.mxu0 0
        %2226 = vmatprep.mubr.bf16.mxu0 0
        %2227 = vmatmul.mubr.bf16.gmra.mrb[0].mxu0 %v2189
        %v2228 = vpop.f32.mrb[0].mxu0
        %v2229 = vadd.f32 0.0, %v2228
        %v2230 = vpop.f32.mrb[0].mxu0
        %v2231 = vpop.f32.mrb[0].mxu0
        %v2232 = vpop.f32.mrb[0].mxu0
        %2233 = vdwg.mxu0
        %v2234 = vpack.c.bf16 %v2085, %v2085
        %v2235 = vpack.c.bf16 %v2133, %v2133
        %v2236 = vpack.c.bf16 %v2181, %v2181
        %v2237 = vpack.c.bf16 %v2229, %v2229
        %v2239 = vsel %vm1126, %v2234, 0
        %2241 = vmatprep.subr.bf16.mxu0 0
        %2242 = vmatpush1.bf16.msra.mxu0 %v1583
        %2243 = vmatprep.subr.bf16.mxu0 0
        %2244 = vmatpush1.bf16.msra.mxu0 0
        %2245 = vmatprep.subr.bf16.mxu0 0
        %2246 = vmatpush1.bf16.msra.mxu0 0
        %2247 = vmatprep.subr.bf16.mxu0 0
        %2248 = vmatpush1.bf16.msra.mxu0 0
        %2249 = vmatprep.subr.bf16.mxu0 0
        %2250 = vmatpush1.bf16.msra.mxu0 0
        %2251 = vmatprep.subr.bf16.mxu0 0
        %2252 = vmatpush1.bf16.msra.mxu0 0
        %2253 = vmatprep.subr.bf16.mxu0 0
        %2254 = vmatpush1.bf16.msra.mxu0 0
        %2255 = vmatprep.subr.bf16.mxu0 0
        %2256 = vmatpush1.bf16.msra.mxu0 0
        %2257 = vmatprep.subr.bf16.mxu0 0
        %2258 = vmatpush1.bf16.msra.mxu0 0
        %2259 = vmatprep.subr.bf16.mxu0 0
        %2260 = vmatpush1.bf16.msra.mxu0 0
        %2261 = vmatprep.subr.bf16.mxu0 0
        %2262 = vmatpush1.bf16.msra.mxu0 0
        %2263 = vmatprep.subr.bf16.mxu0 0
        %2264 = vmatpush1.bf16.msra.mxu0 0
        %2265 = vmatprep.subr.bf16.mxu0 0
        %2266 = vmatpush1.bf16.msra.mxu0 0
        %2267 = vmatprep.subr.bf16.mxu0 0
        %2268 = vmatpush1.bf16.msra.mxu0 0
        %2269 = vmatprep.subr.bf16.mxu0 0
        %2270 = vmatpush1.bf16.msra.mxu0 0
        %2271 = vmatprep.subr.bf16.mxu0 0
        %2272 = vmatpush1.bf16.msra.mxu0 0
        %2273 = vmatprep.mubr.bf16.mxu0 0
        %2274 = vmatmul.mubr.bf16.gmra.mrb[0].mxu0 %v2239
        %v2275 = vpop.f32.mrb[0].mxu0
        %v2276 = vadd.f32 0.0, %v2275
        %v2277 = vpop.f32.mrb[0].mxu0
        %v2278 = vpop.f32.mrb[0].mxu0
        %v2279 = vpop.f32.mrb[0].mxu0
        %2280 = vdwg.mxu0
        %v2282 = vsel %vm1126, %v2235, 0
        %2284 = vmatprep.subr.bf16.mxu0 0
        %2285 = vmatpush1.bf16.msra.mxu0 %v1629
        %2286 = vmatprep.subr.bf16.mxu0 0
        %2287 = vmatpush1.bf16.msra.mxu0 0
        %2288 = vmatprep.subr.bf16.mxu0 0
        %2289 = vmatpush1.bf16.msra.mxu0 0
        %2290 = vmatprep.subr.bf16.mxu0 0
        %2291 = vmatpush1.bf16.msra.mxu0 0
        %2292 = vmatprep.subr.bf16.mxu0 0
        %2293 = vmatpush1.bf16.msra.mxu0 0
        %2294 = vmatprep.subr.bf16.mxu0 0
        %2295 = vmatpush1.bf16.msra.mxu0 0
        %2296 = vmatprep.subr.bf16.mxu0 0
        %2297 = vmatpush1.bf16.msra.mxu0 0
        %2298 = vmatprep.subr.bf16.mxu0 0
        %2299 = vmatpush1.bf16.msra.mxu0 0
        %2300 = vmatprep.subr.bf16.mxu0 0
        %2301 = vmatpush1.bf16.msra.mxu0 0
        %2302 = vmatprep.subr.bf16.mxu0 0
        %2303 = vmatpush1.bf16.msra.mxu0 0
        %2304 = vmatprep.subr.bf16.mxu0 0
        %2305 = vmatpush1.bf16.msra.mxu0 0
        %2306 = vmatprep.subr.bf16.mxu0 0
        %2307 = vmatpush1.bf16.msra.mxu0 0
        %2308 = vmatprep.subr.bf16.mxu0 0
        %2309 = vmatpush1.bf16.msra.mxu0 0
        %2310 = vmatprep.subr.bf16.mxu0 0
        %2311 = vmatpush1.bf16.msra.mxu0 0
        %2312 = vmatprep.subr.bf16.mxu0 0
        %2313 = vmatpush1.bf16.msra.mxu0 0
        %2314 = vmatprep.subr.bf16.mxu0 0
        %2315 = vmatpush1.bf16.msra.mxu0 0
        %2316 = vmatprep.mubr.bf16.mxu0 0
        %2317 = vmatmul.mubr.bf16.gmra.mrb[0].mxu0 %v2282
        %v2318 = vpop.f32.mrb[0].mxu0
        %v2319 = vadd.f32 0.0, %v2318
        %v2320 = vpop.f32.mrb[0].mxu0
        %v2321 = vpop.f32.mrb[0].mxu0
        %v2322 = vpop.f32.mrb[0].mxu0
        %2323 = vdwg.mxu0
        %v2325 = vsel %vm1126, %v2236, 0
        %2327 = vmatprep.subr.bf16.mxu0 0
        %2328 = vmatpush1.bf16.msra.mxu0 %v1675
        %2329 = vmatprep.subr.bf16.mxu0 0
        %2330 = vmatpush1.bf16.msra.mxu0 0
        %2331 = vmatprep.subr.bf16.mxu0 0
        %2332 = vmatpush1.bf16.msra.mxu0 0
        %2333 = vmatprep.subr.bf16.mxu0 0
        %2334 = vmatpush1.bf16.msra.mxu0 0
        %2335 = vmatprep.subr.bf16.mxu0 0
        %2336 = vmatpush1.bf16.msra.mxu0 0
        %2337 = vmatprep.subr.bf16.mxu0 0
        %2338 = vmatpush1.bf16.msra.mxu0 0
        %2339 = vmatprep.subr.bf16.mxu0 0
        %2340 = vmatpush1.bf16.msra.mxu0 0
        %2341 = vmatprep.subr.bf16.mxu0 0
        %2342 = vmatpush1.bf16.msra.mxu0 0
        %2343 = vmatprep.subr.bf16.mxu0 0
        %2344 = vmatpush1.bf16.msra.mxu0 0
        %2345 = vmatprep.subr.bf16.mxu0 0
        %2346 = vmatpush1.bf16.msra.mxu0 0
        %2347 = vmatprep.subr.bf16.mxu0 0
        %2348 = vmatpush1.bf16.msra.mxu0 0
        %2349 = vmatprep.subr.bf16.mxu0 0
        %2350 = vmatpush1.bf16.msra.mxu0 0
        %2351 = vmatprep.subr.bf16.mxu0 0
        %2352 = vmatpush1.bf16.msra.mxu0 0
        %2353 = vmatprep.subr.bf16.mxu0 0
        %2354 = vmatpush1.bf16.msra.mxu0 0
        %2355 = vmatprep.subr.bf16.mxu0 0
        %2356 = vmatpush1.bf16.msra.mxu0 0
        %2357 = vmatprep.subr.bf16.mxu0 0
        %2358 = vmatpush1.bf16.msra.mxu0 0
        %2359 = vmatprep.mubr.bf16.mxu0 0
        %2360 = vmatmul.mubr.bf16.gmra.mrb[0].mxu0 %v2325
        %v2361 = vpop.f32.mrb[0].mxu0
        %v2362 = vadd.f32 0.0, %v2361
        %v2363 = vpop.f32.mrb[0].mxu0
        %v2364 = vpop.f32.mrb[0].mxu0
        %v2365 = vpop.f32.mrb[0].mxu0
        %2366 = vdwg.mxu0
        %v2368 = vsel %vm1126, %v2237, 0
        %2370 = vmatprep.subr.bf16.mxu0 0
        %2371 = vmatpush1.bf16.msra.mxu0 %v1721
        %2372 = vmatprep.subr.bf16.mxu0 0
        %2373 = vmatpush1.bf16.msra.mxu0 0
        %2374 = vmatprep.subr.bf16.mxu0 0
        %2375 = vmatpush1.bf16.msra.mxu0 0
        %2376 = vmatprep.subr.bf16.mxu0 0
        %2377 = vmatpush1.bf16.msra.mxu0 0
        %2378 = vmatprep.subr.bf16.mxu0 0
        %2379 = vmatpush1.bf16.msra.mxu0 0
        %2380 = vmatprep.subr.bf16.mxu0 0
        %2381 = vmatpush1.bf16.msra.mxu0 0
        %2382 = vmatprep.subr.bf16.mxu0 0
        %2383 = vmatpush1.bf16.msra.mxu0 0
        %2384 = vmatprep.subr.bf16.mxu0 0
        %2385 = vmatpush1.bf16.msra.mxu0 0
        %2386 = vmatprep.subr.bf16.mxu0 0
        %2387 = vmatpush1.bf16.msra.mxu0 0
        %2388 = vmatprep.subr.bf16.mxu0 0
        %2389 = vmatpush1.bf16.msra.mxu0 0
        %2390 = vmatprep.subr.bf16.mxu0 0
        %2391 = vmatpush1.bf16.msra.mxu0 0
        %2392 = vmatprep.subr.bf16.mxu0 0
        %2393 = vmatpush1.bf16.msra.mxu0 0
        %2394 = vmatprep.subr.bf16.mxu0 0
        %2395 = vmatpush1.bf16.msra.mxu0 0
        %2396 = vmatprep.subr.bf16.mxu0 0
        %2397 = vmatpush1.bf16.msra.mxu0 0
        %2398 = vmatprep.subr.bf16.mxu0 0
        %2399 = vmatpush1.bf16.msra.mxu0 0
        %2400 = vmatprep.subr.bf16.mxu0 0
        %2401 = vmatpush1.bf16.msra.mxu0 0
        %2402 = vmatprep.mubr.bf16.mxu0 0
        %2403 = vmatmul.mubr.bf16.gmra.mrb[0].mxu0 %v2368
        %v2404 = vpop.f32.mrb[0].mxu0
        %v2405 = vadd.f32 0.0, %v2404
        %v2406 = vpop.f32.mrb[0].mxu0
        %v2407 = vpop.f32.mrb[0].mxu0
        %v2408 = vpop.f32.mrb[0].mxu0
        %2409 = vdwg.mxu0
        %v2410 = vsel %vm1058, %v2276, 0.0
        %v2411 = vsel %vm1058, %v2319, 0.0
        %v2412 = vadd.f32 %v2410, %v2411
        %v2413 = vsel %vm1058, %v2362, 0.0
        %v2414 = vadd.f32 %v2412, %v2413
        %v2415 = vsel %vm1058, %v2405, 0.0
        %v2416 = vadd.f32 %v2414, %v2415
        %v2417 = vld [vmem:[%s948] sm:$0x1]
        %v2419 = vlaneseq
        %v2420 = vshrl.u32 %v2419, 7
        %v2421 = vsub.s32 0, %v2420
        %v2422 = vrot.slane %v2417, %v2421
        %v2424 = vadd.f32 %v1769, %v2422
        %v2425 = vadd.f32 %v2416, %v2422
        %v2426 = vadd.f32 %v2424, %v1032
        %v2427 = vadd.f32 %v2425, %v1033
        %v2428 = vld [vmem:[%s951] sm:$0x1]
        %v2429 = vld [vmem:[%s954] sm:$0x1]
        %v2430 = vsel %vm1058, %v2426, 0.0
        %2431 = vadd.xlane.f32.xlu0 %v2430
        %v2432 = vpop.xlane.xlu0 %2431
        %v2433 = vsel %vm1058, %v2427, 0.0
        %2434 = vadd.xlane.f32.xlu0 %v2433
        %v2435 = vpop.xlane.xlu0 %2434
        %v2436 = vrcp.pop 32.0
        %v2437 = vmul.f32 %v2432, %v2436
        %v2438 = vmul.f32 %v2435, %v2436
        %v2439 = vsub.f32 %v2426, %v2437
        %v2440 = vsub.f32 %v2427, %v2438
        %v2441 = vmul.f32 %v2439, %v2439
        %v2442 = vmul.f32 %v2440, %v2440
        %v2443 = vsel %vm1058, %v2441, 0.0
        %2444 = vadd.xlane.f32.xlu0 %v2443
        %v2445 = vpop.xlane.xlu0 %2444
        %v2446 = vsel %vm1058, %v2442, 0.0
        %2447 = vadd.xlane.f32.xlu0 %v2446
        %v2448 = vpop.xlane.xlu0 %2447
        %v2449 = vmul.f32 %v2445, %v2436
        %v2450 = vmul.f32 %v2448, %v2436
        %v2451 = vadd.f32 %v2449, 1e-12
        %v2452 = vadd.f32 %v2450, 1e-12
        %v2453 = vrsqrt.pop %v2451
        %v2454 = vrsqrt.pop %v2452
        %v2455 = vmul.f32 %v2439, %v2453
        %v2456 = vmul.f32 %v2440, %v2454
        %v2458 = vlaneseq
        %v2459 = vshrl.u32 %v2458, 7
        %v2460 = vsub.s32 0, %v2459
        %v2461 = vrot.slane %v2428, %v2460
        %v2463 = vmul.f32 %v2455, %v2461
        %v2464 = vmul.f32 %v2456, %v2461
        %v2466 = vlaneseq
        %v2467 = vshrl.u32 %v2466, 7
        %v2468 = vsub.s32 0, %v2467
        %v2469 = vrot.slane %v2429, %v2468
        %v2471 = vadd.f32 %v2463, %v2469
        %v2472 = vadd.f32 %v2464, %v2469
        %v2473 = vld [vmem:[%s959] sm:$0xf]
        %v2474 = vld [vmem:[%s959 + $0x4] sm:$0xf]
        %v2475 = vld [vmem:[%s959 + $0x8] sm:$0xf]
        %v2476 = vld [vmem:[%s959 + $0xc] sm:$0xf]
        %v2477 = vld [vmem:[%s962] sm:$0x1]
        %v2478 = vpack.c.bf16 %v2472, %v2471
        %v2480 = vlaneseq
        %v2481 = vshrl.u32 %v2480, 7
        %v2482 = vsub.s32 0, %v2481
        %v2483 = vrot.slane %v2477, %v2482
        %v2489 = vunpack.c.l.b16 %v2473
        %v2490 = vunpack.c.l.b16 %v2474
        %v2491 = vunpack.c.l.b16 %v2475
        %v2492 = vunpack.c.l.b16 %v2476
        %v2493 = vpack.c.b16 %v2490, %v2489
        %v2494 = vpack.c.b16 %v2492, %v2491
        %v2498 = vsel %vm1058, %v2478, 0
        %2500 = vmatprep.subr.bf16.mxu0 0
        %2501 = vmatpush1.bf16.msra.mxu0 %v2493
        %2502 = vmatprep.subr.bf16.mxu0 0
        %2503 = vmatpush1.bf16.msra.mxu0 %v2494
        %2504 = vmatprep.subr.bf16.mxu0 0
        %2505 = vmatpush1.bf16.msra.mxu0 0
        %2506 = vmatprep.subr.bf16.mxu0 0
        %2507 = vmatpush1.bf16.msra.mxu0 0
        %2508 = vmatprep.subr.bf16.mxu0 0
        %2509 = vmatpush1.bf16.msra.mxu0 0
        %2510 = vmatprep.subr.bf16.mxu0 0
        %2511 = vmatpush1.bf16.msra.mxu0 0
        %2512 = vmatprep.subr.bf16.mxu0 0
        %2513 = vmatpush1.bf16.msra.mxu0 0
        %2514 = vmatprep.subr.bf16.mxu0 0
        %2515 = vmatpush1.bf16.msra.mxu0 0
        %2516 = vmatprep.subr.bf16.mxu0 0
        %2517 = vmatpush1.bf16.msra.mxu0 0
        %2518 = vmatprep.subr.bf16.mxu0 0
        %2519 = vmatpush1.bf16.msra.mxu0 0
        %2520 = vmatprep.subr.bf16.mxu0 0
        %2521 = vmatpush1.bf16.msra.mxu0 0
        %2522 = vmatprep.subr.bf16.mxu0 0
        %2523 = vmatpush1.bf16.msra.mxu0 0
        %2524 = vmatprep.subr.bf16.mxu0 0
        %2525 = vmatpush1.bf16.msra.mxu0 0
        %2526 = vmatprep.subr.bf16.mxu0 0
        %2527 = vmatpush1.bf16.msra.mxu0 0
        %2528 = vmatprep.subr.bf16.mxu0 0
        %2529 = vmatpush1.bf16.msra.mxu0 0
        %2530 = vmatprep.subr.bf16.mxu0 0
        %2531 = vmatpush1.bf16.msra.mxu0 0
        %2532 = vmatprep.mubr.bf16.mxu0 0
        %2533 = vmatmul.mubr.bf16.gmra.mrb[0].mxu0 %v2498
        %v2534 = vpop.f32.mrb[0].mxu0
        %v2535 = vadd.f32 %v2483, %v2534
        %v2536 = vpop.f32.mrb[0].mxu0
        %v2537 = vpop.f32.mrb[0].mxu0
        %v2538 = vadd.f32 %v2483, %v2537
        %v2539 = vpop.f32.mrb[0].mxu0
        %2540 = vdwg.mxu0
        %v2541 = vmul.f32 %v2535, 0.5
        %v2542 = vmul.f32 %v2538, 0.5
        %v2543 = vmul.f32 %v2535, 0.70710677
        %v2544 = vmul.f32 %v2538, 0.70710677
        %v2545 = verf.f32.pop %v2543
        %v2546 = verf.f32.pop %v2544
        %v2547 = vadd.f32 %v2545, 1.0
        %v2548 = vadd.f32 %v2546, 1.0
        %v2549 = vmul.f32 %v2541, %v2547
        %v2550 = vmul.f32 %v2542, %v2548
        %v2551 = vld [vmem:[%s967] sm:$0xf]
        %v2552 = vld [vmem:[%s967 + $0x4] sm:$0xf]
        %v2553 = vld [vmem:[%s967 + $0x8] sm:$0xf]
        %v2554 = vld [vmem:[%s967 + $0xc] sm:$0xf]
        %v2555 = vld [vmem:[%s967 + $0x10] sm:$0xf]
        %v2556 = vld [vmem:[%s967 + $0x14] sm:$0xf]
        %v2557 = vld [vmem:[%s967 + $0x18] sm:$0xf]
        %v2558 = vld [vmem:[%s967 + $0x1c] sm:$0xf]
        %v2559 = vld [vmem:[%s970] sm:$0x1]
        %v2560 = vpack.c.bf16 %v2550, %v2549
        %v2562 = vlaneseq
        %v2563 = vshrl.u32 %v2562, 7
        %v2564 = vsub.s32 0, %v2563
        %v2565 = vrot.slane %v2559, %v2564
        %v2575 = vunpack.c.l.b16 %v2551
        %v2576 = vunpack.c.l.b16 %v2552
        %v2577 = vunpack.c.l.b16 %v2553
        %v2578 = vunpack.c.l.b16 %v2554
        %v2579 = vunpack.c.l.b16 %v2555
        %v2580 = vunpack.c.l.b16 %v2556
        %v2581 = vunpack.c.l.b16 %v2557
        %v2582 = vunpack.c.l.b16 %v2558
        %v2583 = vpack.c.b16 %v2576, %v2575
        %v2584 = vpack.c.b16 %v2578, %v2577
        %v2585 = vpack.c.b16 %v2580, %v2579
        %v2586 = vpack.c.b16 %v2582, %v2581
        %vm2591 = vcmask 523264
        %v2593 = vsel %vm2591, %v2560, 0
        %2595 = vmatprep.subr.bf16.mxu0 0
        %2596 = vmatpush1.bf16.msra.mxu0 %v2583
        %2597 = vmatprep.subr.bf16.mxu0 0
        %2598 = vmatpush1.bf16.msra.mxu0 %v2584
        %2599 = vmatprep.subr.bf16.mxu0 0
        %2600 = vmatpush1.bf16.msra.mxu0 %v2585
        %2601 = vmatprep.subr.bf16.mxu0 0
        %2602 = vmatpush1.bf16.msra.mxu0 %v2586
        %2603 = vmatprep.subr.bf16.mxu0 0
        %2604 = vmatpush1.bf16.msra.mxu0 0
        %2605 = vmatprep.subr.bf16.mxu0 0
        %2606 = vmatpush1.bf16.msra.mxu0 0
        %2607 = vmatprep.subr.bf16.mxu0 0
        %2608 = vmatpush1.bf16.msra.mxu0 0
        %2609 = vmatprep.subr.bf16.mxu0 0
        %2610 = vmatpush1.bf16.msra.mxu0 0
        %2611 = vmatprep.subr.bf16.mxu0 0
        %2612 = vmatpush1.bf16.msra.mxu0 0
        %2613 = vmatprep.subr.bf16.mxu0 0
        %2614 = vmatpush1.bf16.msra.mxu0 0
        %2615 = vmatprep.subr.bf16.mxu0 0
        %2616 = vmatpush1.bf16.msra.mxu0 0
        %2617 = vmatprep.subr.bf16.mxu0 0
        %2618 = vmatpush1.bf16.msra.mxu0 0
        %2619 = vmatprep.subr.bf16.mxu0 0
        %2620 = vmatpush1.bf16.msra.mxu0 0
        %2621 = vmatprep.subr.bf16.mxu0 0
        %2622 = vmatpush1.bf16.msra.mxu0 0
        %2623 = vmatprep.subr.bf16.mxu0 0
        %2624 = vmatpush1.bf16.msra.mxu0 0
        %2625 = vmatprep.subr.bf16.mxu0 0
        %2626 = vmatpush1.bf16.msra.mxu0 0
        %2627 = vmatprep.mubr.bf16.mxu0 0
        %2628 = vmatmul.mubr.bf16.gmra.mrb[0].mxu0 %v2593
        %v2629 = vpop.f32.mrb[0].mxu0
        %v2630 = vadd.f32 %v2565, %v2629
        %v2631 = vpop.f32.mrb[0].mxu0
        %v2632 = vpop.f32.mrb[0].mxu0
        %v2633 = vadd.f32 %v2565, %v2632
        %v2634 = vpop.f32.mrb[0].mxu0
        %2635 = vdwg.mxu0
        %v2636 = vadd.f32 %v2630, %v2471
        %v2637 = vadd.f32 %v2633, %v2472
        %v2638 = vld [vmem:[%s973] sm:$0x1]
        %v2639 = vld [vmem:[%s976] sm:$0x1]
        %v2640 = vsel %vm1058, %v2636, 0.0
        %2641 = vadd.xlane.f32.xlu0 %v2640
        %v2642 = vpop.xlane.xlu0 %2641
        %v2643 = vsel %vm1058, %v2637, 0.0
        %2644 = vadd.xlane.f32.xlu0 %v2643
        %v2645 = vpop.xlane.xlu0 %2644
        %v2646 = vmul.f32 %v2642, %v2436
        %v2647 = vmul.f32 %v2645, %v2436
        %v2648 = vsub.f32 %v2636, %v2646
        %v2649 = vsub.f32 %v2637, %v2647
        %v2650 = vmul.f32 %v2648, %v2648
        %v2651 = vmul.f32 %v2649, %v2649
        %v2652 = vsel %vm1058, %v2650, 0.0
        %2653 = vadd.xlane.f32.xlu0 %v2652
        %v2654 = vpop.xlane.xlu0 %2653
        %v2655 = vsel %vm1058, %v2651, 0.0
        %2656 = vadd.xlane.f32.xlu0 %v2655
        %v2657 = vpop.xlane.xlu0 %2656
        %v2658 = vmul.f32 %v2654, %v2436
        %v2659 = vmul.f32 %v2657, %v2436
        %v2660 = vadd.f32 %v2658, 1e-12
        %v2661 = vadd.f32 %v2659, 1e-12
        %v2662 = vrsqrt.pop %v2660
        %v2663 = vrsqrt.pop %v2661
        %v2664 = vmul.f32 %v2648, %v2662
        %v2665 = vmul.f32 %v2649, %v2663
        %v2667 = vlaneseq
        %v2668 = vshrl.u32 %v2667, 7
        %v2669 = vsub.s32 0, %v2668
        %v2670 = vrot.slane %v2638, %v2669
        %v2672 = vmul.f32 %v2664, %v2670
        %v2673 = vmul.f32 %v2665, %v2670
        %v2675 = vlaneseq
        %v2676 = vshrl.u32 %v2675, 7
        %v2677 = vsub.s32 0, %v2676
        %v2678 = vrot.slane %v2639, %v2677
        %v2680 = vadd.f32 %v2672, %v2678
        %v2681 = vadd.f32 %v2673, %v2678
        %2682 = vst.msk [vmem:[#allocation2] sm:$0xff] %vm1058, %v2680
        %2683 = vst.msk [vmem:[#allocation2 + $0x8] sm:$0xff] %vm1058, %v2681
        %p2684 = scmp.eq.s32.totalorder %s39, 1
        // Predicated region
        $region133: #{hf_bert_encoder_forward.1} parent=127 // pred_check
          %p2685 = pneg %p2684
        $region134: #{hf_bert_encoder_forward.1} parent=127 // pred_check_branch
          %2687 = sbr.rel (%p2685) target = $region136
        $region135: #{hf_bert_encoder_forward.1} parent=127 // pred_region
          %v2688 = vld [vmem:[%s2] sm:$0xff]
          %v2689 = vld [vmem:[%s2 + $0x8] sm:$0xff]
          %2691 = vset.pattern.permute.xlu0 0
          %2692 = vperm.xlu0 %2691, %v2688
          %v2693 = vpop.permute.xlu0 %2692
          %2696 = vset.pattern.permute.xlu0 0
          %2697 = vperm.xlu0 %2696, %v2689
          %v2698 = vpop.permute.xlu0 %2697
          %v2700 = vmul.f32 %v2680, %v2693
          %v2701 = vmul.f32 %v2681, %v2698
          %v2702 = vsel %vm1058, %v2700, 0.0
          %v2703 = vrot.slane %v2702, 4
          %v2704 = vadd.f32 %v2702, %v2703
          %v2705 = vrot.slane %v2704, 2
          %v2706 = vadd.f32 %v2704, %v2705
          %v2707 = vrot.slane %v2706, 1
          %v2708 = vadd.f32 %v2706, %v2707
          %vm2709 = vcmask 7168
          %v2710 = vsel %vm2709, %v2688, 0.0
          %v2711 = vrot.slane %v2710, 4
          %v2712 = vadd.f32 %v2710, %v2711
          %v2713 = vrot.slane %v2712, 2
          %v2714 = vadd.f32 %v2712, %v2713
          %v2715 = vrot.slane %v2714, 1
          %v2716 = vadd.f32 %v2714, %v2715
          %v2717 = vsel %vm1058, %v2701, 0.0
          %v2718 = vrot.slane %v2717, 4
          %v2719 = vadd.f32 %v2717, %v2718
          %v2720 = vrot.slane %v2719, 2
          %v2721 = vadd.f32 %v2719, %v2720
          %v2722 = vrot.slane %v2721, 1
          %v2723 = vadd.f32 %v2721, %v2722
          %v2724 = vsel %vm2709, %v2689, 0.0
          %v2725 = vrot.slane %v2724, 4
          %v2726 = vadd.f32 %v2724, %v2725
          %v2727 = vrot.slane %v2726, 2
          %v2728 = vadd.f32 %v2726, %v2727
          %v2729 = vrot.slane %v2728, 1
          %v2730 = vadd.f32 %v2728, %v2729
          %vm2731 = vcmask 1040384
          %v2732 = vsel %vm2731, %v2708, %v2723
          %v2733 = vsel %vm2731, %v2716, %v2730
          %v2734 = vmax.f32 %v2733, 1e-09
          %2736 = vset.pattern.permute.xlu0 0
          %2737 = vperm.xlu0 %2736, %v2734
          %v2738 = vpop.permute.xlu0 %2737
          %v2740 = vrcp.pop %v2738
          %v2741 = vmul.f32 %v2732, %v2740
          %v2742 = vld [vmem:[%s19] sm:$0xf]
          %v2743 = vld [vmem:[%s19 + $0x4] sm:$0xf]
          %v2744 = vld [vmem:[%s19 + $0x8] sm:$0xf]
          %v2745 = vld [vmem:[%s19 + $0xc] sm:$0xf]
          %v2746 = vld [vmem:[%s20] sm:$0x1]
          %v2747 = vpack.c.bf16 %v2741, %v2741
          %v2749 = vlaneseq
          %v2750 = vshrl.u32 %v2749, 7
          %v2751 = vsub.s32 0, %v2750
          %v2752 = vrot.slane %v2746, %v2751
          %v2758 = vunpack.c.l.b16 %v2742
          %v2759 = vunpack.c.l.b16 %v2743
          %v2760 = vunpack.c.l.b16 %v2744
          %v2761 = vunpack.c.l.b16 %v2745
          %v2762 = vpack.c.b16 %v2759, %v2758
          %v2763 = vpack.c.b16 %v2761, %v2760
          %v2767 = vsel %vm1058, %v2747, 0
          %2769 = vmatprep.subr.bf16.mxu0 0
          %2770 = vmatpush1.bf16.msra.mxu0 %v2762
          %2771 = vmatprep.subr.bf16.mxu0 0
          %2772 = vmatpush1.bf16.msra.mxu0 %v2763
          %2773 = vmatprep.subr.bf16.mxu0 0
          %2774 = vmatpush1.bf16.msra.mxu0 0
          %2775 = vmatprep.subr.bf16.mxu0 0
          %2776 = vmatpush1.bf16.msra.mxu0 0
          %2777 = vmatprep.subr.bf16.mxu0 0
          %2778 = vmatpush1.bf16.msra.mxu0 0
          %2779 = vmatprep.subr.bf16.mxu0 0
          %2780 = vmatpush1.bf16.msra.mxu0 0
          %2781 = vmatprep.subr.bf16.mxu0 0
          %2782 = vmatpush1.bf16.msra.mxu0 0
          %2783 = vmatprep.subr.bf16.mxu0 0
          %2784 = vmatpush1.bf16.msra.mxu0 0
          %2785 = vmatprep.subr.bf16.mxu0 0
          %2786 = vmatpush1.bf16.msra.mxu0 0
          %2787 = vmatprep.subr.bf16.mxu0 0
          %2788 = vmatpush1.bf16.msra.mxu0 0
          %2789 = vmatprep.subr.bf16.mxu0 0
          %2790 = vmatpush1.bf16.msra.mxu0 0
          %2791 = vmatprep.subr.bf16.mxu0 0
          %2792 = vmatpush1.bf16.msra.mxu0 0
          %2793 = vmatprep.subr.bf16.mxu0 0
          %2794 = vmatpush1.bf16.msra.mxu0 0
          %2795 = vmatprep.subr.bf16.mxu0 0
          %2796 = vmatpush1.bf16.msra.mxu0 0
          %2797 = vmatprep.subr.bf16.mxu0 0
          %2798 = vmatpush1.bf16.msra.mxu0 0
          %2799 = vmatprep.subr.bf16.mxu0 0
          %2800 = vmatpush1.bf16.msra.mxu0 0
          %2801 = vmatprep.mubr.bf16.mxu0 0
          %2802 = vmatmul.mubr.bf16.gmra.mrb[0].mxu0 %v2767
          %v2803 = vpop.f32.mrb[0].mxu0
          %v2804 = vadd.f32 %v2752, %v2803
          %v2805 = vpop.f32.mrb[0].mxu0
          %v2806 = vpop.f32.mrb[0].mxu0
          %v2807 = vpop.f32.mrb[0].mxu0
          %2808 = vdwg.mxu0
          %v2809 = vmax.f32 %v2804, 0.0
          %v2810 = vld [vmem:[%s21] sm:$0x1]
          %v2811 = vld [vmem:[%s22] sm:$0x1]
          %vm2812 = vcmask 517120
          %v2813 = vsel %vm2812, %v2809, 0.0
          %v2814 = vrot.slane %v2813, 4
          %v2815 = vadd.f32 %v2813, %v2814
          %v2816 = vrot.slane %v2815, 2
          %v2817 = vadd.f32 %v2815, %v2816
          %v2818 = vrot.slane %v2817, 1
          %v2819 = vadd.f32 %v2817, %v2818
          %v2820 = vrcp.pop 2.0
          %v2821 = vmul.f32 %v2819, %v2820
          %v2822 = vsub.f32 %v2809, %v2821
          %v2823 = vmul.f32 %v2822, %v2822
          %v2824 = vsel %vm2812, %v2823, 0.0
          %v2825 = vrot.slane %v2824, 4
          %v2826 = vadd.f32 %v2824, %v2825
          %v2827 = vrot.slane %v2826, 2
          %v2828 = vadd.f32 %v2826, %v2827
          %v2829 = vrot.slane %v2828, 1
          %v2830 = vadd.f32 %v2828, %v2829
          %v2831 = vmul.f32 %v2830, %v2820
          %v2832 = vadd.f32 %v2831, 1e-05
          %v2833 = vrsqrt.pop %v2832
          %v2834 = vmul.f32 %v2822, %v2833
          %v2836 = vlaneseq
          %v2837 = vshrl.u32 %v2836, 7
          %v2838 = vsub.s32 0, %v2837
          %v2839 = vrot.slane %v2810, %v2838
          %v2841 = vmul.f32 %v2834, %v2839
          %v2843 = vlaneseq
          %v2844 = vshrl.u32 %v2843, 7
          %v2845 = vsub.s32 0, %v2844
          %v2846 = vrot.slane %v2811, %v2845
          %v2848 = vadd.f32 %v2841, %v2846
          %v2849 = vld [vmem:[%s23] sm:$0xf]
          %v2850 = vld [vmem:[%s23 + $0x4] sm:$0xf]
          %v2851 = vld [vmem:[%s23 + $0x8] sm:$0xf]
          %v2852 = vld [vmem:[%s23 + $0xc] sm:$0xf]
          %v2853 = vld [vmem:[%s23 + $0x10] sm:$0xf]
          %v2854 = vld [vmem:[%s23 + $0x14] sm:$0xf]
          %v2855 = vld [vmem:[%s23 + $0x18] sm:$0xf]
          %v2856 = vld [vmem:[%s23 + $0x1c] sm:$0xf]
          %v2857 = vld [vmem:[%s24] sm:$0x1]
          %v2858 = vpack.c.bf16 %v2848, %v2848
          %v2860 = vlaneseq
          %v2861 = vshrl.u32 %v2860, 7
          %v2862 = vsub.s32 0, %v2861
          %v2863 = vrot.slane %v2857, %v2862
          %v2873 = vunpack.c.l.b16 %v2849
          %v2874 = vunpack.c.l.b16 %v2850
          %v2875 = vunpack.c.l.b16 %v2851
          %v2876 = vunpack.c.l.b16 %v2852
          %v2877 = vunpack.c.l.b16 %v2853
          %v2878 = vunpack.c.l.b16 %v2854
          %v2879 = vunpack.c.l.b16 %v2855
          %v2880 = vunpack.c.l.b16 %v2856
          %v2881 = vpack.c.b16 %v2874, %v2873
          %v2882 = vpack.c.b16 %v2876, %v2875
          %v2883 = vpack.c.b16 %v2878, %v2877
          %v2884 = vpack.c.b16 %v2880, %v2879
          %v2890 = vsel %vm2591, %v2858, 0
          %2892 = vmatprep.subr.bf16.mxu0 0
          %2893 = vmatpush1.bf16.msra.mxu0 %v2881
          %2894 = vmatprep.subr.bf16.mxu0 0
          %2895 = vmatpush1.bf16.msra.mxu0 %v2882
          %2896 = vmatprep.subr.bf16.mxu0 0
          %2897 = vmatpush1.bf16.msra.mxu0 %v2883
          %2898 = vmatprep.subr.bf16.mxu0 0
          %2899 = vmatpush1.bf16.msra.mxu0 %v2884
          %2900 = vmatprep.subr.bf16.mxu0 0
          %2901 = vmatpush1.bf16.msra.mxu0 0
          %2902 = vmatprep.subr.bf16.mxu0 0
          %2903 = vmatpush1.bf16.msra.mxu0 0
          %2904 = vmatprep.subr.bf16.mxu0 0
          %2905 = vmatpush1.bf16.msra.mxu0 0
          %2906 = vmatprep.subr.bf16.mxu0 0
          %2907 = vmatpush1.bf16.msra.mxu0 0
          %2908 = vmatprep.subr.bf16.mxu0 0
          %2909 = vmatpush1.bf16.msra.mxu0 0
          %2910 = vmatprep.subr.bf16.mxu0 0
          %2911 = vmatpush1.bf16.msra.mxu0 0
          %2912 = vmatprep.subr.bf16.mxu0 0
          %2913 = vmatpush1.bf16.msra.mxu0 0
          %2914 = vmatprep.subr.bf16.mxu0 0
          %2915 = vmatpush1.bf16.msra.mxu0 0
          %2916 = vmatprep.subr.bf16.mxu0 0
          %2917 = vmatpush1.bf16.msra.mxu0 0
          %2918 = vmatprep.subr.bf16.mxu0 0
          %2919 = vmatpush1.bf16.msra.mxu0 0
          %2920 = vmatprep.subr.bf16.mxu0 0
          %2921 = vmatpush1.bf16.msra.mxu0 0
          %2922 = vmatprep.subr.bf16.mxu0 0
          %2923 = vmatpush1.bf16.msra.mxu0 0
          %2924 = vmatprep.mubr.bf16.mxu0 0
          %2925 = vmatmul.mubr.bf16.gmra.mrb[0].mxu0 %v2890
          %v2926 = vpop.f32.mrb[0].mxu0
          %v2927 = vadd.f32 %v2863, %v2926
          %v2928 = vpop.f32.mrb[0].mxu0
          %v2929 = vpop.f32.mrb[0].mxu0
          %v2930 = vpop.f32.mrb[0].mxu0
          %2931 = vdwg.mxu0
          %v2932 = vmax.f32 %v2927, 0.0
          %v2933 = vld [vmem:[%s25] sm:$0x1]
          %v2934 = vld [vmem:[%s26] sm:$0x1]
          %vm2935 = vcmask 254976
          %v2936 = vsel %vm2935, %v2932, 0.0
          %v2937 = vrot.slane %v2936, 4
          %v2938 = vadd.f32 %v2936, %v2937
          %v2939 = vrot.slane %v2938, 2
          %v2940 = vadd.f32 %v2938, %v2939
          %v2941 = vrot.slane %v2940, 1
          %v2942 = vadd.f32 %v2940, %v2941
          %v2943 = vmul.f32 %v2942, %v2820
          %v2944 = vsub.f32 %v2932, %v2943
          %v2945 = vmul.f32 %v2944, %v2944
          %v2946 = vsel %vm2935, %v2945, 0.0
          %v2947 = vrot.slane %v2946, 4
          %v2948 = vadd.f32 %v2946, %v2947
          %v2949 = vrot.slane %v2948, 2
          %v2950 = vadd.f32 %v2948, %v2949
          %v2951 = vrot.slane %v2950, 1
          %v2952 = vadd.f32 %v2950, %v2951
          %v2953 = vmul.f32 %v2952, %v2820
          %v2954 = vadd.f32 %v2953, 1e-05
          %v2955 = vrsqrt.pop %v2954
          %v2956 = vmul.f32 %v2944, %v2955
          %v2958 = vlaneseq
          %v2959 = vshrl.u32 %v2958, 7
          %v2960 = vsub.s32 0, %v2959
          %v2961 = vrot.slane %v2933, %v2960
          %v2963 = vmul.f32 %v2956, %v2961
          %v2965 = vlaneseq
          %v2966 = vshrl.u32 %v2965, 7
          %v2967 = vsub.s32 0, %v2966
          %v2968 = vrot.slane %v2934, %v2967
          %v2970 = vadd.f32 %v2963, %v2968
          %2971 = vst.msk [vmem:[#allocation3] sm:$0x3] %vm2935, %v2970
        $region136: #{hf_bert_encoder_forward.1} parent=127 // pred_fallthru
          _
        // Predicated region
        $region137: #{hf_bert_encoder_forward.1} parent=127 // pred_check
          %p2972 = pneg %p679
        $region138: #{hf_bert_encoder_forward.1} parent=127 // pred_check_branch
          %2974 = sbr.rel (%p2972) target = $region140
        $region139: #{hf_bert_encoder_forward.1} parent=127 // pred_region
          %s2976 = ssub.s32 32, 32
          %2977 = vsyncadd [#allocation4], %s2976
          %s2979 = sshll.u32 [#allocation3], 4
          %s2980 = int_to_ptr.vmem [resolvable:$true] %s2979
          %2982 = dma.vmem_to_hbm [thread:$0]  %s2980, 32, %s27, [#allocation4]
        $region140: #{hf_bert_encoder_forward.1} parent=127 // pred_fallthru
          _
        // Predicated region
        $region141: #{hf_bert_encoder_forward.1} parent=127 // pred_check
          %p2983 = pneg %p679
        $region142: #{hf_bert_encoder_forward.1} parent=127 // pred_check_branch
          %2985 = sbr.rel (%p2983) target = $region144
        $region143: #{hf_bert_encoder_forward.1} parent=127 // pred_region
          %2986 = dma.done [#allocation4], 32
        $region144: #{hf_bert_encoder_forward.1} parent=127 // pred_fallthru
          _
      $region128: #{hf_bert_encoder_forward.1} parent=5 // pred_fallthru
        _
      %p2987 = scmp.le.s32.totalorder 2, %s34
      // Predicated region
      $region145: #{hf_bert_encoder_forward.1} parent=5 // pred_check
        %p2988 = pneg %p2987
      $region146: #{hf_bert_encoder_forward.1} parent=5 // pred_check_branch
        %2990 = sbr.rel (%p2988) target = $region148
      $region147: #{hf_bert_encoder_forward.1} parent=5 // pred_region
        %s2991 = ssub.s32 %s34, 2
      $region148: #{hf_bert_encoder_forward.1} parent=5 // pred_fallthru
        _
    $region6: #{hf_bert_encoder_forward.1} parent=1 // loop_footer
      %s38 = sadd.s32 1, %s34
    $region7: #{hf_bert_encoder_forward.1} parent=1 // loop_footer_branch
      %33 = sbr.rel target = $region3
    $region8: #{hf_bert_encoder_forward.1} parent=1 // loop_exit
      _
    %2992 = vsyncpa [#allocation4], 1
    %s2993 = scalar_lea.sflag [#allocation4], 1
    %2994 = vsyncpa %s2993, 1

</llo_original>
